<compile_context>
chip_gen: v5e
topology: v5e:2x2
jax: 0.10.0
libtpu: 0.0.40
codegen_flags: <defaults>
</compile_context>

<pallas_src>
import functools

import numpy as np
import jax
import jax.numpy as jnp
from jax.experimental import pallas as pl
from jax.experimental.pallas import tpu as pltpu

# ---------------- mel front-end constants (AugmentMelSTFT) ----------------
SR = 32000
N_FFT = 1024
WIN = 800
HOP = 320
N_MELS = 128
LPAD = (N_FFT - WIN) // 2        # 112 (zero-pad offset folded into DFT rows)

K_PAD = 896                      # WIN padded to multiple of 128 (matmul K)
F_PAD = 512                      # freq bins kept (Nyquist bin dropped: its mel row is 0)
DFT_W = 2 * F_PAD                # fused [cos | sin] weight width = 1024

# ---------------- scaled-down backbone dims ----------------
C_IN = 1
C1 = 16                          # stem channels
C2 = 32                          # block channels
EMBED = 64                       # embedding size (mn10 uses 960; scaled down)
EMBED_PAD = 128                  # lane-dense output width
PATCH_W = 128                    # patch tensor last dim ([9 validity | 81 taps | pad])

MEL_TILE_MAX = 512               # frame rows per mel grid step (adaptive below)
ROW_TILE_MAX = 1024              # dw-output rows per backbone grid step (adaptive below)
SPLIT = 2                        # row-axis split -> parallel grid extent >= 2 (v7x)


def _round_up(x, m):
    return ((x + m - 1) // m) * m


# =====================  host-side constant builders  =====================

def _build_dft_weight():
    """Fused, Hann-windowed [cos | sin] DFT weight, lane-aligned: (K_PAD, DFT_W)."""
    n = np.arange(WIN)
    f = np.arange(F_PAD)                             # bins 0..511 (Nyquist dropped)
    ang = 2.0 * np.pi * np.outer(n + LPAD, f) / N_FFT
    hann = np.hanning(WIN)[:, None]
    w = np.zeros((K_PAD, DFT_W), np.float32)
    w[:WIN, :F_PAD] = hann * np.cos(ang)
    w[:WIN, F_PAD:] = -hann * np.sin(ang)
    return jnp.asarray(w, jnp.bfloat16)


def _build_mel_fb():
    """Triangular mel filterbank over bins 0..511: (F_PAD, N_MELS) f32."""
    fmin, fmax = 0.0, SR / 2.0
    hz2mel = lambda f: 2595.0 * np.log10(1.0 + f / 700.0)
    mel2hz = lambda m: 700.0 * (10.0 ** (m / 2595.0) - 1.0)
    mels = np.linspace(hz2mel(fmin), hz2mel(fmax), N_MELS + 2)
    bins = np.floor((N_FFT + 1) * mel2hz(mels) / SR).astype(np.int64)
    bins = np.minimum(bins, F_PAD)                   # bin 512 (Nyquist) has zero weight
    fb = np.zeros((F_PAD, N_MELS), dtype=np.float32)
    for m in range(1, N_MELS + 1):
        l, c, r = bins[m - 1], bins[m], bins[m + 1]
        for q in range(l, c):
            if c > l:
                fb[q, m - 1] = (q - l) / (c - l)
        for q in range(c, r):
            if r > c:
                fb[q, m - 1] = (r - q) / (r - c)
    return jnp.asarray(fb, jnp.float32)


DFT_WEIGHT = _build_dft_weight()
MEL_FB = _build_mel_fb()


# =====================  Pallas kernel 1: mel front end  =====================

def _mel_kernel(frames_ref, w_ref, fb_ref, out_ref):
    """Fused |STFT|^2 -> mel -> log -> fast-norm for one tile of frame rows."""
    d = jnp.dot(frames_ref[...], w_ref[...],
                preferred_element_type=jnp.float32)        # (tile, 1024) f32
    re = d[:, :F_PAD]                                      # 512-aligned lane slices
    im = d[:, F_PAD:]
    power = re * re + im * im                              # (tile, 512) f32
    mel = jnp.dot(power, fb_ref[...],
                  preferred_element_type=jnp.float32)      # (tile, 128) f32 matmul
    out_ref[...] = (jnp.log(mel + 1e-5) + 4.5) * 0.2       # "fast_normalize"


def mel_spectrogram(frames):
    """frames: (rows, WIN) bf16 raw frames -> (rows, N_MELS) f32 log-mel."""
    rows = frames.shape[0]
    tile = min(MEL_TILE_MAX, _round_up(rows, 16))
    rows_pad = pl.cdiv(rows, tile) * tile
    fp = jnp.pad(frames, ((0, rows_pad - rows), (0, K_PAD - WIN)))
    out = pl.pallas_call(
        _mel_kernel,
        grid=(rows_pad // tile,),
        in_specs=[
            pl.BlockSpec((tile, K_PAD), lambda i: (i, 0)),
            pl.BlockSpec((K_PAD, DFT_W), lambda i: (0, 0)),     # resident weight
            pl.BlockSpec((F_PAD, N_MELS), lambda i: (0, 0)),    # resident fb
        ],
        out_specs=pl.BlockSpec((tile, N_MELS), lambda i: (i, 0)),
        out_shape=jax.ShapeDtypeStruct((rows_pad, N_MELS), jnp.float32),
        compiler_params=pltpu.CompilerParams(dimension_semantics=("parallel",)),
    )(fp, DFT_WEIGHT, MEL_FB)
    return out[:rows]


# =====================  Pallas kernel 2: fused backbone  =====================

def _hardswish(y):
    return y * jnp.clip(y + 3.0, 0.0, 6.0) * (1.0 / 6.0)


def _backbone_kernel(p_ref, wbig_ref, wdw_ref, bdw_ref, w1_ref, b1_ref,
                     w2_ref, b2_ref, o_ref, *, n_valid, rows_half, tile):
    """stem 3x3/s2 + hswish -> dw 3x3/s2 + ReLU -> pw1 ReLU -> pw2 hswish -> GAP sum.

    p_ref block: (1, tile, 128) with columns [9 dw-tap validities | 81 spec taps | pad].
    Stem bias and dw zero-pad masking are folded into w_big's first 9 rows, so
    invalid taps produce exactly 0 through hard-swish(0)=0. Activations run in
    bf16; all matmuls accumulate in f32. The pooled partial sum is a mask-vector
    matmul accumulated into the (1,1,128) output block across the k axis.
    """
    k = pl.program_id(1)

    @pl.when(k == 0)
    def _():
        o_ref[...] = jnp.zeros_like(o_ref)

    p = p_ref[0]                                                    # (tile, 128) bf16

    # stem conv at all 9 dw tap positions (bias + validity folded into w_big)
    h = jnp.dot(p, wbig_ref[...], preferred_element_type=jnp.float32)
    h = _hardswish(h.astype(jnp.bfloat16))                          # (tile, 144) bf16

    # depthwise 3x3 / stride 2, ReLU (block-diagonal expanded weight)
    h = jnp.dot(h, wdw_ref[...], preferred_element_type=jnp.float32) + bdw_ref[...]
    h = jnp.maximum(h.astype(jnp.bfloat16), 0.0)                    # (tile, C1)

    # pointwise 1x1 -> C2, ReLU
    h = jnp.dot(h, w1_ref[...], preferred_element_type=jnp.float32) + b1_ref[...]
    h = jnp.maximum(h.astype(jnp.bfloat16), 0.0)                    # (tile, C2)

    # pointwise 1x1 -> EMBED (padded to 128 lanes), hard-swish
    h = jnp.dot(h, w2_ref[...], preferred_element_type=jnp.float32) + b2_ref[...]
    h = _hardswish(h.astype(jnp.bfloat16))                          # (tile, 128) bf16

    # masked partial global-average-pool sum via a (1,tile)x(tile,128) MXU matmul
    s = pl.program_id(0) % SPLIT
    local = k * tile + jax.lax.broadcasted_iota(jnp.int32, (1, tile), 1)
    glob = local + s * rows_half
    mask = (glob < n_valid).astype(jnp.bfloat16)                    # (1, tile)
    o_ref[...] += jnp.dot(mask, h, preferred_element_type=jnp.float32)[None]


def backbone(p2, n_valid, wts):
    """p2: (B, R, 128) bf16 tap tensor -> pooled features (B, EMBED) f32."""
    b, r, _ = p2.shape
    rows_half_raw = pl.cdiv(r, SPLIT)
    tile = min(ROW_TILE_MAX, _round_up(rows_half_raw, 16))
    rows_half = pl.cdiv(rows_half_raw, tile) * tile
    r_pad = SPLIT * rows_half
    p2 = jnp.pad(p2, ((0, 0), (0, r_pad - r), (0, 0)))
    p2 = p2.reshape(b * SPLIT, rows_half, PATCH_W)
    n_k = rows_half // tile

    const = lambda i, k: (0, 0)
    out = pl.pallas_call(
        functools.partial(_backbone_kernel, n_valid=n_valid,
                          rows_half=rows_half, tile=tile),
        grid=(b * SPLIT, n_k),
        in_specs=[
            pl.BlockSpec((1, tile, PATCH_W), lambda i, k: (i, k, 0)),
            pl.BlockSpec((PATCH_W, 9 * C1), const),
            pl.BlockSpec((9 * C1, C1), const),
            pl.BlockSpec((1, C1), const),
            pl.BlockSpec((C1, C2), const),
            pl.BlockSpec((1, C2), const),
            pl.BlockSpec((C2, EMBED_PAD), const),
            pl.BlockSpec((1, EMBED_PAD), const),
        ],
        out_specs=pl.BlockSpec((1, 1, EMBED_PAD), lambda i, k: (i, 0, 0)),
        out_shape=jax.ShapeDtypeStruct((b * SPLIT, 1, EMBED_PAD), jnp.float32),
        compiler_params=pltpu.CompilerParams(
            dimension_semantics=("parallel", "arbitrary")),
    )(p2, wts["w_big"], wts["w_dw"], wts["b_dw"],
      wts["w_pw1"], wts["b_pw1"], wts["w_pw2"], wts["b_pw2"])
    # combine the two row-splits (partial sums) and normalize the average pool
    feats = out.reshape(b, SPLIT, EMBED_PAD).sum(axis=1) / float(n_valid)
    return feats[:, :EMBED]


# =====================  XLA glue: framing / tap gathering / weight expansion  ==========

def frame_signal(x):
    """x: (S, n) f32 waveform -> (S*T, WIN) bf16 raw frames (Hann in DFT weight), T."""
    x = x[:, 1:] - 0.97 * x[:, :-1]                      # preemphasis conv1d
    n = x.shape[1]
    t = 1 + (n - WIN) // HOP
    x = x.astype(jnp.bfloat16)                           # cast BEFORE gather/pad
    idx = np.arange(t)[:, None] * HOP + np.arange(WIN)[None, :]
    frames = x[:, idx]                                   # (S, T, WIN) bf16
    return frames.reshape(-1, WIN), t


def _strided_taps(x, out_h, out_w):
    """3x3 / stride-2 tap views of a spatially pre-padded map x: (B, Hp, Wp, ...)."""
    taps = []
    for i in range(3):
        for j in range(3):
            taps.append(x[:, i:i + 2 * out_h - 1:2, j:j + 2 * out_w - 1:2])
    return taps


def build_backbone_patches(spec):
    """spec: (B, n_mels, T) -> (B, R, 128) bf16 = [9 dw validities | 81 taps | 0-pad]."""
    b, hmel, t = spec.shape
    ho = (hmel - 1) // 2 + 1
    wo = (t - 1) // 2 + 1
    h2 = (ho - 1) // 2 + 1
    w2 = (wo - 1) // 2 + 1

    spec = spec.astype(jnp.bfloat16)

    # stem 3x3/s2 patches over (mel, time), C_IN = 1
    xp = jnp.pad(spec, ((0, 0), (1, 1), (1, 1)))
    stem_p = jnp.stack(_strided_taps(xp, ho, wo), axis=-1)          # (B, ho, wo, 9)

    # depthwise 3x3/s2 taps over the stem-output grid (+ validity for zero pad ring)
    sp = jnp.pad(stem_p, ((0, 0), (1, 1), (1, 1), (0, 0)))
    vp = jnp.pad(jnp.ones((b, ho, wo), jnp.bfloat16), ((0, 0), (1, 1), (1, 1)))
    s_taps = jnp.stack(_strided_taps(sp, h2, w2), axis=3)           # (B, h2, w2, 9, 9)
    v_taps = jnp.stack(_strided_taps(vp, h2, w2), axis=3)           # (B, h2, w2, 9)
    p2 = jnp.concatenate(
        [v_taps, s_taps.reshape(b, h2, w2, 81),
         jnp.zeros((b, h2, w2, PATCH_W - 90), jnp.bfloat16)], axis=-1)
    return p2.reshape(b, h2 * w2, PATCH_W), h2 * w2


def expand_backbone_weights(params):
    """Expand small conv weights into the block-diagonal matmul weights the kernel uses."""
    eye9 = jnp.eye(9, dtype=jnp.float32)
    # stem weight block-diagonal over the 9 dw tap positions: rows 9..89
    w_stem = jnp.einsum("de,sc->dsec", eye9, params["stem_w"]).reshape(81, 9 * C1)
    # stem bias routed through the 9 validity columns: rows 0..8 (also acts as dw-pad mask)
    b_rows = jnp.einsum("de,c->dec", eye9, params["stem_b"][0]).reshape(9, 9 * C1)
    w_big = jnp.zeros((PATCH_W, 9 * C1), jnp.float32)
    w_big = w_big.at[:9].set(b_rows).at[9:90].set(w_stem)

    w_dw = jnp.einsum("tc,cd->tcd", params["dw_w"],
                      jnp.eye(C1, dtype=jnp.float32)).reshape(9 * C1, C1)
    w_pw2 = jnp.zeros((C2, EMBED_PAD), jnp.float32).at[:, :EMBED].set(params["pw2_w"])
    b_pw2 = jnp.zeros((1, EMBED_PAD), jnp.float32).at[:, :EMBED].set(params["pw2_b"])
    return dict(
        w_big=w_big.astype(jnp.bfloat16),
        w_dw=w_dw.astype(jnp.bfloat16), b_dw=params["dw_b"],
        w_pw1=params["pw1_w"].astype(jnp.bfloat16), b_pw1=params["pw1_b"],
        w_pw2=w_pw2.astype(jnp.bfloat16), b_pw2=b_pw2,
    )


def init_params(key):
    ks = jax.random.split(key, 8)

    def w(k, shape, fan_in):
        return jax.random.normal(k, shape, jnp.float32) / np.sqrt(float(fan_in))

    return dict(
        stem_w=w(ks[0], (9 * C_IN, C1), 9 * C_IN),
        stem_b=0.05 * jax.random.normal(ks[1], (1, C1), jnp.float32),
        dw_w=w(ks[2], (9, C1), 9),
        dw_b=0.05 * jax.random.normal(ks[3], (1, C1), jnp.float32),
        pw1_w=w(ks[4], (C1, C2), C1),
        pw1_b=0.05 * jax.random.normal(ks[5], (1, C2), jnp.float32),
        pw2_w=w(ks[6], (C2, EMBED), C2),
        pw2_b=0.05 * jax.random.normal(ks[7], (1, EMBED), jnp.float32),
    )


# =====================  forward  =====================

@jax.jit
def efficientat_forward(audio, params):
    """audio: (B, 1, N) in [-1, 1] -> features (B, EMBED)."""
    bsz, ch, _ = audio.shape

    # ---- _mel_forward: reshape -> mel -> reshape to (B*C, n_mels, T) ----
    sig = audio.reshape(bsz * ch, -1)
    frames, t = frame_signal(sig)
    mel = mel_spectrogram(frames)                              # (B*C*T, n_mels) f32
    spec = jnp.transpose(mel.reshape(bsz * ch, t, N_MELS), (0, 2, 1))  # (B*C, n_mels, T)

    # ---- fused backbone: stem -> dw -> pw1 -> pw2 -> GAP in one Pallas call ----
    p2, r = build_backbone_patches(spec)
    wts = expand_backbone_weights(params)
    return backbone(p2, r, wts)                                # (B, EMBED)


if __name__ == "__main__":
    key = jax.random.PRNGKey(0)
    k_audio, k_params = jax.random.split(key)

    B, C, N = 2, 1, 8000                 # small: 0.25 s of 32 kHz mono audio
    audio = jax.random.uniform(k_audio, (B, C, N), jnp.float32, -1.0, 1.0)
    params = init_params(k_params)

    feats = efficientat_forward(audio, params)
    feats = jax.block_until_ready(feats)

    assert feats.shape == (B, EMBED), feats.shape
    assert feats.dtype == jnp.float32
    assert bool(jnp.all(jnp.isfinite(feats)))
    print("KERNEL_OK")
</pallas_src>

<mosaic_0001>
module attributes {stable_mosaic.version = 11 : i64} {
  func.func @_mel_kernel(%arg0: i32, %arg1: memref<48x896xbf16, #tpu.memory_space<vmem>>, %arg2: memref<896x1024xbf16, #tpu.memory_space<vmem>>, %arg3: memref<512x128xf32, #tpu.memory_space<vmem>>, %arg4: memref<48x128xf32, #tpu.memory_space<vmem>>) attributes {dimension_semantics = [#tpu.dimension_semantics<parallel>], iteration_bounds = array<i64: 1>, scalar_prefetch = 0 : i64, scratch_operands = 0 : i64, tpu.core_type = #tpu.core_type<tc>, window_params = [{transform_indices = @transform_0, window_bounds = array<i64: 48, 896>}, {pipeline_mode = #tpu.pipeline_mode<synchronous>, transform_indices = @transform_1, window_bounds = array<i64: 896, 1024>}, {pipeline_mode = #tpu.pipeline_mode<synchronous>, transform_indices = @transform_2, window_bounds = array<i64: 512, 128>}, {transform_indices = @transform_3, window_bounds = array<i64: 48, 128>}]} {
    %c0 = arith.constant 0 : index
    %c0_0 = arith.constant 0 : index
    %0 = vector.load %arg1[%c0, %c0_0] : memref<48x896xbf16, #tpu.memory_space<vmem>>, vector<48x896xbf16>
    %c0_1 = arith.constant 0 : index
    %c0_2 = arith.constant 0 : index
    %1 = vector.load %arg2[%c0_1, %c0_2] : memref<896x1024xbf16, #tpu.memory_space<vmem>>, vector<896x1024xbf16>
    %cst = arith.constant dense<0.000000e+00> : vector<48x1024xf32>
    %2 = tpu.matmul %0, %1, %cst {dimension_numbers = #tpu.dot_dimension_numbers<[1], [0], [0], [1], [0, 0, 1, 1], [], []>} : vector<48x896xbf16>, vector<896x1024xbf16>, vector<48x1024xf32> -> vector<48x1024xf32>
    %3 = vector.extract_strided_slice %2 {offsets = [0, 0], sizes = [48, 512], strides = [1, 1]} : vector<48x1024xf32> to vector<48x512xf32>
    %4 = vector.extract_strided_slice %2 {offsets = [0, 512], sizes = [48, 512], strides = [1, 1]} : vector<48x1024xf32> to vector<48x512xf32>
    %5 = arith.mulf %3, %3 : vector<48x512xf32>
    %6 = arith.mulf %4, %4 : vector<48x512xf32>
    %7 = arith.addf %5, %6 : vector<48x512xf32>
    %c0_3 = arith.constant 0 : index
    %c0_4 = arith.constant 0 : index
    %8 = vector.load %arg3[%c0_3, %c0_4] : memref<512x128xf32, #tpu.memory_space<vmem>>, vector<512x128xf32>
    %cst_5 = arith.constant dense<0.000000e+00> : vector<48x128xf32>
    %9 = tpu.matmul %7, %8, %cst_5 {dimension_numbers = #tpu.dot_dimension_numbers<[1], [0], [0], [1], [0, 0, 1, 1], [], []>} : vector<48x512xf32>, vector<512x128xf32>, vector<48x128xf32> -> vector<48x128xf32>
    %cst_6 = arith.constant 9.99999974E-6 : f32
    %10 = vector.broadcast %cst_6 : f32 to vector<48x128xf32>
    %11 = arith.addf %9, %10 : vector<48x128xf32>
    %12 = math.log %11 : vector<48x128xf32>
    %cst_7 = arith.constant 4.500000e+00 : f32
    %13 = vector.broadcast %cst_7 : f32 to vector<48x128xf32>
    %14 = arith.addf %12, %13 : vector<48x128xf32>
    %cst_8 = arith.constant 2.000000e-01 : f32
    %15 = vector.broadcast %cst_8 : f32 to vector<48x128xf32>
    %16 = arith.mulf %14, %15 : vector<48x128xf32>
    %c0_9 = arith.constant 0 : index
    %c0_10 = arith.constant 0 : index
    %17 = vector.load %arg4[%c0_9, %c0_10] : memref<48x128xf32, #tpu.memory_space<vmem>>, vector<48x128xf32>
    tpu.vector_store %arg4[%c0_9, %c0_10], %16 {strides = array<i32>} : memref<48x128xf32, #tpu.memory_space<vmem>>, vector<48x128xf32>,
    return
  }
  func.func @transform_0(%arg0: i32) -> (i32, i32) {
    %c0_i32 = arith.constant 0 : i32
    %c0_i32_0 = arith.constant 0 : i32
    return %arg0, %c0_i32 : i32, i32
  }
  func.func @transform_1(%arg0: i32) -> (i32, i32) {
    %c0_i32 = arith.constant 0 : i32
    %c0_i32_0 = arith.constant 0 : i32
    %c0_i32_1 = arith.constant 0 : i32
    return %c0_i32, %c0_i32_0 : i32, i32
  }
  func.func @transform_2(%arg0: i32) -> (i32, i32) {
    %c0_i32 = arith.constant 0 : i32
    %c0_i32_0 = arith.constant 0 : i32
    %c0_i32_1 = arith.constant 0 : i32
    return %c0_i32, %c0_i32_0 : i32, i32
  }
  func.func @transform_3(%arg0: i32) -> (i32, i32) {
    %c0_i32 = arith.constant 0 : i32
    %c0_i32_0 = arith.constant 0 : i32
    return %arg0, %c0_i32 : i32, i32
  }
}

module attributes {stable_mosaic.version = 11 : i64} {
  func.func @_backbone_kernel(%arg0: i32, %arg1: i32, %arg2: memref<1x96x128xbf16, #tpu.memory_space<vmem>>, %arg3: memref<128x144xbf16, #tpu.memory_space<vmem>>, %arg4: memref<144x16xbf16, #tpu.memory_space<vmem>>, %arg5: memref<1x16xf32, #tpu.memory_space<vmem>>, %arg6: memref<16x32xbf16, #tpu.memory_space<vmem>>, %arg7: memref<1x32xf32, #tpu.memory_space<vmem>>, %arg8: memref<32x128xbf16, #tpu.memory_space<vmem>>, %arg9: memref<1x128xf32, #tpu.memory_space<vmem>>, %arg10: memref<1x1x128xf32, #tpu.memory_space<vmem>>) attributes {dimension_semantics = [#tpu.dimension_semantics<parallel>, #tpu.dimension_semantics<arbitrary>], iteration_bounds = array<i64: 4, 1>, scalar_prefetch = 0 : i64, scratch_operands = 0 : i64, tpu.core_type = #tpu.core_type<tc>, window_params = [{transform_indices = @transform_0, window_bounds = array<i64: 1, 96, 128>}, {pipeline_mode = #tpu.pipeline_mode<synchronous>, transform_indices = @transform_1, window_bounds = array<i64: 128, 144>}, {pipeline_mode = #tpu.pipeline_mode<synchronous>, transform_indices = @transform_2, window_bounds = array<i64: 144, 16>}, {pipeline_mode = #tpu.pipeline_mode<synchronous>, transform_indices = @transform_3, window_bounds = array<i64: 1, 16>}, {pipeline_mode = #tpu.pipeline_mode<synchronous>, transform_indices = @transform_4, window_bounds = array<i64: 16, 32>}, {pipeline_mode = #tpu.pipeline_mode<synchronous>, transform_indices = @transform_5, window_bounds = array<i64: 1, 32>}, {pipeline_mode = #tpu.pipeline_mode<synchronous>, transform_indices = @transform_6, window_bounds = array<i64: 32, 128>}, {pipeline_mode = #tpu.pipeline_mode<synchronous>, transform_indices = @transform_7, window_bounds = array<i64: 1, 128>}, {transform_indices = @transform_8, window_bounds = array<i64: 1, 1, 128>}]} {
    %c0_i32 = arith.constant 0 : i32
    %0 = arith.cmpi eq, %arg1, %c0_i32 : i32
    %1 = arith.extui %0 : i1 to i32
    %c0_i32_0 = arith.constant 0 : i32
    %2 = arith.cmpi ne, %1, %c0_i32_0 : i32
    scf.if %2 {
      %cst_42 = arith.constant 0.000000e+00 : f32
      %79 = vector.broadcast %cst_42 : f32 to vector<1x1x128xf32>
      %c0_43 = arith.constant 0 : index
      %c0_44 = arith.constant 0 : index
      %c0_45 = arith.constant 0 : index
      %80 = vector.load %arg10[%c0_43, %c0_44, %c0_45] : memref<1x1x128xf32, #tpu.memory_space<vmem>>, vector<1x1x128xf32>
      tpu.vector_store %arg10[%c0_43, %c0_44, %c0_45], %79 {strides = array<i32>} : memref<1x1x128xf32, #tpu.memory_space<vmem>>, vector<1x1x128xf32>,
    } else {
    }
    %c0 = arith.constant 0 : index
    %c0_1 = arith.constant 0 : index
    %c0_2 = arith.constant 0 : index
    %3 = vector.load %arg2[%c0, %c0_1, %c0_2] : memref<1x96x128xbf16, #tpu.memory_space<vmem>>, vector<1x96x128xbf16>
    %4 = vector.shape_cast %3 : vector<1x96x128xbf16> to vector<96x128xbf16>
    %c0_3 = arith.constant 0 : index
    %c0_4 = arith.constant 0 : index
    %5 = vector.load %arg3[%c0_3, %c0_4] : memref<128x144xbf16, #tpu.memory_space<vmem>>, vector<128x144xbf16>
    %cst = arith.constant dense<0.000000e+00> : vector<96x144xf32>
    %6 = tpu.matmul %4, %5, %cst {dimension_numbers = #tpu.dot_dimension_numbers<[1], [0], [0], [1], [0, 0, 1, 1], [], []>} : vector<96x128xbf16>, vector<128x144xbf16>, vector<96x144xf32> -> vector<96x144xf32>
    %7 = arith.truncf %6 : vector<96x144xf32> to vector<96x144xbf16>
    %cst_5 = arith.constant 3.000000e+00 : bf16
    %8 = vector.broadcast %cst_5 : bf16 to vector<96x144xbf16>
    %9 = arith.addf %7, %8 : vector<96x144xbf16>
    %cst_6 = arith.constant 0.000000e+00 : f32
    %cst_7 = arith.constant 6.000000e+00 : f32
    %10 = arith.truncf %cst_6 : f32 to bf16
    %11 = vector.broadcast %10 : bf16 to vector<96x144xbf16>
    %12 = arith.maximumf %11, %9 : vector<96x144xbf16>
    %13 = arith.truncf %cst_7 : f32 to bf16
    %14 = vector.broadcast %13 : bf16 to vector<96x144xbf16>
    %15 = arith.minimumf %14, %12 : vector<96x144xbf16>
    %16 = arith.mulf %7, %15 : vector<96x144xbf16>
    %cst_8 = arith.constant 1.669920e-01 : bf16
    %17 = vector.broadcast %cst_8 : bf16 to vector<96x144xbf16>
    %18 = arith.mulf %16, %17 : vector<96x144xbf16>
    %c0_9 = arith.constant 0 : index
    %c0_10 = arith.constant 0 : index
    %19 = vector.load %arg4[%c0_9, %c0_10] : memref<144x16xbf16, #tpu.memory_space<vmem>>, vector<144x16xbf16>
    %cst_11 = arith.constant dense<0.000000e+00> : vector<96x16xf32>
    %20 = tpu.matmul %18, %19, %cst_11 {dimension_numbers = #tpu.dot_dimension_numbers<[1], [0], [0], [1], [0, 0, 1, 1], [], []>} : vector<96x144xbf16>, vector<144x16xbf16>, vector<96x16xf32> -> vector<96x16xf32>
    %c0_12 = arith.constant 0 : index
    %c0_13 = arith.constant 0 : index
    %21 = vector.load %arg5[%c0_12, %c0_13] : memref<1x16xf32, #tpu.memory_space<vmem>>, vector<1x16xf32>
    %22 = vector.broadcast %21 : vector<1x16xf32> to vector<96x16xf32>
    %23 = arith.addf %20, %22 : vector<96x16xf32>
    %24 = arith.truncf %23 : vector<96x16xf32> to vector<96x16xbf16>
    %cst_14 = arith.constant 0.000000e+00 : bf16
    %25 = vector.broadcast %cst_14 : bf16 to vector<96x16xbf16>
    %26 = arith.maximumf %24, %25 : vector<96x16xbf16>
    %c0_15 = arith.constant 0 : index
    %c0_16 = arith.constant 0 : index
    %27 = vector.load %arg6[%c0_15, %c0_16] : memref<16x32xbf16, #tpu.memory_space<vmem>>, vector<16x32xbf16>
    %cst_17 = arith.constant dense<0.000000e+00> : vector<96x32xf32>
    %28 = tpu.matmul %26, %27, %cst_17 {dimension_numbers = #tpu.dot_dimension_numbers<[1], [0], [0], [1], [0, 0, 1, 1], [], []>} : vector<96x16xbf16>, vector<16x32xbf16>, vector<96x32xf32> -> vector<96x32xf32>
    %c0_18 = arith.constant 0 : index
    %c0_19 = arith.constant 0 : index
    %29 = vector.load %arg7[%c0_18, %c0_19] : memref<1x32xf32, #tpu.memory_space<vmem>>, vector<1x32xf32>
    %30 = vector.broadcast %29 : vector<1x32xf32> to vector<96x32xf32>
    %31 = arith.addf %28, %30 : vector<96x32xf32>
    %32 = arith.truncf %31 : vector<96x32xf32> to vector<96x32xbf16>
    %cst_20 = arith.constant 0.000000e+00 : bf16
    %33 = vector.broadcast %cst_20 : bf16 to vector<96x32xbf16>
    %34 = arith.maximumf %32, %33 : vector<96x32xbf16>
    %c0_21 = arith.constant 0 : index
    %c0_22 = arith.constant 0 : index
    %35 = vector.load %arg8[%c0_21, %c0_22] : memref<32x128xbf16, #tpu.memory_space<vmem>>, vector<32x128xbf16>
    %cst_23 = arith.constant dense<0.000000e+00> : vector<96x128xf32>
    %36 = tpu.matmul %34, %35, %cst_23 {dimension_numbers = #tpu.dot_dimension_numbers<[1], [0], [0], [1], [0, 0, 1, 1], [], []>} : vector<96x32xbf16>, vector<32x128xbf16>, vector<96x128xf32> -> vector<96x128xf32>
    %c0_24 = arith.constant 0 : index
    %c0_25 = arith.constant 0 : index
    %37 = vector.load %arg9[%c0_24, %c0_25] : memref<1x128xf32, #tpu.memory_space<vmem>>, vector<1x128xf32>
    %38 = vector.broadcast %37 : vector<1x128xf32> to vector<96x128xf32>
    %39 = arith.addf %36, %38 : vector<96x128xf32>
    %40 = arith.truncf %39 : vector<96x128xf32> to vector<96x128xbf16>
    %cst_26 = arith.constant 3.000000e+00 : bf16
    %41 = vector.broadcast %cst_26 : bf16 to vector<96x128xbf16>
    %42 = arith.addf %40, %41 : vector<96x128xbf16>
    %cst_27 = arith.constant 0.000000e+00 : f32
    %cst_28 = arith.constant 6.000000e+00 : f32
    %43 = arith.truncf %cst_27 : f32 to bf16
    %44 = vector.broadcast %43 : bf16 to vector<96x128xbf16>
    %45 = arith.maximumf %44, %42 : vector<96x128xbf16>
    %46 = arith.truncf %cst_28 : f32 to bf16
    %47 = vector.broadcast %46 : bf16 to vector<96x128xbf16>
    %48 = arith.minimumf %47, %45 : vector<96x128xbf16>
    %49 = arith.mulf %40, %48 : vector<96x128xbf16>
    %cst_29 = arith.constant 1.669920e-01 : bf16
    %50 = vector.broadcast %cst_29 : bf16 to vector<96x128xbf16>
    %51 = arith.mulf %49, %50 : vector<96x128xbf16>
    %c2_i32 = arith.constant 2 : i32
    %c0_i32_30 = arith.constant 0 : i32
    %52 = arith.cmpi eq, %c2_i32, %c0_i32_30 : i32
    %c1_i32 = arith.constant 1 : i32
    %53 = arith.select %52, %c1_i32, %c2_i32 : i32
    %54 = arith.remsi %arg0, %53 : i32
    %c0_i32_31 = arith.constant 0 : i32
    %55 = arith.cmpi ne, %54, %c0_i32_31 : i32
    %c0_i32_32 = arith.constant 0 : i32
    %56 = arith.cmpi slt, %54, %c0_i32_32 : i32
    %c0_i32_33 = arith.constant 0 : i32
    %57 = arith.cmpi slt, %53, %c0_i32_33 : i32
    %58 = arith.xori %56, %57 : i1
    %59 = arith.andi %58, %55 : i1
    %60 = arith.addi %54, %53 : i32
    %61 = arith.select %59, %60, %54 : i32
    %c96_i32 = arith.constant 96 : i32
    %62 = arith.muli %arg1, %c96_i32 : i32
    %63 = tpu.iota {dimensions = array<i32: 1>} : vector<1x96xi32>
    %64 = vector.broadcast %62 : i32 to vector<1x96xi32>
    %65 = arith.addi %64, %63 : vector<1x96xi32>
    %c96_i32_34 = arith.constant 96 : i32
    %66 = arith.muli %61, %c96_i32_34 : i32
    %67 = vector.broadcast %66 : i32 to vector<1x96xi32>
    %68 = arith.addi %65, %67 : vector<1x96xi32>
    %c192_i32 = arith.constant 192 : i32
    %69 = vector.broadcast %c192_i32 : i32 to vector<1x96xi32>
    %70 = arith.cmpi slt, %68, %69 : vector<1x96xi32>
    %71 = arith.extui %70 : vector<1x96xi1> to vector<1x96xi32>
    %72 = arith.sitofp %71 : vector<1x96xi32> to vector<1x96xf32>
    %73 = arith.truncf %72 : vector<1x96xf32> to vector<1x96xbf16>
    %c0_35 = arith.constant 0 : index
    %c0_36 = arith.constant 0 : index
    %c0_37 = arith.constant 0 : index
    %74 = vector.load %arg10[%c0_35, %c0_36, %c0_37] : memref<1x1x128xf32, #tpu.memory_space<vmem>>, vector<1x1x128xf32>
    %cst_38 = arith.constant dense<0.000000e+00> : vector<1x128xf32>
    %75 = tpu.matmul %73, %51, %cst_38 {dimension_numbers = #tpu.dot_dimension_numbers<[1], [0], [0], [1], [0, 0, 1, 1], [], []>} : vector<1x96xbf16>, vector<96x128xbf16>, vector<1x128xf32> -> vector<1x128xf32>
    %76 = vector.shape_cast %75 : vector<1x128xf32> to vector<1x1x128xf32>
    %77 = arith.addf %74, %76 : vector<1x1x128xf32>
    %c0_39 = arith.constant 0 : index
    %c0_40 = arith.constant 0 : index
    %c0_41 = arith.constant 0 : index
    %78 = vector.load %arg10[%c0_39, %c0_40, %c0_41] : memref<1x1x128xf32, #tpu.memory_space<vmem>>, vector<1x1x128xf32>
    tpu.vector_store %arg10[%c0_39, %c0_40, %c0_41], %77 {strides = array<i32>} : memref<1x1x128xf32, #tpu.memory_space<vmem>>, vector<1x1x128xf32>,
    return
  }
  func.func @transform_0(%arg0: i32, %arg1: i32) -> (i32, i32, i32) {
    %c0_i32 = arith.constant 0 : i32
    %c0_i32_0 = arith.constant 0 : i32
    return %arg0, %arg1, %c0_i32 : i32, i32, i32
  }
  func.func @transform_1(%arg0: i32, %arg1: i32) -> (i32, i32) {
    %c0_i32 = arith.constant 0 : i32
    %c0_i32_0 = arith.constant 0 : i32
    %c0_i32_1 = arith.constant 0 : i32
    return %c0_i32, %c0_i32_0 : i32, i32
  }
  func.func @transform_2(%arg0: i32, %arg1: i32) -> (i32, i32) {
    %c0_i32 = arith.constant 0 : i32
    %c0_i32_0 = arith.constant 0 : i32
    %c0_i32_1 = arith.constant 0 : i32
    return %c0_i32, %c0_i32_0 : i32, i32
  }
  func.func @transform_3(%arg0: i32, %arg1: i32) -> (i32, i32) {
    %c0_i32 = arith.constant 0 : i32
    %c0_i32_0 = arith.constant 0 : i32
    %c0_i32_1 = arith.constant 0 : i32
    return %c0_i32, %c0_i32_0 : i32, i32
  }
  func.func @transform_4(%arg0: i32, %arg1: i32) -> (i32, i32) {
    %c0_i32 = arith.constant 0 : i32
    %c0_i32_0 = arith.constant 0 : i32
    %c0_i32_1 = arith.constant 0 : i32
    return %c0_i32, %c0_i32_0 : i32, i32
  }
  func.func @transform_5(%arg0: i32, %arg1: i32) -> (i32, i32) {
    %c0_i32 = arith.constant 0 : i32
    %c0_i32_0 = arith.constant 0 : i32
    %c0_i32_1 = arith.constant 0 : i32
    return %c0_i32, %c0_i32_0 : i32, i32
  }
  func.func @transform_6(%arg0: i32, %arg1: i32) -> (i32, i32) {
    %c0_i32 = arith.constant 0 : i32
    %c0_i32_0 = arith.constant 0 : i32
    %c0_i32_1 = arith.constant 0 : i32
    return %c0_i32, %c0_i32_0 : i32, i32
  }
  func.func @transform_7(%arg0: i32, %arg1: i32) -> (i32, i32) {
    %c0_i32 = arith.constant 0 : i32
    %c0_i32_0 = arith.constant 0 : i32
    %c0_i32_1 = arith.constant 0 : i32
    return %c0_i32, %c0_i32_0 : i32, i32
  }
  func.func @transform_8(%arg0: i32, %arg1: i32) -> (i32, i32, i32) {
    %c0_i32 = arith.constant 0 : i32
    %c0_i32_0 = arith.constant 0 : i32
    %c0_i32_1 = arith.constant 0 : i32
    return %arg0, %c0_i32, %c0_i32_0 : i32, i32, i32
  }
}

</mosaic_0001>

<llo_original>
// kernel: efficientat_forward.2
$region0: #{efficientat_forward.2}
  #allocation0 [shape = 'u32[]', space=smem, size = 0x4, offset = 0x4, fixed_abs, tag = 'smem constant byte address 0x4 - core index']
  #allocation1 [shape = 'u32[72,128]{1,0:T(1,128)}', space=vmem, size = 0x9000, scoped, tag = 'internal scratch']
  %s0 = inlined_call_operand.vmem [shape: bf16[48,896], index: 0, kind: input, shape index: {}]
  %s1 = inlined_call_operand.vmem [shape: bf16[896,1024], index: 1, kind: input, shape index: {}]
  %s2 = inlined_call_operand.vmem [shape: f32[512,128], index: 2, kind: input, shape index: {}]
  %s3 = inlined_call_operand.vmem [shape: f32[48,128], index: 3, kind: output, shape index: {}]
  %s4 = sld [smem:[#allocation0]]
  $region22: #{efficientat_forward.2} parent=0
    _
  %s6 = ssub.s32 1, %s4
  %s7 = scalar_select 0, %s6, %s4
  // Predicated region
  $region2: #{efficientat_forward.2} parent=0 // pred_check
    _
  $region3: #{efficientat_forward.2} parent=0 // pred_check_branch
    %9 = sbr.rel (0) target = $region5
  $region4: #{efficientat_forward.2} parent=0 // pred_region
    _
  $region5: #{efficientat_forward.2} parent=0 // pred_fallthru
    _
  // Predicated region
  $region6: #{efficientat_forward.2} parent=0 // pred_check
    _
  $region7: #{efficientat_forward.2} parent=0 // pred_check_branch
    %11 = sbr.rel (0) target = $region9
  $region8: #{efficientat_forward.2} parent=0 // pred_region
    _
  $region9: #{efficientat_forward.2} parent=0 // pred_fallthru
    _
  // Predicated region
  $region10: #{efficientat_forward.2} parent=0 // pred_check
    _
  $region11: #{efficientat_forward.2} parent=0 // pred_check_branch
    %13 = sbr.rel (0) target = $region13
  $region12: #{efficientat_forward.2} parent=0 // pred_region
    _
  $region13: #{efficientat_forward.2} parent=0 // pred_fallthru
    _
  %v14 = vld [vmem:[%s0] sm:$0xff]
  %v15 = vld [vmem:[%s0 + $0x8] sm:$0xff]
  %v16 = vld [vmem:[%s0 + $0x10] sm:$0xff]
  %v17 = vld [vmem:[%s0 + $0x18] sm:$0xf]
  %v18 = vld [vmem:[%s0 + $0x1c] sm:$0xff]
  %v19 = vld [vmem:[%s0 + $0x24] sm:$0xff]
  %v20 = vld [vmem:[%s0 + $0x2c] sm:$0xff]
  %v21 = vld [vmem:[%s0 + $0x34] sm:$0xf]
  %v22 = vld [vmem:[%s0 + $0x38] sm:$0xff]
  %v23 = vld [vmem:[%s0 + $0x40] sm:$0xff]
  %v24 = vld [vmem:[%s0 + $0x48] sm:$0xff]
  %v25 = vld [vmem:[%s0 + $0x50] sm:$0xf]
  %v26 = vld [vmem:[%s0 + $0x54] sm:$0xff]
  %v27 = vld [vmem:[%s0 + $0x5c] sm:$0xff]
  %v28 = vld [vmem:[%s0 + $0x64] sm:$0xff]
  %v29 = vld [vmem:[%s0 + $0x6c] sm:$0xf]
  %v30 = vld [vmem:[%s0 + $0x70] sm:$0xff]
  %v31 = vld [vmem:[%s0 + $0x78] sm:$0xff]
  %v32 = vld [vmem:[%s0 + $0x80] sm:$0xff]
  %v33 = vld [vmem:[%s0 + $0x88] sm:$0xf]
  %v34 = vld [vmem:[%s0 + $0x8c] sm:$0xff]
  %v35 = vld [vmem:[%s0 + $0x94] sm:$0xff]
  %v36 = vld [vmem:[%s0 + $0x9c] sm:$0xff]
  %v37 = vld [vmem:[%s0 + $0xa4] sm:$0xf]
  %v38 = vld [vmem:[%s1] sm:$0xff]
  %v39 = vld [vmem:[%s1 + $0x8] sm:$0xff]
  %v40 = vld [vmem:[%s1 + $0x10] sm:$0xff]
  %v41 = vld [vmem:[%s1 + $0x18] sm:$0xff]
  %v42 = vld [vmem:[%s1 + $0x20] sm:$0xff]
  %v43 = vld [vmem:[%s1 + $0x28] sm:$0xff]
  %v44 = vld [vmem:[%s1 + $0x30] sm:$0xff]
  %v45 = vld [vmem:[%s1 + $0x38] sm:$0xff]
  %v46 = vld [vmem:[%s1 + $0x40] sm:$0xff]
  %v47 = vld [vmem:[%s1 + $0x48] sm:$0xff]
  %v48 = vld [vmem:[%s1 + $0x50] sm:$0xff]
  %v49 = vld [vmem:[%s1 + $0x58] sm:$0xff]
  %v50 = vld [vmem:[%s1 + $0x60] sm:$0xff]
  %v51 = vld [vmem:[%s1 + $0x68] sm:$0xff]
  %v52 = vld [vmem:[%s1 + $0x70] sm:$0xff]
  %v53 = vld [vmem:[%s1 + $0x78] sm:$0xff]
  %v54 = vld [vmem:[%s1 + $0x80] sm:$0xff]
  %v55 = vld [vmem:[%s1 + $0x88] sm:$0xff]
  %v56 = vld [vmem:[%s1 + $0x90] sm:$0xff]
  %v57 = vld [vmem:[%s1 + $0x98] sm:$0xff]
  %v58 = vld [vmem:[%s1 + $0xa0] sm:$0xff]
  %v59 = vld [vmem:[%s1 + $0xa8] sm:$0xff]
  %v60 = vld [vmem:[%s1 + $0xb0] sm:$0xff]
  %v61 = vld [vmem:[%s1 + $0xb8] sm:$0xff]
  %v62 = vld [vmem:[%s1 + $0xc0] sm:$0xff]
  %v63 = vld [vmem:[%s1 + $0xc8] sm:$0xff]
  %v64 = vld [vmem:[%s1 + $0xd0] sm:$0xff]
  %v65 = vld [vmem:[%s1 + $0xd8] sm:$0xff]
  %v66 = vld [vmem:[%s1 + $0xe0] sm:$0xff]
  %v67 = vld [vmem:[%s1 + $0xe8] sm:$0xff]
  %v68 = vld [vmem:[%s1 + $0xf0] sm:$0xff]
  %v69 = vld [vmem:[%s1 + $0xf8] sm:$0xff]
  %v70 = vld [vmem:[%s1 + $0x100] sm:$0xff]
  %v71 = vld [vmem:[%s1 + $0x108] sm:$0xff]
  %v72 = vld [vmem:[%s1 + $0x110] sm:$0xff]
  %v73 = vld [vmem:[%s1 + $0x118] sm:$0xff]
  %v74 = vld [vmem:[%s1 + $0x120] sm:$0xff]
  %v75 = vld [vmem:[%s1 + $0x128] sm:$0xff]
  %v76 = vld [vmem:[%s1 + $0x130] sm:$0xff]
  %v77 = vld [vmem:[%s1 + $0x138] sm:$0xff]
  %v78 = vld [vmem:[%s1 + $0x140] sm:$0xff]
  %v79 = vld [vmem:[%s1 + $0x148] sm:$0xff]
  %v80 = vld [vmem:[%s1 + $0x150] sm:$0xff]
  %v81 = vld [vmem:[%s1 + $0x158] sm:$0xff]
  %v82 = vld [vmem:[%s1 + $0x160] sm:$0xff]
  %v83 = vld [vmem:[%s1 + $0x168] sm:$0xff]
  %v84 = vld [vmem:[%s1 + $0x170] sm:$0xff]
  %v85 = vld [vmem:[%s1 + $0x178] sm:$0xff]
  %v86 = vld [vmem:[%s1 + $0x180] sm:$0xff]
  %v87 = vld [vmem:[%s1 + $0x188] sm:$0xff]
  %v88 = vld [vmem:[%s1 + $0x190] sm:$0xff]
  %v89 = vld [vmem:[%s1 + $0x198] sm:$0xff]
  %v90 = vld [vmem:[%s1 + $0x1a0] sm:$0xff]
  %v91 = vld [vmem:[%s1 + $0x1a8] sm:$0xff]
  %v92 = vld [vmem:[%s1 + $0x1b0] sm:$0xff]
  %v93 = vld [vmem:[%s1 + $0x1b8] sm:$0xff]
  %v94 = vld [vmem:[%s1 + $0x1c0] sm:$0xff]
  %v95 = vld [vmem:[%s1 + $0x1c8] sm:$0xff]
  %v96 = vld [vmem:[%s1 + $0x1d0] sm:$0xff]
  %v97 = vld [vmem:[%s1 + $0x1d8] sm:$0xff]
  %v98 = vld [vmem:[%s1 + $0x1e0] sm:$0xff]
  %v99 = vld [vmem:[%s1 + $0x1e8] sm:$0xff]
  %v100 = vld [vmem:[%s1 + $0x1f0] sm:$0xff]
  %v101 = vld [vmem:[%s1 + $0x1f8] sm:$0xff]
  %v102 = vld [vmem:[%s1 + $0x200] sm:$0xff]
  %v103 = vld [vmem:[%s1 + $0x208] sm:$0xff]
  %v104 = vld [vmem:[%s1 + $0x210] sm:$0xff]
  %v105 = vld [vmem:[%s1 + $0x218] sm:$0xff]
  %v106 = vld [vmem:[%s1 + $0x220] sm:$0xff]
  %v107 = vld [vmem:[%s1 + $0x228] sm:$0xff]
  %v108 = vld [vmem:[%s1 + $0x230] sm:$0xff]
  %v109 = vld [vmem:[%s1 + $0x238] sm:$0xff]
  %v110 = vld [vmem:[%s1 + $0x240] sm:$0xff]
  %v111 = vld [vmem:[%s1 + $0x248] sm:$0xff]
  %v112 = vld [vmem:[%s1 + $0x250] sm:$0xff]
  %v113 = vld [vmem:[%s1 + $0x258] sm:$0xff]
  %v114 = vld [vmem:[%s1 + $0x260] sm:$0xff]
  %v115 = vld [vmem:[%s1 + $0x268] sm:$0xff]
  %v116 = vld [vmem:[%s1 + $0x270] sm:$0xff]
  %v117 = vld [vmem:[%s1 + $0x278] sm:$0xff]
  %v118 = vld [vmem:[%s1 + $0x280] sm:$0xff]
  %v119 = vld [vmem:[%s1 + $0x288] sm:$0xff]
  %v120 = vld [vmem:[%s1 + $0x290] sm:$0xff]
  %v121 = vld [vmem:[%s1 + $0x298] sm:$0xff]
  %v122 = vld [vmem:[%s1 + $0x2a0] sm:$0xff]
  %v123 = vld [vmem:[%s1 + $0x2a8] sm:$0xff]
  %v124 = vld [vmem:[%s1 + $0x2b0] sm:$0xff]
  %v125 = vld [vmem:[%s1 + $0x2b8] sm:$0xff]
  %v126 = vld [vmem:[%s1 + $0x2c0] sm:$0xff]
  %v127 = vld [vmem:[%s1 + $0x2c8] sm:$0xff]
  %v128 = vld [vmem:[%s1 + $0x2d0] sm:$0xff]
  %v129 = vld [vmem:[%s1 + $0x2d8] sm:$0xff]
  %v130 = vld [vmem:[%s1 + $0x2e0] sm:$0xff]
  %v131 = vld [vmem:[%s1 + $0x2e8] sm:$0xff]
  %v132 = vld [vmem:[%s1 + $0x2f0] sm:$0xff]
  %v133 = vld [vmem:[%s1 + $0x2f8] sm:$0xff]
  %v134 = vld [vmem:[%s1 + $0x300] sm:$0xff]
  %v135 = vld [vmem:[%s1 + $0x308] sm:$0xff]
  %v136 = vld [vmem:[%s1 + $0x310] sm:$0xff]
  %v137 = vld [vmem:[%s1 + $0x318] sm:$0xff]
  %v138 = vld [vmem:[%s1 + $0x320] sm:$0xff]
  %v139 = vld [vmem:[%s1 + $0x328] sm:$0xff]
  %v140 = vld [vmem:[%s1 + $0x330] sm:$0xff]
  %v141 = vld [vmem:[%s1 + $0x338] sm:$0xff]
  %v142 = vld [vmem:[%s1 + $0x340] sm:$0xff]
  %v143 = vld [vmem:[%s1 + $0x348] sm:$0xff]
  %v144 = vld [vmem:[%s1 + $0x350] sm:$0xff]
  %v145 = vld [vmem:[%s1 + $0x358] sm:$0xff]
  %v146 = vld [vmem:[%s1 + $0x360] sm:$0xff]
  %v147 = vld [vmem:[%s1 + $0x368] sm:$0xff]
  %v148 = vld [vmem:[%s1 + $0x370] sm:$0xff]
  %v149 = vld [vmem:[%s1 + $0x378] sm:$0xff]
  %v150 = vld [vmem:[%s1 + $0x380] sm:$0xff]
  %v151 = vld [vmem:[%s1 + $0x388] sm:$0xff]
  %v152 = vld [vmem:[%s1 + $0x390] sm:$0xff]
  %v153 = vld [vmem:[%s1 + $0x398] sm:$0xff]
  %v154 = vld [vmem:[%s1 + $0x3a0] sm:$0xff]
  %v155 = vld [vmem:[%s1 + $0x3a8] sm:$0xff]
  %v156 = vld [vmem:[%s1 + $0x3b0] sm:$0xff]
  %v157 = vld [vmem:[%s1 + $0x3b8] sm:$0xff]
  %v158 = vld [vmem:[%s1 + $0x3c0] sm:$0xff]
  %v159 = vld [vmem:[%s1 + $0x3c8] sm:$0xff]
  %v160 = vld [vmem:[%s1 + $0x3d0] sm:$0xff]
  %v161 = vld [vmem:[%s1 + $0x3d8] sm:$0xff]
  %v162 = vld [vmem:[%s1 + $0x3e0] sm:$0xff]
  %v163 = vld [vmem:[%s1 + $0x3e8] sm:$0xff]
  %v164 = vld [vmem:[%s1 + $0x3f0] sm:$0xff]
  %v165 = vld [vmem:[%s1 + $0x3f8] sm:$0xff]
  %v166 = vld [vmem:[%s1 + $0x400] sm:$0xff]
  %v167 = vld [vmem:[%s1 + $0x408] sm:$0xff]
  %v168 = vld [vmem:[%s1 + $0x410] sm:$0xff]
  %v169 = vld [vmem:[%s1 + $0x418] sm:$0xff]
  %v170 = vld [vmem:[%s1 + $0x420] sm:$0xff]
  %v171 = vld [vmem:[%s1 + $0x428] sm:$0xff]
  %v172 = vld [vmem:[%s1 + $0x430] sm:$0xff]
  %v173 = vld [vmem:[%s1 + $0x438] sm:$0xff]
  %v174 = vld [vmem:[%s1 + $0x440] sm:$0xff]
  %v175 = vld [vmem:[%s1 + $0x448] sm:$0xff]
  %v176 = vld [vmem:[%s1 + $0x450] sm:$0xff]
  %v177 = vld [vmem:[%s1 + $0x458] sm:$0xff]
  %v178 = vld [vmem:[%s1 + $0x460] sm:$0xff]
  %v179 = vld [vmem:[%s1 + $0x468] sm:$0xff]
  %v180 = vld [vmem:[%s1 + $0x470] sm:$0xff]
  %v181 = vld [vmem:[%s1 + $0x478] sm:$0xff]
  %v182 = vld [vmem:[%s1 + $0x480] sm:$0xff]
  %v183 = vld [vmem:[%s1 + $0x488] sm:$0xff]
  %v184 = vld [vmem:[%s1 + $0x490] sm:$0xff]
  %v185 = vld [vmem:[%s1 + $0x498] sm:$0xff]
  %v186 = vld [vmem:[%s1 + $0x4a0] sm:$0xff]
  %v187 = vld [vmem:[%s1 + $0x4a8] sm:$0xff]
  %v188 = vld [vmem:[%s1 + $0x4b0] sm:$0xff]
  %v189 = vld [vmem:[%s1 + $0x4b8] sm:$0xff]
  %v190 = vld [vmem:[%s1 + $0x4c0] sm:$0xff]
  %v191 = vld [vmem:[%s1 + $0x4c8] sm:$0xff]
  %v192 = vld [vmem:[%s1 + $0x4d0] sm:$0xff]
  %v193 = vld [vmem:[%s1 + $0x4d8] sm:$0xff]
  %v194 = vld [vmem:[%s1 + $0x4e0] sm:$0xff]
  %v195 = vld [vmem:[%s1 + $0x4e8] sm:$0xff]
  %v196 = vld [vmem:[%s1 + $0x4f0] sm:$0xff]
  %v197 = vld [vmem:[%s1 + $0x4f8] sm:$0xff]
  %v198 = vld [vmem:[%s1 + $0x500] sm:$0xff]
  %v199 = vld [vmem:[%s1 + $0x508] sm:$0xff]
  %v200 = vld [vmem:[%s1 + $0x510] sm:$0xff]
  %v201 = vld [vmem:[%s1 + $0x518] sm:$0xff]
  %v202 = vld [vmem:[%s1 + $0x520] sm:$0xff]
  %v203 = vld [vmem:[%s1 + $0x528] sm:$0xff]
  %v204 = vld [vmem:[%s1 + $0x530] sm:$0xff]
  %v205 = vld [vmem:[%s1 + $0x538] sm:$0xff]
  %v206 = vld [vmem:[%s1 + $0x540] sm:$0xff]
  %v207 = vld [vmem:[%s1 + $0x548] sm:$0xff]
  %v208 = vld [vmem:[%s1 + $0x550] sm:$0xff]
  %v209 = vld [vmem:[%s1 + $0x558] sm:$0xff]
  %v210 = vld [vmem:[%s1 + $0x560] sm:$0xff]
  %v211 = vld [vmem:[%s1 + $0x568] sm:$0xff]
  %v212 = vld [vmem:[%s1 + $0x570] sm:$0xff]
  %v213 = vld [vmem:[%s1 + $0x578] sm:$0xff]
  %v214 = vld [vmem:[%s1 + $0x580] sm:$0xff]
  %v215 = vld [vmem:[%s1 + $0x588] sm:$0xff]
  %v216 = vld [vmem:[%s1 + $0x590] sm:$0xff]
  %v217 = vld [vmem:[%s1 + $0x598] sm:$0xff]
  %v218 = vld [vmem:[%s1 + $0x5a0] sm:$0xff]
  %v219 = vld [vmem:[%s1 + $0x5a8] sm:$0xff]
  %v220 = vld [vmem:[%s1 + $0x5b0] sm:$0xff]
  %v221 = vld [vmem:[%s1 + $0x5b8] sm:$0xff]
  %v222 = vld [vmem:[%s1 + $0x5c0] sm:$0xff]
  %v223 = vld [vmem:[%s1 + $0x5c8] sm:$0xff]
  %v224 = vld [vmem:[%s1 + $0x5d0] sm:$0xff]
  %v225 = vld [vmem:[%s1 + $0x5d8] sm:$0xff]
  %v226 = vld [vmem:[%s1 + $0x5e0] sm:$0xff]
  %v227 = vld [vmem:[%s1 + $0x5e8] sm:$0xff]
  %v228 = vld [vmem:[%s1 + $0x5f0] sm:$0xff]
  %v229 = vld [vmem:[%s1 + $0x5f8] sm:$0xff]
  %v230 = vld [vmem:[%s1 + $0x600] sm:$0xff]
  %v231 = vld [vmem:[%s1 + $0x608] sm:$0xff]
  %v232 = vld [vmem:[%s1 + $0x610] sm:$0xff]
  %v233 = vld [vmem:[%s1 + $0x618] sm:$0xff]
  %v234 = vld [vmem:[%s1 + $0x620] sm:$0xff]
  %v235 = vld [vmem:[%s1 + $0x628] sm:$0xff]
  %v236 = vld [vmem:[%s1 + $0x630] sm:$0xff]
  %v237 = vld [vmem:[%s1 + $0x638] sm:$0xff]
  %v238 = vld [vmem:[%s1 + $0x640] sm:$0xff]
  %v239 = vld [vmem:[%s1 + $0x648] sm:$0xff]
  %v240 = vld [vmem:[%s1 + $0x650] sm:$0xff]
  %v241 = vld [vmem:[%s1 + $0x658] sm:$0xff]
  %v242 = vld [vmem:[%s1 + $0x660] sm:$0xff]
  %v243 = vld [vmem:[%s1 + $0x668] sm:$0xff]
  %v244 = vld [vmem:[%s1 + $0x670] sm:$0xff]
  %v245 = vld [vmem:[%s1 + $0x678] sm:$0xff]
  %v246 = vld [vmem:[%s1 + $0x680] sm:$0xff]
  %v247 = vld [vmem:[%s1 + $0x688] sm:$0xff]
  %v248 = vld [vmem:[%s1 + $0x690] sm:$0xff]
  %v249 = vld [vmem:[%s1 + $0x698] sm:$0xff]
  %v250 = vld [vmem:[%s1 + $0x6a0] sm:$0xff]
  %v251 = vld [vmem:[%s1 + $0x6a8] sm:$0xff]
  %v252 = vld [vmem:[%s1 + $0x6b0] sm:$0xff]
  %v253 = vld [vmem:[%s1 + $0x6b8] sm:$0xff]
  %v254 = vld [vmem:[%s1 + $0x6c0] sm:$0xff]
  %v255 = vld [vmem:[%s1 + $0x6c8] sm:$0xff]
  %v256 = vld [vmem:[%s1 + $0x6d0] sm:$0xff]
  %v257 = vld [vmem:[%s1 + $0x6d8] sm:$0xff]
  %v258 = vld [vmem:[%s1 + $0x6e0] sm:$0xff]
  %v259 = vld [vmem:[%s1 + $0x6e8] sm:$0xff]
  %v260 = vld [vmem:[%s1 + $0x6f0] sm:$0xff]
  %v261 = vld [vmem:[%s1 + $0x6f8] sm:$0xff]
  %v262 = vld [vmem:[%s1 + $0x700] sm:$0xff]
  %v263 = vld [vmem:[%s1 + $0x708] sm:$0xff]
  %v264 = vld [vmem:[%s1 + $0x710] sm:$0xff]
  %v265 = vld [vmem:[%s1 + $0x718] sm:$0xff]
  %v266 = vld [vmem:[%s1 + $0x720] sm:$0xff]
  %v267 = vld [vmem:[%s1 + $0x728] sm:$0xff]
  %v268 = vld [vmem:[%s1 + $0x730] sm:$0xff]
  %v269 = vld [vmem:[%s1 + $0x738] sm:$0xff]
  %v270 = vld [vmem:[%s1 + $0x740] sm:$0xff]
  %v271 = vld [vmem:[%s1 + $0x748] sm:$0xff]
  %v272 = vld [vmem:[%s1 + $0x750] sm:$0xff]
  %v273 = vld [vmem:[%s1 + $0x758] sm:$0xff]
  %v274 = vld [vmem:[%s1 + $0x760] sm:$0xff]
  %v275 = vld [vmem:[%s1 + $0x768] sm:$0xff]
  %v276 = vld [vmem:[%s1 + $0x770] sm:$0xff]
  %v277 = vld [vmem:[%s1 + $0x778] sm:$0xff]
  %v278 = vld [vmem:[%s1 + $0x780] sm:$0xff]
  %v279 = vld [vmem:[%s1 + $0x788] sm:$0xff]
  %v280 = vld [vmem:[%s1 + $0x790] sm:$0xff]
  %v281 = vld [vmem:[%s1 + $0x798] sm:$0xff]
  %v282 = vld [vmem:[%s1 + $0x7a0] sm:$0xff]
  %v283 = vld [vmem:[%s1 + $0x7a8] sm:$0xff]
  %v284 = vld [vmem:[%s1 + $0x7b0] sm:$0xff]
  %v285 = vld [vmem:[%s1 + $0x7b8] sm:$0xff]
  %v286 = vld [vmem:[%s1 + $0x7c0] sm:$0xff]
  %v287 = vld [vmem:[%s1 + $0x7c8] sm:$0xff]
  %v288 = vld [vmem:[%s1 + $0x7d0] sm:$0xff]
  %v289 = vld [vmem:[%s1 + $0x7d8] sm:$0xff]
  %v290 = vld [vmem:[%s1 + $0x7e0] sm:$0xff]
  %v291 = vld [vmem:[%s1 + $0x7e8] sm:$0xff]
  %v292 = vld [vmem:[%s1 + $0x7f0] sm:$0xff]
  %v293 = vld [vmem:[%s1 + $0x7f8] sm:$0xff]
  %v294 = vld [vmem:[%s1 + $0x800] sm:$0xff]
  %v295 = vld [vmem:[%s1 + $0x808] sm:$0xff]
  %v296 = vld [vmem:[%s1 + $0x810] sm:$0xff]
  %v297 = vld [vmem:[%s1 + $0x818] sm:$0xff]
  %v298 = vld [vmem:[%s1 + $0x820] sm:$0xff]
  %v299 = vld [vmem:[%s1 + $0x828] sm:$0xff]
  %v300 = vld [vmem:[%s1 + $0x830] sm:$0xff]
  %v301 = vld [vmem:[%s1 + $0x838] sm:$0xff]
  %v302 = vld [vmem:[%s1 + $0x840] sm:$0xff]
  %v303 = vld [vmem:[%s1 + $0x848] sm:$0xff]
  %v304 = vld [vmem:[%s1 + $0x850] sm:$0xff]
  %v305 = vld [vmem:[%s1 + $0x858] sm:$0xff]
  %v306 = vld [vmem:[%s1 + $0x860] sm:$0xff]
  %v307 = vld [vmem:[%s1 + $0x868] sm:$0xff]
  %v308 = vld [vmem:[%s1 + $0x870] sm:$0xff]
  %v309 = vld [vmem:[%s1 + $0x878] sm:$0xff]
  %v310 = vld [vmem:[%s1 + $0x880] sm:$0xff]
  %v311 = vld [vmem:[%s1 + $0x888] sm:$0xff]
  %v312 = vld [vmem:[%s1 + $0x890] sm:$0xff]
  %v313 = vld [vmem:[%s1 + $0x898] sm:$0xff]
  %v314 = vld [vmem:[%s1 + $0x8a0] sm:$0xff]
  %v315 = vld [vmem:[%s1 + $0x8a8] sm:$0xff]
  %v316 = vld [vmem:[%s1 + $0x8b0] sm:$0xff]
  %v317 = vld [vmem:[%s1 + $0x8b8] sm:$0xff]
  %v318 = vld [vmem:[%s1 + $0x8c0] sm:$0xff]
  %v319 = vld [vmem:[%s1 + $0x8c8] sm:$0xff]
  %v320 = vld [vmem:[%s1 + $0x8d0] sm:$0xff]
  %v321 = vld [vmem:[%s1 + $0x8d8] sm:$0xff]
  %v322 = vld [vmem:[%s1 + $0x8e0] sm:$0xff]
  %v323 = vld [vmem:[%s1 + $0x8e8] sm:$0xff]
  %v324 = vld [vmem:[%s1 + $0x8f0] sm:$0xff]
  %v325 = vld [vmem:[%s1 + $0x8f8] sm:$0xff]
  %v326 = vld [vmem:[%s1 + $0x900] sm:$0xff]
  %v327 = vld [vmem:[%s1 + $0x908] sm:$0xff]
  %v328 = vld [vmem:[%s1 + $0x910] sm:$0xff]
  %v329 = vld [vmem:[%s1 + $0x918] sm:$0xff]
  %v330 = vld [vmem:[%s1 + $0x920] sm:$0xff]
  %v331 = vld [vmem:[%s1 + $0x928] sm:$0xff]
  %v332 = vld [vmem:[%s1 + $0x930] sm:$0xff]
  %v333 = vld [vmem:[%s1 + $0x938] sm:$0xff]
  %v334 = vld [vmem:[%s1 + $0x940] sm:$0xff]
  %v335 = vld [vmem:[%s1 + $0x948] sm:$0xff]
  %v336 = vld [vmem:[%s1 + $0x950] sm:$0xff]
  %v337 = vld [vmem:[%s1 + $0x958] sm:$0xff]
  %v338 = vld [vmem:[%s1 + $0x960] sm:$0xff]
  %v339 = vld [vmem:[%s1 + $0x968] sm:$0xff]
  %v340 = vld [vmem:[%s1 + $0x970] sm:$0xff]
  %v341 = vld [vmem:[%s1 + $0x978] sm:$0xff]
  %v342 = vld [vmem:[%s1 + $0x980] sm:$0xff]
  %v343 = vld [vmem:[%s1 + $0x988] sm:$0xff]
  %v344 = vld [vmem:[%s1 + $0x990] sm:$0xff]
  %v345 = vld [vmem:[%s1 + $0x998] sm:$0xff]
  %v346 = vld [vmem:[%s1 + $0x9a0] sm:$0xff]
  %v347 = vld [vmem:[%s1 + $0x9a8] sm:$0xff]
  %v348 = vld [vmem:[%s1 + $0x9b0] sm:$0xff]
  %v349 = vld [vmem:[%s1 + $0x9b8] sm:$0xff]
  %v350 = vld [vmem:[%s1 + $0x9c0] sm:$0xff]
  %v351 = vld [vmem:[%s1 + $0x9c8] sm:$0xff]
  %v352 = vld [vmem:[%s1 + $0x9d0] sm:$0xff]
  %v353 = vld [vmem:[%s1 + $0x9d8] sm:$0xff]
  %v354 = vld [vmem:[%s1 + $0x9e0] sm:$0xff]
  %v355 = vld [vmem:[%s1 + $0x9e8] sm:$0xff]
  %v356 = vld [vmem:[%s1 + $0x9f0] sm:$0xff]
  %v357 = vld [vmem:[%s1 + $0x9f8] sm:$0xff]
  %v358 = vld [vmem:[%s1 + $0xa00] sm:$0xff]
  %v359 = vld [vmem:[%s1 + $0xa08] sm:$0xff]
  %v360 = vld [vmem:[%s1 + $0xa10] sm:$0xff]
  %v361 = vld [vmem:[%s1 + $0xa18] sm:$0xff]
  %v362 = vld [vmem:[%s1 + $0xa20] sm:$0xff]
  %v363 = vld [vmem:[%s1 + $0xa28] sm:$0xff]
  %v364 = vld [vmem:[%s1 + $0xa30] sm:$0xff]
  %v365 = vld [vmem:[%s1 + $0xa38] sm:$0xff]
  %v366 = vld [vmem:[%s1 + $0xa40] sm:$0xff]
  %v367 = vld [vmem:[%s1 + $0xa48] sm:$0xff]
  %v368 = vld [vmem:[%s1 + $0xa50] sm:$0xff]
  %v369 = vld [vmem:[%s1 + $0xa58] sm:$0xff]
  %v370 = vld [vmem:[%s1 + $0xa60] sm:$0xff]
  %v371 = vld [vmem:[%s1 + $0xa68] sm:$0xff]
  %v372 = vld [vmem:[%s1 + $0xa70] sm:$0xff]
  %v373 = vld [vmem:[%s1 + $0xa78] sm:$0xff]
  %v374 = vld [vmem:[%s1 + $0xa80] sm:$0xff]
  %v375 = vld [vmem:[%s1 + $0xa88] sm:$0xff]
  %v376 = vld [vmem:[%s1 + $0xa90] sm:$0xff]
  %v377 = vld [vmem:[%s1 + $0xa98] sm:$0xff]
  %v378 = vld [vmem:[%s1 + $0xaa0] sm:$0xff]
  %v379 = vld [vmem:[%s1 + $0xaa8] sm:$0xff]
  %v380 = vld [vmem:[%s1 + $0xab0] sm:$0xff]
  %v381 = vld [vmem:[%s1 + $0xab8] sm:$0xff]
  %v382 = vld [vmem:[%s1 + $0xac0] sm:$0xff]
  %v383 = vld [vmem:[%s1 + $0xac8] sm:$0xff]
  %v384 = vld [vmem:[%s1 + $0xad0] sm:$0xff]
  %v385 = vld [vmem:[%s1 + $0xad8] sm:$0xff]
  %v386 = vld [vmem:[%s1 + $0xae0] sm:$0xff]
  %v387 = vld [vmem:[%s1 + $0xae8] sm:$0xff]
  %v388 = vld [vmem:[%s1 + $0xaf0] sm:$0xff]
  %v389 = vld [vmem:[%s1 + $0xaf8] sm:$0xff]
  %v390 = vld [vmem:[%s1 + $0xb00] sm:$0xff]
  %v391 = vld [vmem:[%s1 + $0xb08] sm:$0xff]
  %v392 = vld [vmem:[%s1 + $0xb10] sm:$0xff]
  %v393 = vld [vmem:[%s1 + $0xb18] sm:$0xff]
  %v394 = vld [vmem:[%s1 + $0xb20] sm:$0xff]
  %v395 = vld [vmem:[%s1 + $0xb28] sm:$0xff]
  %v396 = vld [vmem:[%s1 + $0xb30] sm:$0xff]
  %v397 = vld [vmem:[%s1 + $0xb38] sm:$0xff]
  %v398 = vld [vmem:[%s1 + $0xb40] sm:$0xff]
  %v399 = vld [vmem:[%s1 + $0xb48] sm:$0xff]
  %v400 = vld [vmem:[%s1 + $0xb50] sm:$0xff]
  %v401 = vld [vmem:[%s1 + $0xb58] sm:$0xff]
  %v402 = vld [vmem:[%s1 + $0xb60] sm:$0xff]
  %v403 = vld [vmem:[%s1 + $0xb68] sm:$0xff]
  %v404 = vld [vmem:[%s1 + $0xb70] sm:$0xff]
  %v405 = vld [vmem:[%s1 + $0xb78] sm:$0xff]
  %v406 = vld [vmem:[%s1 + $0xb80] sm:$0xff]
  %v407 = vld [vmem:[%s1 + $0xb88] sm:$0xff]
  %v408 = vld [vmem:[%s1 + $0xb90] sm:$0xff]
  %v409 = vld [vmem:[%s1 + $0xb98] sm:$0xff]
  %v410 = vld [vmem:[%s1 + $0xba0] sm:$0xff]
  %v411 = vld [vmem:[%s1 + $0xba8] sm:$0xff]
  %v412 = vld [vmem:[%s1 + $0xbb0] sm:$0xff]
  %v413 = vld [vmem:[%s1 + $0xbb8] sm:$0xff]
  %v414 = vld [vmem:[%s1 + $0xbc0] sm:$0xff]
  %v415 = vld [vmem:[%s1 + $0xbc8] sm:$0xff]
  %v416 = vld [vmem:[%s1 + $0xbd0] sm:$0xff]
  %v417 = vld [vmem:[%s1 + $0xbd8] sm:$0xff]
  %v418 = vld [vmem:[%s1 + $0xbe0] sm:$0xff]
  %v419 = vld [vmem:[%s1 + $0xbe8] sm:$0xff]
  %v420 = vld [vmem:[%s1 + $0xbf0] sm:$0xff]
  %v421 = vld [vmem:[%s1 + $0xbf8] sm:$0xff]
  %v422 = vld [vmem:[%s1 + $0xc00] sm:$0xff]
  %v423 = vld [vmem:[%s1 + $0xc08] sm:$0xff]
  %v424 = vld [vmem:[%s1 + $0xc10] sm:$0xff]
  %v425 = vld [vmem:[%s1 + $0xc18] sm:$0xff]
  %v426 = vld [vmem:[%s1 + $0xc20] sm:$0xff]
  %v427 = vld [vmem:[%s1 + $0xc28] sm:$0xff]
  %v428 = vld [vmem:[%s1 + $0xc30] sm:$0xff]
  %v429 = vld [vmem:[%s1 + $0xc38] sm:$0xff]
  %v430 = vld [vmem:[%s1 + $0xc40] sm:$0xff]
  %v431 = vld [vmem:[%s1 + $0xc48] sm:$0xff]
  %v432 = vld [vmem:[%s1 + $0xc50] sm:$0xff]
  %v433 = vld [vmem:[%s1 + $0xc58] sm:$0xff]
  %v434 = vld [vmem:[%s1 + $0xc60] sm:$0xff]
  %v435 = vld [vmem:[%s1 + $0xc68] sm:$0xff]
  %v436 = vld [vmem:[%s1 + $0xc70] sm:$0xff]
  %v437 = vld [vmem:[%s1 + $0xc78] sm:$0xff]
  %v438 = vld [vmem:[%s1 + $0xc80] sm:$0xff]
  %v439 = vld [vmem:[%s1 + $0xc88] sm:$0xff]
  %v440 = vld [vmem:[%s1 + $0xc90] sm:$0xff]
  %v441 = vld [vmem:[%s1 + $0xc98] sm:$0xff]
  %v442 = vld [vmem:[%s1 + $0xca0] sm:$0xff]
  %v443 = vld [vmem:[%s1 + $0xca8] sm:$0xff]
  %v444 = vld [vmem:[%s1 + $0xcb0] sm:$0xff]
  %v445 = vld [vmem:[%s1 + $0xcb8] sm:$0xff]
  %v446 = vld [vmem:[%s1 + $0xcc0] sm:$0xff]
  %v447 = vld [vmem:[%s1 + $0xcc8] sm:$0xff]
  %v448 = vld [vmem:[%s1 + $0xcd0] sm:$0xff]
  %v449 = vld [vmem:[%s1 + $0xcd8] sm:$0xff]
  %v450 = vld [vmem:[%s1 + $0xce0] sm:$0xff]
  %v451 = vld [vmem:[%s1 + $0xce8] sm:$0xff]
  %v452 = vld [vmem:[%s1 + $0xcf0] sm:$0xff]
  %v453 = vld [vmem:[%s1 + $0xcf8] sm:$0xff]
  %v454 = vld [vmem:[%s1 + $0xd00] sm:$0xff]
  %v455 = vld [vmem:[%s1 + $0xd08] sm:$0xff]
  %v456 = vld [vmem:[%s1 + $0xd10] sm:$0xff]
  %v457 = vld [vmem:[%s1 + $0xd18] sm:$0xff]
  %v458 = vld [vmem:[%s1 + $0xd20] sm:$0xff]
  %v459 = vld [vmem:[%s1 + $0xd28] sm:$0xff]
  %v460 = vld [vmem:[%s1 + $0xd30] sm:$0xff]
  %v461 = vld [vmem:[%s1 + $0xd38] sm:$0xff]
  %v462 = vld [vmem:[%s1 + $0xd40] sm:$0xff]
  %v463 = vld [vmem:[%s1 + $0xd48] sm:$0xff]
  %v464 = vld [vmem:[%s1 + $0xd50] sm:$0xff]
  %v465 = vld [vmem:[%s1 + $0xd58] sm:$0xff]
  %v466 = vld [vmem:[%s1 + $0xd60] sm:$0xff]
  %v467 = vld [vmem:[%s1 + $0xd68] sm:$0xff]
  %v468 = vld [vmem:[%s1 + $0xd70] sm:$0xff]
  %v469 = vld [vmem:[%s1 + $0xd78] sm:$0xff]
  %v470 = vld [vmem:[%s1 + $0xd80] sm:$0xff]
  %v471 = vld [vmem:[%s1 + $0xd88] sm:$0xff]
  %v472 = vld [vmem:[%s1 + $0xd90] sm:$0xff]
  %v473 = vld [vmem:[%s1 + $0xd98] sm:$0xff]
  %v474 = vld [vmem:[%s1 + $0xda0] sm:$0xff]
  %v475 = vld [vmem:[%s1 + $0xda8] sm:$0xff]
  %v476 = vld [vmem:[%s1 + $0xdb0] sm:$0xff]
  %v477 = vld [vmem:[%s1 + $0xdb8] sm:$0xff]
  %v478 = vld [vmem:[%s1 + $0xdc0] sm:$0xff]
  %v479 = vld [vmem:[%s1 + $0xdc8] sm:$0xff]
  %v480 = vld [vmem:[%s1 + $0xdd0] sm:$0xff]
  %v481 = vld [vmem:[%s1 + $0xdd8] sm:$0xff]
  %v482 = vld [vmem:[%s1 + $0xde0] sm:$0xff]
  %v483 = vld [vmem:[%s1 + $0xde8] sm:$0xff]
  %v484 = vld [vmem:[%s1 + $0xdf0] sm:$0xff]
  %v485 = vld [vmem:[%s1 + $0xdf8] sm:$0xff]
  %v510 = vunpack.c.l.b16 %v14
  %v511 = vunpack.c.h.b16 %v14
  %v512 = vunpack.c.l.b16 %v15
  %v513 = vunpack.c.h.b16 %v15
  %v514 = vunpack.c.l.b16 %v16
  %v515 = vunpack.c.h.b16 %v16
  %v516 = vunpack.c.l.b16 %v17
  %v517 = vunpack.c.l.b16 %v18
  %v518 = vunpack.c.h.b16 %v18
  %v519 = vunpack.c.l.b16 %v19
  %v520 = vunpack.c.h.b16 %v19
  %v521 = vunpack.c.l.b16 %v20
  %v522 = vunpack.c.h.b16 %v20
  %v523 = vunpack.c.l.b16 %v21
  %v524 = vunpack.c.l.b16 %v22
  %v525 = vunpack.c.h.b16 %v22
  %v526 = vunpack.c.l.b16 %v23
  %v527 = vunpack.c.h.b16 %v23
  %v528 = vunpack.c.l.b16 %v24
  %v529 = vunpack.c.h.b16 %v24
  %v530 = vunpack.c.l.b16 %v25
  %v531 = vunpack.c.l.b16 %v26
  %v532 = vunpack.c.h.b16 %v26
  %v533 = vunpack.c.l.b16 %v27
  %v534 = vunpack.c.h.b16 %v27
  %v535 = vunpack.c.l.b16 %v28
  %v536 = vunpack.c.h.b16 %v28
  %v537 = vunpack.c.l.b16 %v29
  %v538 = vunpack.c.l.b16 %v30
  %v539 = vunpack.c.h.b16 %v30
  %v540 = vunpack.c.l.b16 %v31
  %v541 = vunpack.c.h.b16 %v31
  %v542 = vunpack.c.l.b16 %v32
  %v543 = vunpack.c.h.b16 %v32
  %v544 = vunpack.c.l.b16 %v33
  %v545 = vunpack.c.l.b16 %v34
  %v546 = vunpack.c.h.b16 %v34
  %v547 = vunpack.c.l.b16 %v35
  %v548 = vunpack.c.h.b16 %v35
  %v549 = vunpack.c.l.b16 %v36
  %v550 = vunpack.c.h.b16 %v36
  %v551 = vunpack.c.l.b16 %v37
  %v552 = vpack.c.b16 %v517, %v510
  %v553 = vpack.c.b16 %v518, %v511
  %v554 = vpack.c.b16 %v519, %v512
  %v555 = vpack.c.b16 %v520, %v513
  %v556 = vpack.c.b16 %v521, %v514
  %v557 = vpack.c.b16 %v522, %v515
  %v558 = vpack.c.b16 %v523, %v516
  %v559 = vpack.c.b16 %v531, %v524
  %v560 = vpack.c.b16 %v532, %v525
  %v561 = vpack.c.b16 %v533, %v526
  %v562 = vpack.c.b16 %v534, %v527
  %v563 = vpack.c.b16 %v535, %v528
  %v564 = vpack.c.b16 %v536, %v529
  %v565 = vpack.c.b16 %v537, %v530
  %v566 = vpack.c.b16 %v545, %v538
  %v567 = vpack.c.b16 %v546, %v539
  %v568 = vpack.c.b16 %v547, %v540
  %v569 = vpack.c.b16 %v548, %v541
  %v570 = vpack.c.b16 %v549, %v542
  %v571 = vpack.c.b16 %v550, %v543
  %v572 = vpack.c.b16 %v551, %v544
  %v1042 = vunpack.c.l.b16 %v38
  %v1043 = vunpack.c.h.b16 %v38
  %v1044 = vunpack.c.l.b16 %v39
  %v1045 = vunpack.c.h.b16 %v39
  %v1046 = vunpack.c.l.b16 %v40
  %v1047 = vunpack.c.h.b16 %v40
  %v1048 = vunpack.c.l.b16 %v41
  %v1049 = vunpack.c.h.b16 %v41
  %v1050 = vunpack.c.l.b16 %v42
  %v1051 = vunpack.c.h.b16 %v42
  %v1052 = vunpack.c.l.b16 %v43
  %v1053 = vunpack.c.h.b16 %v43
  %v1054 = vunpack.c.l.b16 %v44
  %v1055 = vunpack.c.h.b16 %v44
  %v1056 = vunpack.c.l.b16 %v45
  %v1057 = vunpack.c.h.b16 %v45
  %v1058 = vunpack.c.l.b16 %v46
  %v1059 = vunpack.c.h.b16 %v46
  %v1060 = vunpack.c.l.b16 %v47
  %v1061 = vunpack.c.h.b16 %v47
  %v1062 = vunpack.c.l.b16 %v48
  %v1063 = vunpack.c.h.b16 %v48
  %v1064 = vunpack.c.l.b16 %v49
  %v1065 = vunpack.c.h.b16 %v49
  %v1066 = vunpack.c.l.b16 %v50
  %v1067 = vunpack.c.h.b16 %v50
  %v1068 = vunpack.c.l.b16 %v51
  %v1069 = vunpack.c.h.b16 %v51
  %v1070 = vunpack.c.l.b16 %v52
  %v1071 = vunpack.c.h.b16 %v52
  %v1072 = vunpack.c.l.b16 %v53
  %v1073 = vunpack.c.h.b16 %v53
  %v1074 = vunpack.c.l.b16 %v54
  %v1075 = vunpack.c.h.b16 %v54
  %v1076 = vunpack.c.l.b16 %v55
  %v1077 = vunpack.c.h.b16 %v55
  %v1078 = vunpack.c.l.b16 %v56
  %v1079 = vunpack.c.h.b16 %v56
  %v1080 = vunpack.c.l.b16 %v57
  %v1081 = vunpack.c.h.b16 %v57
  %v1082 = vunpack.c.l.b16 %v58
  %v1083 = vunpack.c.h.b16 %v58
  %v1084 = vunpack.c.l.b16 %v59
  %v1085 = vunpack.c.h.b16 %v59
  %v1086 = vunpack.c.l.b16 %v60
  %v1087 = vunpack.c.h.b16 %v60
  %v1088 = vunpack.c.l.b16 %v61
  %v1089 = vunpack.c.h.b16 %v61
  %v1090 = vunpack.c.l.b16 %v62
  %v1091 = vunpack.c.h.b16 %v62
  %v1092 = vunpack.c.l.b16 %v63
  %v1093 = vunpack.c.h.b16 %v63
  %v1094 = vunpack.c.l.b16 %v64
  %v1095 = vunpack.c.h.b16 %v64
  %v1096 = vunpack.c.l.b16 %v65
  %v1097 = vunpack.c.h.b16 %v65
  %v1098 = vunpack.c.l.b16 %v66
  %v1099 = vunpack.c.h.b16 %v66
  %v1100 = vunpack.c.l.b16 %v67
  %v1101 = vunpack.c.h.b16 %v67
  %v1102 = vunpack.c.l.b16 %v68
  %v1103 = vunpack.c.h.b16 %v68
  %v1104 = vunpack.c.l.b16 %v69
  %v1105 = vunpack.c.h.b16 %v69
  %v1106 = vunpack.c.l.b16 %v70
  %v1107 = vunpack.c.h.b16 %v70
  %v1108 = vunpack.c.l.b16 %v71
  %v1109 = vunpack.c.h.b16 %v71
  %v1110 = vunpack.c.l.b16 %v72
  %v1111 = vunpack.c.h.b16 %v72
  %v1112 = vunpack.c.l.b16 %v73
  %v1113 = vunpack.c.h.b16 %v73
  %v1114 = vunpack.c.l.b16 %v74
  %v1115 = vunpack.c.h.b16 %v74
  %v1116 = vunpack.c.l.b16 %v75
  %v1117 = vunpack.c.h.b16 %v75
  %v1118 = vunpack.c.l.b16 %v76
  %v1119 = vunpack.c.h.b16 %v76
  %v1120 = vunpack.c.l.b16 %v77
  %v1121 = vunpack.c.h.b16 %v77
  %v1122 = vunpack.c.l.b16 %v78
  %v1123 = vunpack.c.h.b16 %v78
  %v1124 = vunpack.c.l.b16 %v79
  %v1125 = vunpack.c.h.b16 %v79
  %v1126 = vunpack.c.l.b16 %v80
  %v1127 = vunpack.c.h.b16 %v80
  %v1128 = vunpack.c.l.b16 %v81
  %v1129 = vunpack.c.h.b16 %v81
  %v1130 = vunpack.c.l.b16 %v82
  %v1131 = vunpack.c.h.b16 %v82
  %v1132 = vunpack.c.l.b16 %v83
  %v1133 = vunpack.c.h.b16 %v83
  %v1134 = vunpack.c.l.b16 %v84
  %v1135 = vunpack.c.h.b16 %v84
  %v1136 = vunpack.c.l.b16 %v85
  %v1137 = vunpack.c.h.b16 %v85
  %v1138 = vunpack.c.l.b16 %v86
  %v1139 = vunpack.c.h.b16 %v86
  %v1140 = vunpack.c.l.b16 %v87
  %v1141 = vunpack.c.h.b16 %v87
  %v1142 = vunpack.c.l.b16 %v88
  %v1143 = vunpack.c.h.b16 %v88
  %v1144 = vunpack.c.l.b16 %v89
  %v1145 = vunpack.c.h.b16 %v89
  %v1146 = vunpack.c.l.b16 %v90
  %v1147 = vunpack.c.h.b16 %v90
  %v1148 = vunpack.c.l.b16 %v91
  %v1149 = vunpack.c.h.b16 %v91
  %v1150 = vunpack.c.l.b16 %v92
  %v1151 = vunpack.c.h.b16 %v92
  %v1152 = vunpack.c.l.b16 %v93
  %v1153 = vunpack.c.h.b16 %v93
  %v1154 = vunpack.c.l.b16 %v94
  %v1155 = vunpack.c.h.b16 %v94
  %v1156 = vunpack.c.l.b16 %v95
  %v1157 = vunpack.c.h.b16 %v95
  %v1158 = vunpack.c.l.b16 %v96
  %v1159 = vunpack.c.h.b16 %v96
  %v1160 = vunpack.c.l.b16 %v97
  %v1161 = vunpack.c.h.b16 %v97
  %v1162 = vunpack.c.l.b16 %v98
  %v1163 = vunpack.c.h.b16 %v98
  %v1164 = vunpack.c.l.b16 %v99
  %v1165 = vunpack.c.h.b16 %v99
  %v1166 = vunpack.c.l.b16 %v100
  %v1167 = vunpack.c.h.b16 %v100
  %v1168 = vunpack.c.l.b16 %v101
  %v1169 = vunpack.c.h.b16 %v101
  %v1170 = vunpack.c.l.b16 %v102
  %v1171 = vunpack.c.h.b16 %v102
  %v1172 = vunpack.c.l.b16 %v103
  %v1173 = vunpack.c.h.b16 %v103
  %v1174 = vunpack.c.l.b16 %v104
  %v1175 = vunpack.c.h.b16 %v104
  %v1176 = vunpack.c.l.b16 %v105
  %v1177 = vunpack.c.h.b16 %v105
  %v1178 = vunpack.c.l.b16 %v106
  %v1179 = vunpack.c.h.b16 %v106
  %v1180 = vunpack.c.l.b16 %v107
  %v1181 = vunpack.c.h.b16 %v107
  %v1182 = vunpack.c.l.b16 %v108
  %v1183 = vunpack.c.h.b16 %v108
  %v1184 = vunpack.c.l.b16 %v109
  %v1185 = vunpack.c.h.b16 %v109
  %v1186 = vunpack.c.l.b16 %v110
  %v1187 = vunpack.c.h.b16 %v110
  %v1188 = vunpack.c.l.b16 %v111
  %v1189 = vunpack.c.h.b16 %v111
  %v1190 = vunpack.c.l.b16 %v112
  %v1191 = vunpack.c.h.b16 %v112
  %v1192 = vunpack.c.l.b16 %v113
  %v1193 = vunpack.c.h.b16 %v113
  %v1194 = vunpack.c.l.b16 %v114
  %v1195 = vunpack.c.h.b16 %v114
  %v1196 = vunpack.c.l.b16 %v115
  %v1197 = vunpack.c.h.b16 %v115
  %v1198 = vunpack.c.l.b16 %v116
  %v1199 = vunpack.c.h.b16 %v116
  %v1200 = vunpack.c.l.b16 %v117
  %v1201 = vunpack.c.h.b16 %v117
  %v1202 = vunpack.c.l.b16 %v118
  %v1203 = vunpack.c.h.b16 %v118
  %v1204 = vunpack.c.l.b16 %v119
  %v1205 = vunpack.c.h.b16 %v119
  %v1206 = vunpack.c.l.b16 %v120
  %v1207 = vunpack.c.h.b16 %v120
  %v1208 = vunpack.c.l.b16 %v121
  %v1209 = vunpack.c.h.b16 %v121
  %v1210 = vunpack.c.l.b16 %v122
  %v1211 = vunpack.c.h.b16 %v122
  %v1212 = vunpack.c.l.b16 %v123
  %v1213 = vunpack.c.h.b16 %v123
  %v1214 = vunpack.c.l.b16 %v124
  %v1215 = vunpack.c.h.b16 %v124
  %v1216 = vunpack.c.l.b16 %v125
  %v1217 = vunpack.c.h.b16 %v125
  %v1218 = vunpack.c.l.b16 %v126
  %v1219 = vunpack.c.h.b16 %v126
  %v1220 = vunpack.c.l.b16 %v127
  %v1221 = vunpack.c.h.b16 %v127
  %v1222 = vunpack.c.l.b16 %v128
  %v1223 = vunpack.c.h.b16 %v128
  %v1224 = vunpack.c.l.b16 %v129
  %v1225 = vunpack.c.h.b16 %v129
  %v1226 = vunpack.c.l.b16 %v130
  %v1227 = vunpack.c.h.b16 %v130
  %v1228 = vunpack.c.l.b16 %v131
  %v1229 = vunpack.c.h.b16 %v131
  %v1230 = vunpack.c.l.b16 %v132
  %v1231 = vunpack.c.h.b16 %v132
  %v1232 = vunpack.c.l.b16 %v133
  %v1233 = vunpack.c.h.b16 %v133
  %v1234 = vunpack.c.l.b16 %v134
  %v1235 = vunpack.c.h.b16 %v134
  %v1236 = vunpack.c.l.b16 %v135
  %v1237 = vunpack.c.h.b16 %v135
  %v1238 = vunpack.c.l.b16 %v136
  %v1239 = vunpack.c.h.b16 %v136
  %v1240 = vunpack.c.l.b16 %v137
  %v1241 = vunpack.c.h.b16 %v137
  %v1242 = vunpack.c.l.b16 %v138
  %v1243 = vunpack.c.h.b16 %v138
  %v1244 = vunpack.c.l.b16 %v139
  %v1245 = vunpack.c.h.b16 %v139
  %v1246 = vunpack.c.l.b16 %v140
  %v1247 = vunpack.c.h.b16 %v140
  %v1248 = vunpack.c.l.b16 %v141
  %v1249 = vunpack.c.h.b16 %v141
  %v1250 = vunpack.c.l.b16 %v142
  %v1251 = vunpack.c.h.b16 %v142
  %v1252 = vunpack.c.l.b16 %v143
  %v1253 = vunpack.c.h.b16 %v143
  %v1254 = vunpack.c.l.b16 %v144
  %v1255 = vunpack.c.h.b16 %v144
  %v1256 = vunpack.c.l.b16 %v145
  %v1257 = vunpack.c.h.b16 %v145
  %v1258 = vunpack.c.l.b16 %v146
  %v1259 = vunpack.c.h.b16 %v146
  %v1260 = vunpack.c.l.b16 %v147
  %v1261 = vunpack.c.h.b16 %v147
  %v1262 = vunpack.c.l.b16 %v148
  %v1263 = vunpack.c.h.b16 %v148
  %v1264 = vunpack.c.l.b16 %v149
  %v1265 = vunpack.c.h.b16 %v149
  %v1266 = vunpack.c.l.b16 %v150
  %v1267 = vunpack.c.h.b16 %v150
  %v1268 = vunpack.c.l.b16 %v151
  %v1269 = vunpack.c.h.b16 %v151
  %v1270 = vunpack.c.l.b16 %v152
  %v1271 = vunpack.c.h.b16 %v152
  %v1272 = vunpack.c.l.b16 %v153
  %v1273 = vunpack.c.h.b16 %v153
  %v1274 = vunpack.c.l.b16 %v154
  %v1275 = vunpack.c.h.b16 %v154
  %v1276 = vunpack.c.l.b16 %v155
  %v1277 = vunpack.c.h.b16 %v155
  %v1278 = vunpack.c.l.b16 %v156
  %v1279 = vunpack.c.h.b16 %v156
  %v1280 = vunpack.c.l.b16 %v157
  %v1281 = vunpack.c.h.b16 %v157
  %v1282 = vunpack.c.l.b16 %v158
  %v1283 = vunpack.c.h.b16 %v158
  %v1284 = vunpack.c.l.b16 %v159
  %v1285 = vunpack.c.h.b16 %v159
  %v1286 = vunpack.c.l.b16 %v160
  %v1287 = vunpack.c.h.b16 %v160
  %v1288 = vunpack.c.l.b16 %v161
  %v1289 = vunpack.c.h.b16 %v161
  %v1290 = vunpack.c.l.b16 %v162
  %v1291 = vunpack.c.h.b16 %v162
  %v1292 = vunpack.c.l.b16 %v163
  %v1293 = vunpack.c.h.b16 %v163
  %v1294 = vunpack.c.l.b16 %v164
  %v1295 = vunpack.c.h.b16 %v164
  %v1296 = vunpack.c.l.b16 %v165
  %v1297 = vunpack.c.h.b16 %v165
  %v1298 = vunpack.c.l.b16 %v166
  %v1299 = vunpack.c.h.b16 %v166
  %v1300 = vunpack.c.l.b16 %v167
  %v1301 = vunpack.c.h.b16 %v167
  %v1302 = vunpack.c.l.b16 %v168
  %v1303 = vunpack.c.h.b16 %v168
  %v1304 = vunpack.c.l.b16 %v169
  %v1305 = vunpack.c.h.b16 %v169
  %v1306 = vunpack.c.l.b16 %v170
  %v1307 = vunpack.c.h.b16 %v170
  %v1308 = vunpack.c.l.b16 %v171
  %v1309 = vunpack.c.h.b16 %v171
  %v1310 = vunpack.c.l.b16 %v172
  %v1311 = vunpack.c.h.b16 %v172
  %v1312 = vunpack.c.l.b16 %v173
  %v1313 = vunpack.c.h.b16 %v173
  %v1314 = vunpack.c.l.b16 %v174
  %v1315 = vunpack.c.h.b16 %v174
  %v1316 = vunpack.c.l.b16 %v175
  %v1317 = vunpack.c.h.b16 %v175
  %v1318 = vunpack.c.l.b16 %v176
  %v1319 = vunpack.c.h.b16 %v176
  %v1320 = vunpack.c.l.b16 %v177
  %v1321 = vunpack.c.h.b16 %v177
  %v1322 = vunpack.c.l.b16 %v178
  %v1323 = vunpack.c.h.b16 %v178
  %v1324 = vunpack.c.l.b16 %v179
  %v1325 = vunpack.c.h.b16 %v179
  %v1326 = vunpack.c.l.b16 %v180
  %v1327 = vunpack.c.h.b16 %v180
  %v1328 = vunpack.c.l.b16 %v181
  %v1329 = vunpack.c.h.b16 %v181
  %v1330 = vunpack.c.l.b16 %v182
  %v1331 = vunpack.c.h.b16 %v182
  %v1332 = vunpack.c.l.b16 %v183
  %v1333 = vunpack.c.h.b16 %v183
  %v1334 = vunpack.c.l.b16 %v184
  %v1335 = vunpack.c.h.b16 %v184
  %v1336 = vunpack.c.l.b16 %v185
  %v1337 = vunpack.c.h.b16 %v185
  %v1338 = vunpack.c.l.b16 %v186
  %v1339 = vunpack.c.h.b16 %v186
  %v1340 = vunpack.c.l.b16 %v187
  %v1341 = vunpack.c.h.b16 %v187
  %v1342 = vunpack.c.l.b16 %v188
  %v1343 = vunpack.c.h.b16 %v188
  %v1344 = vunpack.c.l.b16 %v189
  %v1345 = vunpack.c.h.b16 %v189
  %v1346 = vunpack.c.l.b16 %v190
  %v1347 = vunpack.c.h.b16 %v190
  %v1348 = vunpack.c.l.b16 %v191
  %v1349 = vunpack.c.h.b16 %v191
  %v1350 = vunpack.c.l.b16 %v192
  %v1351 = vunpack.c.h.b16 %v192
  %v1352 = vunpack.c.l.b16 %v193
  %v1353 = vunpack.c.h.b16 %v193
  %v1354 = vunpack.c.l.b16 %v194
  %v1355 = vunpack.c.h.b16 %v194
  %v1356 = vunpack.c.l.b16 %v195
  %v1357 = vunpack.c.h.b16 %v195
  %v1358 = vunpack.c.l.b16 %v196
  %v1359 = vunpack.c.h.b16 %v196
  %v1360 = vunpack.c.l.b16 %v197
  %v1361 = vunpack.c.h.b16 %v197
  %v1362 = vunpack.c.l.b16 %v198
  %v1363 = vunpack.c.h.b16 %v198
  %v1364 = vunpack.c.l.b16 %v199
  %v1365 = vunpack.c.h.b16 %v199
  %v1366 = vunpack.c.l.b16 %v200
  %v1367 = vunpack.c.h.b16 %v200
  %v1368 = vunpack.c.l.b16 %v201
  %v1369 = vunpack.c.h.b16 %v201
  %v1370 = vunpack.c.l.b16 %v202
  %v1371 = vunpack.c.h.b16 %v202
  %v1372 = vunpack.c.l.b16 %v203
  %v1373 = vunpack.c.h.b16 %v203
  %v1374 = vunpack.c.l.b16 %v204
  %v1375 = vunpack.c.h.b16 %v204
  %v1376 = vunpack.c.l.b16 %v205
  %v1377 = vunpack.c.h.b16 %v205
  %v1378 = vunpack.c.l.b16 %v206
  %v1379 = vunpack.c.h.b16 %v206
  %v1380 = vunpack.c.l.b16 %v207
  %v1381 = vunpack.c.h.b16 %v207
  %v1382 = vunpack.c.l.b16 %v208
  %v1383 = vunpack.c.h.b16 %v208
  %v1384 = vunpack.c.l.b16 %v209
  %v1385 = vunpack.c.h.b16 %v209
  %v1386 = vunpack.c.l.b16 %v210
  %v1387 = vunpack.c.h.b16 %v210
  %v1388 = vunpack.c.l.b16 %v211
  %v1389 = vunpack.c.h.b16 %v211
  %v1390 = vunpack.c.l.b16 %v212
  %v1391 = vunpack.c.h.b16 %v212
  %v1392 = vunpack.c.l.b16 %v213
  %v1393 = vunpack.c.h.b16 %v213
  %v1394 = vunpack.c.l.b16 %v214
  %v1395 = vunpack.c.h.b16 %v214
  %v1396 = vunpack.c.l.b16 %v215
  %v1397 = vunpack.c.h.b16 %v215
  %v1398 = vunpack.c.l.b16 %v216
  %v1399 = vunpack.c.h.b16 %v216
  %v1400 = vunpack.c.l.b16 %v217
  %v1401 = vunpack.c.h.b16 %v217
  %v1402 = vunpack.c.l.b16 %v218
  %v1403 = vunpack.c.h.b16 %v218
  %v1404 = vunpack.c.l.b16 %v219
  %v1405 = vunpack.c.h.b16 %v219
  %v1406 = vunpack.c.l.b16 %v220
  %v1407 = vunpack.c.h.b16 %v220
  %v1408 = vunpack.c.l.b16 %v221
  %v1409 = vunpack.c.h.b16 %v221
  %v1410 = vunpack.c.l.b16 %v222
  %v1411 = vunpack.c.h.b16 %v222
  %v1412 = vunpack.c.l.b16 %v223
  %v1413 = vunpack.c.h.b16 %v223
  %v1414 = vunpack.c.l.b16 %v224
  %v1415 = vunpack.c.h.b16 %v224
  %v1416 = vunpack.c.l.b16 %v225
  %v1417 = vunpack.c.h.b16 %v225
  %v1418 = vunpack.c.l.b16 %v226
  %v1419 = vunpack.c.h.b16 %v226
  %v1420 = vunpack.c.l.b16 %v227
  %v1421 = vunpack.c.h.b16 %v227
  %v1422 = vunpack.c.l.b16 %v228
  %v1423 = vunpack.c.h.b16 %v228
  %v1424 = vunpack.c.l.b16 %v229
  %v1425 = vunpack.c.h.b16 %v229
  %v1426 = vunpack.c.l.b16 %v230
  %v1427 = vunpack.c.h.b16 %v230
  %v1428 = vunpack.c.l.b16 %v231
  %v1429 = vunpack.c.h.b16 %v231
  %v1430 = vunpack.c.l.b16 %v232
  %v1431 = vunpack.c.h.b16 %v232
  %v1432 = vunpack.c.l.b16 %v233
  %v1433 = vunpack.c.h.b16 %v233
  %v1434 = vunpack.c.l.b16 %v234
  %v1435 = vunpack.c.h.b16 %v234
  %v1436 = vunpack.c.l.b16 %v235
  %v1437 = vunpack.c.h.b16 %v235
  %v1438 = vunpack.c.l.b16 %v236
  %v1439 = vunpack.c.h.b16 %v236
  %v1440 = vunpack.c.l.b16 %v237
  %v1441 = vunpack.c.h.b16 %v237
  %v1442 = vunpack.c.l.b16 %v238
  %v1443 = vunpack.c.h.b16 %v238
  %v1444 = vunpack.c.l.b16 %v239
  %v1445 = vunpack.c.h.b16 %v239
  %v1446 = vunpack.c.l.b16 %v240
  %v1447 = vunpack.c.h.b16 %v240
  %v1448 = vunpack.c.l.b16 %v241
  %v1449 = vunpack.c.h.b16 %v241
  %v1450 = vunpack.c.l.b16 %v242
  %v1451 = vunpack.c.h.b16 %v242
  %v1452 = vunpack.c.l.b16 %v243
  %v1453 = vunpack.c.h.b16 %v243
  %v1454 = vunpack.c.l.b16 %v244
  %v1455 = vunpack.c.h.b16 %v244
  %v1456 = vunpack.c.l.b16 %v245
  %v1457 = vunpack.c.h.b16 %v245
  %v1458 = vunpack.c.l.b16 %v246
  %v1459 = vunpack.c.h.b16 %v246
  %v1460 = vunpack.c.l.b16 %v247
  %v1461 = vunpack.c.h.b16 %v247
  %v1462 = vunpack.c.l.b16 %v248
  %v1463 = vunpack.c.h.b16 %v248
  %v1464 = vunpack.c.l.b16 %v249
  %v1465 = vunpack.c.h.b16 %v249
  %v1466 = vunpack.c.l.b16 %v250
  %v1467 = vunpack.c.h.b16 %v250
  %v1468 = vunpack.c.l.b16 %v251
  %v1469 = vunpack.c.h.b16 %v251
  %v1470 = vunpack.c.l.b16 %v252
  %v1471 = vunpack.c.h.b16 %v252
  %v1472 = vunpack.c.l.b16 %v253
  %v1473 = vunpack.c.h.b16 %v253
  %v1474 = vunpack.c.l.b16 %v254
  %v1475 = vunpack.c.h.b16 %v254
  %v1476 = vunpack.c.l.b16 %v255
  %v1477 = vunpack.c.h.b16 %v255
  %v1478 = vunpack.c.l.b16 %v256
  %v1479 = vunpack.c.h.b16 %v256
  %v1480 = vunpack.c.l.b16 %v257
  %v1481 = vunpack.c.h.b16 %v257
  %v1482 = vunpack.c.l.b16 %v258
  %v1483 = vunpack.c.h.b16 %v258
  %v1484 = vunpack.c.l.b16 %v259
  %v1485 = vunpack.c.h.b16 %v259
  %v1486 = vunpack.c.l.b16 %v260
  %v1487 = vunpack.c.h.b16 %v260
  %v1488 = vunpack.c.l.b16 %v261
  %v1489 = vunpack.c.h.b16 %v261
  %v1490 = vunpack.c.l.b16 %v262
  %v1491 = vunpack.c.h.b16 %v262
  %v1492 = vunpack.c.l.b16 %v263
  %v1493 = vunpack.c.h.b16 %v263
  %v1494 = vunpack.c.l.b16 %v264
  %v1495 = vunpack.c.h.b16 %v264
  %v1496 = vunpack.c.l.b16 %v265
  %v1497 = vunpack.c.h.b16 %v265
  %v1498 = vunpack.c.l.b16 %v266
  %v1499 = vunpack.c.h.b16 %v266
  %v1500 = vunpack.c.l.b16 %v267
  %v1501 = vunpack.c.h.b16 %v267
  %v1502 = vunpack.c.l.b16 %v268
  %v1503 = vunpack.c.h.b16 %v268
  %v1504 = vunpack.c.l.b16 %v269
  %v1505 = vunpack.c.h.b16 %v269
  %v1506 = vunpack.c.l.b16 %v270
  %v1507 = vunpack.c.h.b16 %v270
  %v1508 = vunpack.c.l.b16 %v271
  %v1509 = vunpack.c.h.b16 %v271
  %v1510 = vunpack.c.l.b16 %v272
  %v1511 = vunpack.c.h.b16 %v272
  %v1512 = vunpack.c.l.b16 %v273
  %v1513 = vunpack.c.h.b16 %v273
  %v1514 = vunpack.c.l.b16 %v274
  %v1515 = vunpack.c.h.b16 %v274
  %v1516 = vunpack.c.l.b16 %v275
  %v1517 = vunpack.c.h.b16 %v275
  %v1518 = vunpack.c.l.b16 %v276
  %v1519 = vunpack.c.h.b16 %v276
  %v1520 = vunpack.c.l.b16 %v277
  %v1521 = vunpack.c.h.b16 %v277
  %v1522 = vunpack.c.l.b16 %v278
  %v1523 = vunpack.c.h.b16 %v278
  %v1524 = vunpack.c.l.b16 %v279
  %v1525 = vunpack.c.h.b16 %v279
  %v1526 = vunpack.c.l.b16 %v280
  %v1527 = vunpack.c.h.b16 %v280
  %v1528 = vunpack.c.l.b16 %v281
  %v1529 = vunpack.c.h.b16 %v281
  %v1530 = vunpack.c.l.b16 %v282
  %v1531 = vunpack.c.h.b16 %v282
  %v1532 = vunpack.c.l.b16 %v283
  %v1533 = vunpack.c.h.b16 %v283
  %v1534 = vunpack.c.l.b16 %v284
  %v1535 = vunpack.c.h.b16 %v284
  %v1536 = vunpack.c.l.b16 %v285
  %v1537 = vunpack.c.h.b16 %v285
  %v1538 = vunpack.c.l.b16 %v286
  %v1539 = vunpack.c.h.b16 %v286
  %v1540 = vunpack.c.l.b16 %v287
  %v1541 = vunpack.c.h.b16 %v287
  %v1542 = vunpack.c.l.b16 %v288
  %v1543 = vunpack.c.h.b16 %v288
  %v1544 = vunpack.c.l.b16 %v289
  %v1545 = vunpack.c.h.b16 %v289
  %v1546 = vunpack.c.l.b16 %v290
  %v1547 = vunpack.c.h.b16 %v290
  %v1548 = vunpack.c.l.b16 %v291
  %v1549 = vunpack.c.h.b16 %v291
  %v1550 = vunpack.c.l.b16 %v292
  %v1551 = vunpack.c.h.b16 %v292
  %v1552 = vunpack.c.l.b16 %v293
  %v1553 = vunpack.c.h.b16 %v293
  %v1554 = vunpack.c.l.b16 %v294
  %v1555 = vunpack.c.h.b16 %v294
  %v1556 = vunpack.c.l.b16 %v295
  %v1557 = vunpack.c.h.b16 %v295
  %v1558 = vunpack.c.l.b16 %v296
  %v1559 = vunpack.c.h.b16 %v296
  %v1560 = vunpack.c.l.b16 %v297
  %v1561 = vunpack.c.h.b16 %v297
  %v1562 = vunpack.c.l.b16 %v298
  %v1563 = vunpack.c.h.b16 %v298
  %v1564 = vunpack.c.l.b16 %v299
  %v1565 = vunpack.c.h.b16 %v299
  %v1566 = vunpack.c.l.b16 %v300
  %v1567 = vunpack.c.h.b16 %v300
  %v1568 = vunpack.c.l.b16 %v301
  %v1569 = vunpack.c.h.b16 %v301
  %v1570 = vunpack.c.l.b16 %v302
  %v1571 = vunpack.c.h.b16 %v302
  %v1572 = vunpack.c.l.b16 %v303
  %v1573 = vunpack.c.h.b16 %v303
  %v1574 = vunpack.c.l.b16 %v304
  %v1575 = vunpack.c.h.b16 %v304
  %v1576 = vunpack.c.l.b16 %v305
  %v1577 = vunpack.c.h.b16 %v305
  %v1578 = vunpack.c.l.b16 %v306
  %v1579 = vunpack.c.h.b16 %v306
  %v1580 = vunpack.c.l.b16 %v307
  %v1581 = vunpack.c.h.b16 %v307
  %v1582 = vunpack.c.l.b16 %v308
  %v1583 = vunpack.c.h.b16 %v308
  %v1584 = vunpack.c.l.b16 %v309
  %v1585 = vunpack.c.h.b16 %v309
  %v1586 = vunpack.c.l.b16 %v310
  %v1587 = vunpack.c.h.b16 %v310
  %v1588 = vunpack.c.l.b16 %v311
  %v1589 = vunpack.c.h.b16 %v311
  %v1590 = vunpack.c.l.b16 %v312
  %v1591 = vunpack.c.h.b16 %v312
  %v1592 = vunpack.c.l.b16 %v313
  %v1593 = vunpack.c.h.b16 %v313
  %v1594 = vunpack.c.l.b16 %v314
  %v1595 = vunpack.c.h.b16 %v314
  %v1596 = vunpack.c.l.b16 %v315
  %v1597 = vunpack.c.h.b16 %v315
  %v1598 = vunpack.c.l.b16 %v316
  %v1599 = vunpack.c.h.b16 %v316
  %v1600 = vunpack.c.l.b16 %v317
  %v1601 = vunpack.c.h.b16 %v317
  %v1602 = vunpack.c.l.b16 %v318
  %v1603 = vunpack.c.h.b16 %v318
  %v1604 = vunpack.c.l.b16 %v319
  %v1605 = vunpack.c.h.b16 %v319
  %v1606 = vunpack.c.l.b16 %v320
  %v1607 = vunpack.c.h.b16 %v320
  %v1608 = vunpack.c.l.b16 %v321
  %v1609 = vunpack.c.h.b16 %v321
  %v1610 = vunpack.c.l.b16 %v322
  %v1611 = vunpack.c.h.b16 %v322
  %v1612 = vunpack.c.l.b16 %v323
  %v1613 = vunpack.c.h.b16 %v323
  %v1614 = vunpack.c.l.b16 %v324
  %v1615 = vunpack.c.h.b16 %v324
  %v1616 = vunpack.c.l.b16 %v325
  %v1617 = vunpack.c.h.b16 %v325
  %v1618 = vunpack.c.l.b16 %v326
  %v1619 = vunpack.c.h.b16 %v326
  %v1620 = vunpack.c.l.b16 %v327
  %v1621 = vunpack.c.h.b16 %v327
  %v1622 = vunpack.c.l.b16 %v328
  %v1623 = vunpack.c.h.b16 %v328
  %v1624 = vunpack.c.l.b16 %v329
  %v1625 = vunpack.c.h.b16 %v329
  %v1626 = vunpack.c.l.b16 %v330
  %v1627 = vunpack.c.h.b16 %v330
  %v1628 = vunpack.c.l.b16 %v331
  %v1629 = vunpack.c.h.b16 %v331
  %v1630 = vunpack.c.l.b16 %v332
  %v1631 = vunpack.c.h.b16 %v332
  %v1632 = vunpack.c.l.b16 %v333
  %v1633 = vunpack.c.h.b16 %v333
  %v1634 = vunpack.c.l.b16 %v334
  %v1635 = vunpack.c.h.b16 %v334
  %v1636 = vunpack.c.l.b16 %v335
  %v1637 = vunpack.c.h.b16 %v335
  %v1638 = vunpack.c.l.b16 %v336
  %v1639 = vunpack.c.h.b16 %v336
  %v1640 = vunpack.c.l.b16 %v337
  %v1641 = vunpack.c.h.b16 %v337
  %v1642 = vunpack.c.l.b16 %v338
  %v1643 = vunpack.c.h.b16 %v338
  %v1644 = vunpack.c.l.b16 %v339
  %v1645 = vunpack.c.h.b16 %v339
  %v1646 = vunpack.c.l.b16 %v340
  %v1647 = vunpack.c.h.b16 %v340
  %v1648 = vunpack.c.l.b16 %v341
  %v1649 = vunpack.c.h.b16 %v341
  %v1650 = vunpack.c.l.b16 %v342
  %v1651 = vunpack.c.h.b16 %v342
  %v1652 = vunpack.c.l.b16 %v343
  %v1653 = vunpack.c.h.b16 %v343
  %v1654 = vunpack.c.l.b16 %v344
  %v1655 = vunpack.c.h.b16 %v344
  %v1656 = vunpack.c.l.b16 %v345
  %v1657 = vunpack.c.h.b16 %v345
  %v1658 = vunpack.c.l.b16 %v346
  %v1659 = vunpack.c.h.b16 %v346
  %v1660 = vunpack.c.l.b16 %v347
  %v1661 = vunpack.c.h.b16 %v347
  %v1662 = vunpack.c.l.b16 %v348
  %v1663 = vunpack.c.h.b16 %v348
  %v1664 = vunpack.c.l.b16 %v349
  %v1665 = vunpack.c.h.b16 %v349
  %v1666 = vunpack.c.l.b16 %v350
  %v1667 = vunpack.c.h.b16 %v350
  %v1668 = vunpack.c.l.b16 %v351
  %v1669 = vunpack.c.h.b16 %v351
  %v1670 = vunpack.c.l.b16 %v352
  %v1671 = vunpack.c.h.b16 %v352
  %v1672 = vunpack.c.l.b16 %v353
  %v1673 = vunpack.c.h.b16 %v353
  %v1674 = vunpack.c.l.b16 %v354
  %v1675 = vunpack.c.h.b16 %v354
  %v1676 = vunpack.c.l.b16 %v355
  %v1677 = vunpack.c.h.b16 %v355
  %v1678 = vunpack.c.l.b16 %v356
  %v1679 = vunpack.c.h.b16 %v356
  %v1680 = vunpack.c.l.b16 %v357
  %v1681 = vunpack.c.h.b16 %v357
  %v1682 = vunpack.c.l.b16 %v358
  %v1683 = vunpack.c.h.b16 %v358
  %v1684 = vunpack.c.l.b16 %v359
  %v1685 = vunpack.c.h.b16 %v359
  %v1686 = vunpack.c.l.b16 %v360
  %v1687 = vunpack.c.h.b16 %v360
  %v1688 = vunpack.c.l.b16 %v361
  %v1689 = vunpack.c.h.b16 %v361
  %v1690 = vunpack.c.l.b16 %v362
  %v1691 = vunpack.c.h.b16 %v362
  %v1692 = vunpack.c.l.b16 %v363
  %v1693 = vunpack.c.h.b16 %v363
  %v1694 = vunpack.c.l.b16 %v364
  %v1695 = vunpack.c.h.b16 %v364
  %v1696 = vunpack.c.l.b16 %v365
  %v1697 = vunpack.c.h.b16 %v365
  %v1698 = vunpack.c.l.b16 %v366
  %v1699 = vunpack.c.h.b16 %v366
  %v1700 = vunpack.c.l.b16 %v367
  %v1701 = vunpack.c.h.b16 %v367
  %v1702 = vunpack.c.l.b16 %v368
  %v1703 = vunpack.c.h.b16 %v368
  %v1704 = vunpack.c.l.b16 %v369
  %v1705 = vunpack.c.h.b16 %v369
  %v1706 = vunpack.c.l.b16 %v370
  %v1707 = vunpack.c.h.b16 %v370
  %v1708 = vunpack.c.l.b16 %v371
  %v1709 = vunpack.c.h.b16 %v371
  %v1710 = vunpack.c.l.b16 %v372
  %v1711 = vunpack.c.h.b16 %v372
  %v1712 = vunpack.c.l.b16 %v373
  %v1713 = vunpack.c.h.b16 %v373
  %v1714 = vunpack.c.l.b16 %v374
  %v1715 = vunpack.c.h.b16 %v374
  %v1716 = vunpack.c.l.b16 %v375
  %v1717 = vunpack.c.h.b16 %v375
  %v1718 = vunpack.c.l.b16 %v376
  %v1719 = vunpack.c.h.b16 %v376
  %v1720 = vunpack.c.l.b16 %v377
  %v1721 = vunpack.c.h.b16 %v377
  %v1722 = vunpack.c.l.b16 %v378
  %v1723 = vunpack.c.h.b16 %v378
  %v1724 = vunpack.c.l.b16 %v379
  %v1725 = vunpack.c.h.b16 %v379
  %v1726 = vunpack.c.l.b16 %v380
  %v1727 = vunpack.c.h.b16 %v380
  %v1728 = vunpack.c.l.b16 %v381
  %v1729 = vunpack.c.h.b16 %v381
  %v1730 = vunpack.c.l.b16 %v382
  %v1731 = vunpack.c.h.b16 %v382
  %v1732 = vunpack.c.l.b16 %v383
  %v1733 = vunpack.c.h.b16 %v383
  %v1734 = vunpack.c.l.b16 %v384
  %v1735 = vunpack.c.h.b16 %v384
  %v1736 = vunpack.c.l.b16 %v385
  %v1737 = vunpack.c.h.b16 %v385
  %v1738 = vunpack.c.l.b16 %v386
  %v1739 = vunpack.c.h.b16 %v386
  %v1740 = vunpack.c.l.b16 %v387
  %v1741 = vunpack.c.h.b16 %v387
  %v1742 = vunpack.c.l.b16 %v388
  %v1743 = vunpack.c.h.b16 %v388
  %v1744 = vunpack.c.l.b16 %v389
  %v1745 = vunpack.c.h.b16 %v389
  %v1746 = vunpack.c.l.b16 %v390
  %v1747 = vunpack.c.h.b16 %v390
  %v1748 = vunpack.c.l.b16 %v391
  %v1749 = vunpack.c.h.b16 %v391
  %v1750 = vunpack.c.l.b16 %v392
  %v1751 = vunpack.c.h.b16 %v392
  %v1752 = vunpack.c.l.b16 %v393
  %v1753 = vunpack.c.h.b16 %v393
  %v1754 = vunpack.c.l.b16 %v394
  %v1755 = vunpack.c.h.b16 %v394
  %v1756 = vunpack.c.l.b16 %v395
  %v1757 = vunpack.c.h.b16 %v395
  %v1758 = vunpack.c.l.b16 %v396
  %v1759 = vunpack.c.h.b16 %v396
  %v1760 = vunpack.c.l.b16 %v397
  %v1761 = vunpack.c.h.b16 %v397
  %v1762 = vunpack.c.l.b16 %v398
  %v1763 = vunpack.c.h.b16 %v398
  %v1764 = vunpack.c.l.b16 %v399
  %v1765 = vunpack.c.h.b16 %v399
  %v1766 = vunpack.c.l.b16 %v400
  %v1767 = vunpack.c.h.b16 %v400
  %v1768 = vunpack.c.l.b16 %v401
  %v1769 = vunpack.c.h.b16 %v401
  %v1770 = vunpack.c.l.b16 %v402
  %v1771 = vunpack.c.h.b16 %v402
  %v1772 = vunpack.c.l.b16 %v403
  %v1773 = vunpack.c.h.b16 %v403
  %v1774 = vunpack.c.l.b16 %v404
  %v1775 = vunpack.c.h.b16 %v404
  %v1776 = vunpack.c.l.b16 %v405
  %v1777 = vunpack.c.h.b16 %v405
  %v1778 = vunpack.c.l.b16 %v406
  %v1779 = vunpack.c.h.b16 %v406
  %v1780 = vunpack.c.l.b16 %v407
  %v1781 = vunpack.c.h.b16 %v407
  %v1782 = vunpack.c.l.b16 %v408
  %v1783 = vunpack.c.h.b16 %v408
  %v1784 = vunpack.c.l.b16 %v409
  %v1785 = vunpack.c.h.b16 %v409
  %v1786 = vunpack.c.l.b16 %v410
  %v1787 = vunpack.c.h.b16 %v410
  %v1788 = vunpack.c.l.b16 %v411
  %v1789 = vunpack.c.h.b16 %v411
  %v1790 = vunpack.c.l.b16 %v412
  %v1791 = vunpack.c.h.b16 %v412
  %v1792 = vunpack.c.l.b16 %v413
  %v1793 = vunpack.c.h.b16 %v413
  %v1794 = vunpack.c.l.b16 %v414
  %v1795 = vunpack.c.h.b16 %v414
  %v1796 = vunpack.c.l.b16 %v415
  %v1797 = vunpack.c.h.b16 %v415
  %v1798 = vunpack.c.l.b16 %v416
  %v1799 = vunpack.c.h.b16 %v416
  %v1800 = vunpack.c.l.b16 %v417
  %v1801 = vunpack.c.h.b16 %v417
  %v1802 = vunpack.c.l.b16 %v418
  %v1803 = vunpack.c.h.b16 %v418
  %v1804 = vunpack.c.l.b16 %v419
  %v1805 = vunpack.c.h.b16 %v419
  %v1806 = vunpack.c.l.b16 %v420
  %v1807 = vunpack.c.h.b16 %v420
  %v1808 = vunpack.c.l.b16 %v421
  %v1809 = vunpack.c.h.b16 %v421
  %v1810 = vunpack.c.l.b16 %v422
  %v1811 = vunpack.c.h.b16 %v422
  %v1812 = vunpack.c.l.b16 %v423
  %v1813 = vunpack.c.h.b16 %v423
  %v1814 = vunpack.c.l.b16 %v424
  %v1815 = vunpack.c.h.b16 %v424
  %v1816 = vunpack.c.l.b16 %v425
  %v1817 = vunpack.c.h.b16 %v425
  %v1818 = vunpack.c.l.b16 %v426
  %v1819 = vunpack.c.h.b16 %v426
  %v1820 = vunpack.c.l.b16 %v427
  %v1821 = vunpack.c.h.b16 %v427
  %v1822 = vunpack.c.l.b16 %v428
  %v1823 = vunpack.c.h.b16 %v428
  %v1824 = vunpack.c.l.b16 %v429
  %v1825 = vunpack.c.h.b16 %v429
  %v1826 = vunpack.c.l.b16 %v430
  %v1827 = vunpack.c.h.b16 %v430
  %v1828 = vunpack.c.l.b16 %v431
  %v1829 = vunpack.c.h.b16 %v431
  %v1830 = vunpack.c.l.b16 %v432
  %v1831 = vunpack.c.h.b16 %v432
  %v1832 = vunpack.c.l.b16 %v433
  %v1833 = vunpack.c.h.b16 %v433
  %v1834 = vunpack.c.l.b16 %v434
  %v1835 = vunpack.c.h.b16 %v434
  %v1836 = vunpack.c.l.b16 %v435
  %v1837 = vunpack.c.h.b16 %v435
  %v1838 = vunpack.c.l.b16 %v436
  %v1839 = vunpack.c.h.b16 %v436
  %v1840 = vunpack.c.l.b16 %v437
  %v1841 = vunpack.c.h.b16 %v437
  %v1842 = vunpack.c.l.b16 %v438
  %v1843 = vunpack.c.h.b16 %v438
  %v1844 = vunpack.c.l.b16 %v439
  %v1845 = vunpack.c.h.b16 %v439
  %v1846 = vunpack.c.l.b16 %v440
  %v1847 = vunpack.c.h.b16 %v440
  %v1848 = vunpack.c.l.b16 %v441
  %v1849 = vunpack.c.h.b16 %v441
  %v1850 = vunpack.c.l.b16 %v442
  %v1851 = vunpack.c.h.b16 %v442
  %v1852 = vunpack.c.l.b16 %v443
  %v1853 = vunpack.c.h.b16 %v443
  %v1854 = vunpack.c.l.b16 %v444
  %v1855 = vunpack.c.h.b16 %v444
  %v1856 = vunpack.c.l.b16 %v445
  %v1857 = vunpack.c.h.b16 %v445
  %v1858 = vunpack.c.l.b16 %v446
  %v1859 = vunpack.c.h.b16 %v446
  %v1860 = vunpack.c.l.b16 %v447
  %v1861 = vunpack.c.h.b16 %v447
  %v1862 = vunpack.c.l.b16 %v448
  %v1863 = vunpack.c.h.b16 %v448
  %v1864 = vunpack.c.l.b16 %v449
  %v1865 = vunpack.c.h.b16 %v449
  %v1866 = vunpack.c.l.b16 %v450
  %v1867 = vunpack.c.h.b16 %v450
  %v1868 = vunpack.c.l.b16 %v451
  %v1869 = vunpack.c.h.b16 %v451
  %v1870 = vunpack.c.l.b16 %v452
  %v1871 = vunpack.c.h.b16 %v452
  %v1872 = vunpack.c.l.b16 %v453
  %v1873 = vunpack.c.h.b16 %v453
  %v1874 = vunpack.c.l.b16 %v454
  %v1875 = vunpack.c.h.b16 %v454
  %v1876 = vunpack.c.l.b16 %v455
  %v1877 = vunpack.c.h.b16 %v455
  %v1878 = vunpack.c.l.b16 %v456
  %v1879 = vunpack.c.h.b16 %v456
  %v1880 = vunpack.c.l.b16 %v457
  %v1881 = vunpack.c.h.b16 %v457
  %v1882 = vunpack.c.l.b16 %v458
  %v1883 = vunpack.c.h.b16 %v458
  %v1884 = vunpack.c.l.b16 %v459
  %v1885 = vunpack.c.h.b16 %v459
  %v1886 = vunpack.c.l.b16 %v460
  %v1887 = vunpack.c.h.b16 %v460
  %v1888 = vunpack.c.l.b16 %v461
  %v1889 = vunpack.c.h.b16 %v461
  %v1890 = vunpack.c.l.b16 %v462
  %v1891 = vunpack.c.h.b16 %v462
  %v1892 = vunpack.c.l.b16 %v463
  %v1893 = vunpack.c.h.b16 %v463
  %v1894 = vunpack.c.l.b16 %v464
  %v1895 = vunpack.c.h.b16 %v464
  %v1896 = vunpack.c.l.b16 %v465
  %v1897 = vunpack.c.h.b16 %v465
  %v1898 = vunpack.c.l.b16 %v466
  %v1899 = vunpack.c.h.b16 %v466
  %v1900 = vunpack.c.l.b16 %v467
  %v1901 = vunpack.c.h.b16 %v467
  %v1902 = vunpack.c.l.b16 %v468
  %v1903 = vunpack.c.h.b16 %v468
  %v1904 = vunpack.c.l.b16 %v469
  %v1905 = vunpack.c.h.b16 %v469
  %v1906 = vunpack.c.l.b16 %v470
  %v1907 = vunpack.c.h.b16 %v470
  %v1908 = vunpack.c.l.b16 %v471
  %v1909 = vunpack.c.h.b16 %v471
  %v1910 = vunpack.c.l.b16 %v472
  %v1911 = vunpack.c.h.b16 %v472
  %v1912 = vunpack.c.l.b16 %v473
  %v1913 = vunpack.c.h.b16 %v473
  %v1914 = vunpack.c.l.b16 %v474
  %v1915 = vunpack.c.h.b16 %v474
  %v1916 = vunpack.c.l.b16 %v475
  %v1917 = vunpack.c.h.b16 %v475
  %v1918 = vunpack.c.l.b16 %v476
  %v1919 = vunpack.c.h.b16 %v476
  %v1920 = vunpack.c.l.b16 %v477
  %v1921 = vunpack.c.h.b16 %v477
  %v1922 = vunpack.c.l.b16 %v478
  %v1923 = vunpack.c.h.b16 %v478
  %v1924 = vunpack.c.l.b16 %v479
  %v1925 = vunpack.c.h.b16 %v479
  %v1926 = vunpack.c.l.b16 %v480
  %v1927 = vunpack.c.h.b16 %v480
  %v1928 = vunpack.c.l.b16 %v481
  %v1929 = vunpack.c.h.b16 %v481
  %v1930 = vunpack.c.l.b16 %v482
  %v1931 = vunpack.c.h.b16 %v482
  %v1932 = vunpack.c.l.b16 %v483
  %v1933 = vunpack.c.h.b16 %v483
  %v1934 = vunpack.c.l.b16 %v484
  %v1935 = vunpack.c.h.b16 %v484
  %v1936 = vunpack.c.l.b16 %v485
  %v1937 = vunpack.c.h.b16 %v485
  %v1938 = vpack.c.b16 %v1050, %v1042
  %v1939 = vpack.c.b16 %v1051, %v1043
  %v1940 = vpack.c.b16 %v1052, %v1044
  %v1941 = vpack.c.b16 %v1053, %v1045
  %v1942 = vpack.c.b16 %v1054, %v1046
  %v1943 = vpack.c.b16 %v1055, %v1047
  %v1944 = vpack.c.b16 %v1056, %v1048
  %v1945 = vpack.c.b16 %v1057, %v1049
  %v1946 = vpack.c.b16 %v1066, %v1058
  %v1947 = vpack.c.b16 %v1067, %v1059
  %v1948 = vpack.c.b16 %v1068, %v1060
  %v1949 = vpack.c.b16 %v1069, %v1061
  %v1950 = vpack.c.b16 %v1070, %v1062
  %v1951 = vpack.c.b16 %v1071, %v1063
  %v1952 = vpack.c.b16 %v1072, %v1064
  %v1953 = vpack.c.b16 %v1073, %v1065
  %v1954 = vpack.c.b16 %v1082, %v1074
  %v1955 = vpack.c.b16 %v1083, %v1075
  %v1956 = vpack.c.b16 %v1084, %v1076
  %v1957 = vpack.c.b16 %v1085, %v1077
  %v1958 = vpack.c.b16 %v1086, %v1078
  %v1959 = vpack.c.b16 %v1087, %v1079
  %v1960 = vpack.c.b16 %v1088, %v1080
  %v1961 = vpack.c.b16 %v1089, %v1081
  %v1962 = vpack.c.b16 %v1098, %v1090
  %v1963 = vpack.c.b16 %v1099, %v1091
  %v1964 = vpack.c.b16 %v1100, %v1092
  %v1965 = vpack.c.b16 %v1101, %v1093
  %v1966 = vpack.c.b16 %v1102, %v1094
  %v1967 = vpack.c.b16 %v1103, %v1095
  %v1968 = vpack.c.b16 %v1104, %v1096
  %v1969 = vpack.c.b16 %v1105, %v1097
  %v1970 = vpack.c.b16 %v1114, %v1106
  %v1971 = vpack.c.b16 %v1115, %v1107
  %v1972 = vpack.c.b16 %v1116, %v1108
  %v1973 = vpack.c.b16 %v1117, %v1109
  %v1974 = vpack.c.b16 %v1118, %v1110
  %v1975 = vpack.c.b16 %v1119, %v1111
  %v1976 = vpack.c.b16 %v1120, %v1112
  %v1977 = vpack.c.b16 %v1121, %v1113
  %v1978 = vpack.c.b16 %v1130, %v1122
  %v1979 = vpack.c.b16 %v1131, %v1123
  %v1980 = vpack.c.b16 %v1132, %v1124
  %v1981 = vpack.c.b16 %v1133, %v1125
  %v1982 = vpack.c.b16 %v1134, %v1126
  %v1983 = vpack.c.b16 %v1135, %v1127
  %v1984 = vpack.c.b16 %v1136, %v1128
  %v1985 = vpack.c.b16 %v1137, %v1129
  %v1986 = vpack.c.b16 %v1146, %v1138
  %v1987 = vpack.c.b16 %v1147, %v1139
  %v1988 = vpack.c.b16 %v1148, %v1140
  %v1989 = vpack.c.b16 %v1149, %v1141
  %v1990 = vpack.c.b16 %v1150, %v1142
  %v1991 = vpack.c.b16 %v1151, %v1143
  %v1992 = vpack.c.b16 %v1152, %v1144
  %v1993 = vpack.c.b16 %v1153, %v1145
  %v1994 = vpack.c.b16 %v1162, %v1154
  %v1995 = vpack.c.b16 %v1163, %v1155
  %v1996 = vpack.c.b16 %v1164, %v1156
  %v1997 = vpack.c.b16 %v1165, %v1157
  %v1998 = vpack.c.b16 %v1166, %v1158
  %v1999 = vpack.c.b16 %v1167, %v1159
  %v2000 = vpack.c.b16 %v1168, %v1160
  %v2001 = vpack.c.b16 %v1169, %v1161
  %v2002 = vpack.c.b16 %v1178, %v1170
  %v2003 = vpack.c.b16 %v1179, %v1171
  %v2004 = vpack.c.b16 %v1180, %v1172
  %v2005 = vpack.c.b16 %v1181, %v1173
  %v2006 = vpack.c.b16 %v1182, %v1174
  %v2007 = vpack.c.b16 %v1183, %v1175
  %v2008 = vpack.c.b16 %v1184, %v1176
  %v2009 = vpack.c.b16 %v1185, %v1177
  %v2010 = vpack.c.b16 %v1194, %v1186
  %v2011 = vpack.c.b16 %v1195, %v1187
  %v2012 = vpack.c.b16 %v1196, %v1188
  %v2013 = vpack.c.b16 %v1197, %v1189
  %v2014 = vpack.c.b16 %v1198, %v1190
  %v2015 = vpack.c.b16 %v1199, %v1191
  %v2016 = vpack.c.b16 %v1200, %v1192
  %v2017 = vpack.c.b16 %v1201, %v1193
  %v2018 = vpack.c.b16 %v1210, %v1202
  %v2019 = vpack.c.b16 %v1211, %v1203
  %v2020 = vpack.c.b16 %v1212, %v1204
  %v2021 = vpack.c.b16 %v1213, %v1205
  %v2022 = vpack.c.b16 %v1214, %v1206
  %v2023 = vpack.c.b16 %v1215, %v1207
  %v2024 = vpack.c.b16 %v1216, %v1208
  %v2025 = vpack.c.b16 %v1217, %v1209
  %v2026 = vpack.c.b16 %v1226, %v1218
  %v2027 = vpack.c.b16 %v1227, %v1219
  %v2028 = vpack.c.b16 %v1228, %v1220
  %v2029 = vpack.c.b16 %v1229, %v1221
  %v2030 = vpack.c.b16 %v1230, %v1222
  %v2031 = vpack.c.b16 %v1231, %v1223
  %v2032 = vpack.c.b16 %v1232, %v1224
  %v2033 = vpack.c.b16 %v1233, %v1225
  %v2034 = vpack.c.b16 %v1242, %v1234
  %v2035 = vpack.c.b16 %v1243, %v1235
  %v2036 = vpack.c.b16 %v1244, %v1236
  %v2037 = vpack.c.b16 %v1245, %v1237
  %v2038 = vpack.c.b16 %v1246, %v1238
  %v2039 = vpack.c.b16 %v1247, %v1239
  %v2040 = vpack.c.b16 %v1248, %v1240
  %v2041 = vpack.c.b16 %v1249, %v1241
  %v2042 = vpack.c.b16 %v1258, %v1250
  %v2043 = vpack.c.b16 %v1259, %v1251
  %v2044 = vpack.c.b16 %v1260, %v1252
  %v2045 = vpack.c.b16 %v1261, %v1253
  %v2046 = vpack.c.b16 %v1262, %v1254
  %v2047 = vpack.c.b16 %v1263, %v1255
  %v2048 = vpack.c.b16 %v1264, %v1256
  %v2049 = vpack.c.b16 %v1265, %v1257
  %v2050 = vpack.c.b16 %v1274, %v1266
  %v2051 = vpack.c.b16 %v1275, %v1267
  %v2052 = vpack.c.b16 %v1276, %v1268
  %v2053 = vpack.c.b16 %v1277, %v1269
  %v2054 = vpack.c.b16 %v1278, %v1270
  %v2055 = vpack.c.b16 %v1279, %v1271
  %v2056 = vpack.c.b16 %v1280, %v1272
  %v2057 = vpack.c.b16 %v1281, %v1273
  %v2058 = vpack.c.b16 %v1290, %v1282
  %v2059 = vpack.c.b16 %v1291, %v1283
  %v2060 = vpack.c.b16 %v1292, %v1284
  %v2061 = vpack.c.b16 %v1293, %v1285
  %v2062 = vpack.c.b16 %v1294, %v1286
  %v2063 = vpack.c.b16 %v1295, %v1287
  %v2064 = vpack.c.b16 %v1296, %v1288
  %v2065 = vpack.c.b16 %v1297, %v1289
  %v2066 = vpack.c.b16 %v1306, %v1298
  %v2067 = vpack.c.b16 %v1307, %v1299
  %v2068 = vpack.c.b16 %v1308, %v1300
  %v2069 = vpack.c.b16 %v1309, %v1301
  %v2070 = vpack.c.b16 %v1310, %v1302
  %v2071 = vpack.c.b16 %v1311, %v1303
  %v2072 = vpack.c.b16 %v1312, %v1304
  %v2073 = vpack.c.b16 %v1313, %v1305
  %v2074 = vpack.c.b16 %v1322, %v1314
  %v2075 = vpack.c.b16 %v1323, %v1315
  %v2076 = vpack.c.b16 %v1324, %v1316
  %v2077 = vpack.c.b16 %v1325, %v1317
  %v2078 = vpack.c.b16 %v1326, %v1318
  %v2079 = vpack.c.b16 %v1327, %v1319
  %v2080 = vpack.c.b16 %v1328, %v1320
  %v2081 = vpack.c.b16 %v1329, %v1321
  %v2082 = vpack.c.b16 %v1338, %v1330
  %v2083 = vpack.c.b16 %v1339, %v1331
  %v2084 = vpack.c.b16 %v1340, %v1332
  %v2085 = vpack.c.b16 %v1341, %v1333
  %v2086 = vpack.c.b16 %v1342, %v1334
  %v2087 = vpack.c.b16 %v1343, %v1335
  %v2088 = vpack.c.b16 %v1344, %v1336
  %v2089 = vpack.c.b16 %v1345, %v1337
  %v2090 = vpack.c.b16 %v1354, %v1346
  %v2091 = vpack.c.b16 %v1355, %v1347
  %v2092 = vpack.c.b16 %v1356, %v1348
  %v2093 = vpack.c.b16 %v1357, %v1349
  %v2094 = vpack.c.b16 %v1358, %v1350
  %v2095 = vpack.c.b16 %v1359, %v1351
  %v2096 = vpack.c.b16 %v1360, %v1352
  %v2097 = vpack.c.b16 %v1361, %v1353
  %v2098 = vpack.c.b16 %v1370, %v1362
  %v2099 = vpack.c.b16 %v1371, %v1363
  %v2100 = vpack.c.b16 %v1372, %v1364
  %v2101 = vpack.c.b16 %v1373, %v1365
  %v2102 = vpack.c.b16 %v1374, %v1366
  %v2103 = vpack.c.b16 %v1375, %v1367
  %v2104 = vpack.c.b16 %v1376, %v1368
  %v2105 = vpack.c.b16 %v1377, %v1369
  %v2106 = vpack.c.b16 %v1386, %v1378
  %v2107 = vpack.c.b16 %v1387, %v1379
  %v2108 = vpack.c.b16 %v1388, %v1380
  %v2109 = vpack.c.b16 %v1389, %v1381
  %v2110 = vpack.c.b16 %v1390, %v1382
  %v2111 = vpack.c.b16 %v1391, %v1383
  %v2112 = vpack.c.b16 %v1392, %v1384
  %v2113 = vpack.c.b16 %v1393, %v1385
  %v2114 = vpack.c.b16 %v1402, %v1394
  %v2115 = vpack.c.b16 %v1403, %v1395
  %v2116 = vpack.c.b16 %v1404, %v1396
  %v2117 = vpack.c.b16 %v1405, %v1397
  %v2118 = vpack.c.b16 %v1406, %v1398
  %v2119 = vpack.c.b16 %v1407, %v1399
  %v2120 = vpack.c.b16 %v1408, %v1400
  %v2121 = vpack.c.b16 %v1409, %v1401
  %v2122 = vpack.c.b16 %v1418, %v1410
  %v2123 = vpack.c.b16 %v1419, %v1411
  %v2124 = vpack.c.b16 %v1420, %v1412
  %v2125 = vpack.c.b16 %v1421, %v1413
  %v2126 = vpack.c.b16 %v1422, %v1414
  %v2127 = vpack.c.b16 %v1423, %v1415
  %v2128 = vpack.c.b16 %v1424, %v1416
  %v2129 = vpack.c.b16 %v1425, %v1417
  %v2130 = vpack.c.b16 %v1434, %v1426
  %v2131 = vpack.c.b16 %v1435, %v1427
  %v2132 = vpack.c.b16 %v1436, %v1428
  %v2133 = vpack.c.b16 %v1437, %v1429
  %v2134 = vpack.c.b16 %v1438, %v1430
  %v2135 = vpack.c.b16 %v1439, %v1431
  %v2136 = vpack.c.b16 %v1440, %v1432
  %v2137 = vpack.c.b16 %v1441, %v1433
  %v2138 = vpack.c.b16 %v1450, %v1442
  %v2139 = vpack.c.b16 %v1451, %v1443
  %v2140 = vpack.c.b16 %v1452, %v1444
  %v2141 = vpack.c.b16 %v1453, %v1445
  %v2142 = vpack.c.b16 %v1454, %v1446
  %v2143 = vpack.c.b16 %v1455, %v1447
  %v2144 = vpack.c.b16 %v1456, %v1448
  %v2145 = vpack.c.b16 %v1457, %v1449
  %v2146 = vpack.c.b16 %v1466, %v1458
  %v2147 = vpack.c.b16 %v1467, %v1459
  %v2148 = vpack.c.b16 %v1468, %v1460
  %v2149 = vpack.c.b16 %v1469, %v1461
  %v2150 = vpack.c.b16 %v1470, %v1462
  %v2151 = vpack.c.b16 %v1471, %v1463
  %v2152 = vpack.c.b16 %v1472, %v1464
  %v2153 = vpack.c.b16 %v1473, %v1465
  %v2154 = vpack.c.b16 %v1482, %v1474
  %v2155 = vpack.c.b16 %v1483, %v1475
  %v2156 = vpack.c.b16 %v1484, %v1476
  %v2157 = vpack.c.b16 %v1485, %v1477
  %v2158 = vpack.c.b16 %v1486, %v1478
  %v2159 = vpack.c.b16 %v1487, %v1479
  %v2160 = vpack.c.b16 %v1488, %v1480
  %v2161 = vpack.c.b16 %v1489, %v1481
  %v2162 = vpack.c.b16 %v1498, %v1490
  %v2163 = vpack.c.b16 %v1499, %v1491
  %v2164 = vpack.c.b16 %v1500, %v1492
  %v2165 = vpack.c.b16 %v1501, %v1493
  %v2166 = vpack.c.b16 %v1502, %v1494
  %v2167 = vpack.c.b16 %v1503, %v1495
  %v2168 = vpack.c.b16 %v1504, %v1496
  %v2169 = vpack.c.b16 %v1505, %v1497
  %v2170 = vpack.c.b16 %v1514, %v1506
  %v2171 = vpack.c.b16 %v1515, %v1507
  %v2172 = vpack.c.b16 %v1516, %v1508
  %v2173 = vpack.c.b16 %v1517, %v1509
  %v2174 = vpack.c.b16 %v1518, %v1510
  %v2175 = vpack.c.b16 %v1519, %v1511
  %v2176 = vpack.c.b16 %v1520, %v1512
  %v2177 = vpack.c.b16 %v1521, %v1513
  %v2178 = vpack.c.b16 %v1530, %v1522
  %v2179 = vpack.c.b16 %v1531, %v1523
  %v2180 = vpack.c.b16 %v1532, %v1524
  %v2181 = vpack.c.b16 %v1533, %v1525
  %v2182 = vpack.c.b16 %v1534, %v1526
  %v2183 = vpack.c.b16 %v1535, %v1527
  %v2184 = vpack.c.b16 %v1536, %v1528
  %v2185 = vpack.c.b16 %v1537, %v1529
  %v2186 = vpack.c.b16 %v1546, %v1538
  %v2187 = vpack.c.b16 %v1547, %v1539
  %v2188 = vpack.c.b16 %v1548, %v1540
  %v2189 = vpack.c.b16 %v1549, %v1541
  %v2190 = vpack.c.b16 %v1550, %v1542
  %v2191 = vpack.c.b16 %v1551, %v1543
  %v2192 = vpack.c.b16 %v1552, %v1544
  %v2193 = vpack.c.b16 %v1553, %v1545
  %v2194 = vpack.c.b16 %v1562, %v1554
  %v2195 = vpack.c.b16 %v1563, %v1555
  %v2196 = vpack.c.b16 %v1564, %v1556
  %v2197 = vpack.c.b16 %v1565, %v1557
  %v2198 = vpack.c.b16 %v1566, %v1558
  %v2199 = vpack.c.b16 %v1567, %v1559
  %v2200 = vpack.c.b16 %v1568, %v1560
  %v2201 = vpack.c.b16 %v1569, %v1561
  %v2202 = vpack.c.b16 %v1578, %v1570
  %v2203 = vpack.c.b16 %v1579, %v1571
  %v2204 = vpack.c.b16 %v1580, %v1572
  %v2205 = vpack.c.b16 %v1581, %v1573
  %v2206 = vpack.c.b16 %v1582, %v1574
  %v2207 = vpack.c.b16 %v1583, %v1575
  %v2208 = vpack.c.b16 %v1584, %v1576
  %v2209 = vpack.c.b16 %v1585, %v1577
  %v2210 = vpack.c.b16 %v1594, %v1586
  %v2211 = vpack.c.b16 %v1595, %v1587
  %v2212 = vpack.c.b16 %v1596, %v1588
  %v2213 = vpack.c.b16 %v1597, %v1589
  %v2214 = vpack.c.b16 %v1598, %v1590
  %v2215 = vpack.c.b16 %v1599, %v1591
  %v2216 = vpack.c.b16 %v1600, %v1592
  %v2217 = vpack.c.b16 %v1601, %v1593
  %v2218 = vpack.c.b16 %v1610, %v1602
  %v2219 = vpack.c.b16 %v1611, %v1603
  %v2220 = vpack.c.b16 %v1612, %v1604
  %v2221 = vpack.c.b16 %v1613, %v1605
  %v2222 = vpack.c.b16 %v1614, %v1606
  %v2223 = vpack.c.b16 %v1615, %v1607
  %v2224 = vpack.c.b16 %v1616, %v1608
  %v2225 = vpack.c.b16 %v1617, %v1609
  %v2226 = vpack.c.b16 %v1626, %v1618
  %v2227 = vpack.c.b16 %v1627, %v1619
  %v2228 = vpack.c.b16 %v1628, %v1620
  %v2229 = vpack.c.b16 %v1629, %v1621
  %v2230 = vpack.c.b16 %v1630, %v1622
  %v2231 = vpack.c.b16 %v1631, %v1623
  %v2232 = vpack.c.b16 %v1632, %v1624
  %v2233 = vpack.c.b16 %v1633, %v1625
  %v2234 = vpack.c.b16 %v1642, %v1634
  %v2235 = vpack.c.b16 %v1643, %v1635
  %v2236 = vpack.c.b16 %v1644, %v1636
  %v2237 = vpack.c.b16 %v1645, %v1637
  %v2238 = vpack.c.b16 %v1646, %v1638
  %v2239 = vpack.c.b16 %v1647, %v1639
  %v2240 = vpack.c.b16 %v1648, %v1640
  %v2241 = vpack.c.b16 %v1649, %v1641
  %v2242 = vpack.c.b16 %v1658, %v1650
  %v2243 = vpack.c.b16 %v1659, %v1651
  %v2244 = vpack.c.b16 %v1660, %v1652
  %v2245 = vpack.c.b16 %v1661, %v1653
  %v2246 = vpack.c.b16 %v1662, %v1654
  %v2247 = vpack.c.b16 %v1663, %v1655
  %v2248 = vpack.c.b16 %v1664, %v1656
  %v2249 = vpack.c.b16 %v1665, %v1657
  %v2250 = vpack.c.b16 %v1674, %v1666
  %v2251 = vpack.c.b16 %v1675, %v1667
  %v2252 = vpack.c.b16 %v1676, %v1668
  %v2253 = vpack.c.b16 %v1677, %v1669
  %v2254 = vpack.c.b16 %v1678, %v1670
  %v2255 = vpack.c.b16 %v1679, %v1671
  %v2256 = vpack.c.b16 %v1680, %v1672
  %v2257 = vpack.c.b16 %v1681, %v1673
  %v2258 = vpack.c.b16 %v1690, %v1682
  %v2259 = vpack.c.b16 %v1691, %v1683
  %v2260 = vpack.c.b16 %v1692, %v1684
  %v2261 = vpack.c.b16 %v1693, %v1685
  %v2262 = vpack.c.b16 %v1694, %v1686
  %v2263 = vpack.c.b16 %v1695, %v1687
  %v2264 = vpack.c.b16 %v1696, %v1688
  %v2265 = vpack.c.b16 %v1697, %v1689
  %v2266 = vpack.c.b16 %v1706, %v1698
  %v2267 = vpack.c.b16 %v1707, %v1699
  %v2268 = vpack.c.b16 %v1708, %v1700
  %v2269 = vpack.c.b16 %v1709, %v1701
  %v2270 = vpack.c.b16 %v1710, %v1702
  %v2271 = vpack.c.b16 %v1711, %v1703
  %v2272 = vpack.c.b16 %v1712, %v1704
  %v2273 = vpack.c.b16 %v1713, %v1705
  %v2274 = vpack.c.b16 %v1722, %v1714
  %v2275 = vpack.c.b16 %v1723, %v1715
  %v2276 = vpack.c.b16 %v1724, %v1716
  %v2277 = vpack.c.b16 %v1725, %v1717
  %v2278 = vpack.c.b16 %v1726, %v1718
  %v2279 = vpack.c.b16 %v1727, %v1719
  %v2280 = vpack.c.b16 %v1728, %v1720
  %v2281 = vpack.c.b16 %v1729, %v1721
  %v2282 = vpack.c.b16 %v1738, %v1730
  %v2283 = vpack.c.b16 %v1739, %v1731
  %v2284 = vpack.c.b16 %v1740, %v1732
  %v2285 = vpack.c.b16 %v1741, %v1733
  %v2286 = vpack.c.b16 %v1742, %v1734
  %v2287 = vpack.c.b16 %v1743, %v1735
  %v2288 = vpack.c.b16 %v1744, %v1736
  %v2289 = vpack.c.b16 %v1745, %v1737
  %v2290 = vpack.c.b16 %v1754, %v1746
  %v2291 = vpack.c.b16 %v1755, %v1747
  %v2292 = vpack.c.b16 %v1756, %v1748
  %v2293 = vpack.c.b16 %v1757, %v1749
  %v2294 = vpack.c.b16 %v1758, %v1750
  %v2295 = vpack.c.b16 %v1759, %v1751
  %v2296 = vpack.c.b16 %v1760, %v1752
  %v2297 = vpack.c.b16 %v1761, %v1753
  %v2298 = vpack.c.b16 %v1770, %v1762
  %v2299 = vpack.c.b16 %v1771, %v1763
  %v2300 = vpack.c.b16 %v1772, %v1764
  %v2301 = vpack.c.b16 %v1773, %v1765
  %v2302 = vpack.c.b16 %v1774, %v1766
  %v2303 = vpack.c.b16 %v1775, %v1767
  %v2304 = vpack.c.b16 %v1776, %v1768
  %v2305 = vpack.c.b16 %v1777, %v1769
  %v2306 = vpack.c.b16 %v1786, %v1778
  %v2307 = vpack.c.b16 %v1787, %v1779
  %v2308 = vpack.c.b16 %v1788, %v1780
  %v2309 = vpack.c.b16 %v1789, %v1781
  %v2310 = vpack.c.b16 %v1790, %v1782
  %v2311 = vpack.c.b16 %v1791, %v1783
  %v2312 = vpack.c.b16 %v1792, %v1784
  %v2313 = vpack.c.b16 %v1793, %v1785
  %v2314 = vpack.c.b16 %v1802, %v1794
  %v2315 = vpack.c.b16 %v1803, %v1795
  %v2316 = vpack.c.b16 %v1804, %v1796
  %v2317 = vpack.c.b16 %v1805, %v1797
  %v2318 = vpack.c.b16 %v1806, %v1798
  %v2319 = vpack.c.b16 %v1807, %v1799
  %v2320 = vpack.c.b16 %v1808, %v1800
  %v2321 = vpack.c.b16 %v1809, %v1801
  %v2322 = vpack.c.b16 %v1818, %v1810
  %v2323 = vpack.c.b16 %v1819, %v1811
  %v2324 = vpack.c.b16 %v1820, %v1812
  %v2325 = vpack.c.b16 %v1821, %v1813
  %v2326 = vpack.c.b16 %v1822, %v1814
  %v2327 = vpack.c.b16 %v1823, %v1815
  %v2328 = vpack.c.b16 %v1824, %v1816
  %v2329 = vpack.c.b16 %v1825, %v1817
  %v2330 = vpack.c.b16 %v1834, %v1826
  %v2331 = vpack.c.b16 %v1835, %v1827
  %v2332 = vpack.c.b16 %v1836, %v1828
  %v2333 = vpack.c.b16 %v1837, %v1829
  %v2334 = vpack.c.b16 %v1838, %v1830
  %v2335 = vpack.c.b16 %v1839, %v1831
  %v2336 = vpack.c.b16 %v1840, %v1832
  %v2337 = vpack.c.b16 %v1841, %v1833
  %v2338 = vpack.c.b16 %v1850, %v1842
  %v2339 = vpack.c.b16 %v1851, %v1843
  %v2340 = vpack.c.b16 %v1852, %v1844
  %v2341 = vpack.c.b16 %v1853, %v1845
  %v2342 = vpack.c.b16 %v1854, %v1846
  %v2343 = vpack.c.b16 %v1855, %v1847
  %v2344 = vpack.c.b16 %v1856, %v1848
  %v2345 = vpack.c.b16 %v1857, %v1849
  %v2346 = vpack.c.b16 %v1866, %v1858
  %v2347 = vpack.c.b16 %v1867, %v1859
  %v2348 = vpack.c.b16 %v1868, %v1860
  %v2349 = vpack.c.b16 %v1869, %v1861
  %v2350 = vpack.c.b16 %v1870, %v1862
  %v2351 = vpack.c.b16 %v1871, %v1863
  %v2352 = vpack.c.b16 %v1872, %v1864
  %v2353 = vpack.c.b16 %v1873, %v1865
  %v2354 = vpack.c.b16 %v1882, %v1874
  %v2355 = vpack.c.b16 %v1883, %v1875
  %v2356 = vpack.c.b16 %v1884, %v1876
  %v2357 = vpack.c.b16 %v1885, %v1877
  %v2358 = vpack.c.b16 %v1886, %v1878
  %v2359 = vpack.c.b16 %v1887, %v1879
  %v2360 = vpack.c.b16 %v1888, %v1880
  %v2361 = vpack.c.b16 %v1889, %v1881
  %v2362 = vpack.c.b16 %v1898, %v1890
  %v2363 = vpack.c.b16 %v1899, %v1891
  %v2364 = vpack.c.b16 %v1900, %v1892
  %v2365 = vpack.c.b16 %v1901, %v1893
  %v2366 = vpack.c.b16 %v1902, %v1894
  %v2367 = vpack.c.b16 %v1903, %v1895
  %v2368 = vpack.c.b16 %v1904, %v1896
  %v2369 = vpack.c.b16 %v1905, %v1897
  %v2370 = vpack.c.b16 %v1914, %v1906
  %v2371 = vpack.c.b16 %v1915, %v1907
  %v2372 = vpack.c.b16 %v1916, %v1908
  %v2373 = vpack.c.b16 %v1917, %v1909
  %v2374 = vpack.c.b16 %v1918, %v1910
  %v2375 = vpack.c.b16 %v1919, %v1911
  %v2376 = vpack.c.b16 %v1920, %v1912
  %v2377 = vpack.c.b16 %v1921, %v1913
  %v2378 = vpack.c.b16 %v1930, %v1922
  %v2379 = vpack.c.b16 %v1931, %v1923
  %v2380 = vpack.c.b16 %v1932, %v1924
  %v2381 = vpack.c.b16 %v1933, %v1925
  %v2382 = vpack.c.b16 %v1934, %v1926
  %v2383 = vpack.c.b16 %v1935, %v1927
  %v2384 = vpack.c.b16 %v1936, %v1928
  %v2385 = vpack.c.b16 %v1937, %v1929
  %2834 = vmatpush.bf16.msra.mxu0 %v1994
  %2835 = vmatpush.bf16.msra.mxu0 %v1986
  %2836 = vmatpush.bf16.msra.mxu0 %v1978
  %2837 = vmatpush.bf16.msra.mxu0 %v1970
  %2838 = vmatpush.bf16.msra.mxu0 %v1962
  %2839 = vmatpush.bf16.msra.mxu0 %v1954
  %2840 = vmatpush.bf16.msra.mxu0 %v1946
  %2841 = vmatpush.bf16.msra.mxu0 %v1938
  %2842 = vmatmul.bf16.gmra.mxu0 %v552
  %v2843 = vpop.f32.mrf.mxu0
  %v2844 = vadd.f32 0.0, %v2843
  %v2845 = vpop.f32.mrf.mxu0
  %v2846 = vadd.f32 0.0, %v2845
  %2847 = vmatmul.bf16.gmra.mxu0 %v559
  %v2848 = vpop.f32.mrf.mxu0
  %v2849 = vadd.f32 0.0, %v2848
  %v2850 = vpop.f32.mrf.mxu0
  %v2851 = vadd.f32 0.0, %v2850
  %2852 = vmatmul.bf16.gmra.mxu0 %v566
  %v2853 = vpop.f32.mrf.mxu0
  %v2854 = vadd.f32 0.0, %v2853
  %v2855 = vpop.f32.mrf.mxu0
  %v2856 = vadd.f32 0.0, %v2855
  %2857 = vdwg.mxu0
  %2858 = vmatpush.bf16.msra.mxu0 %v2058
  %2859 = vmatpush.bf16.msra.mxu0 %v2050
  %2860 = vmatpush.bf16.msra.mxu0 %v2042
  %2861 = vmatpush.bf16.msra.mxu0 %v2034
  %2862 = vmatpush.bf16.msra.mxu0 %v2026
  %2863 = vmatpush.bf16.msra.mxu0 %v2018
  %2864 = vmatpush.bf16.msra.mxu0 %v2010
  %2865 = vmatpush.bf16.msra.mxu0 %v2002
  %2866 = vmatmul.bf16.gmra.mxu0 %v553
  %v2867 = vpop.f32.mrf.mxu0
  %v2868 = vadd.f32 %v2844, %v2867
  %v2869 = vpop.f32.mrf.mxu0
  %v2870 = vadd.f32 %v2846, %v2869
  %2871 = vmatmul.bf16.gmra.mxu0 %v560
  %v2872 = vpop.f32.mrf.mxu0
  %v2873 = vadd.f32 %v2849, %v2872
  %v2874 = vpop.f32.mrf.mxu0
  %v2875 = vadd.f32 %v2851, %v2874
  %2876 = vmatmul.bf16.gmra.mxu0 %v567
  %v2877 = vpop.f32.mrf.mxu0
  %v2878 = vadd.f32 %v2854, %v2877
  %v2879 = vpop.f32.mrf.mxu0
  %v2880 = vadd.f32 %v2856, %v2879
  %2881 = vdwg.mxu0
  %2882 = vmatpush.bf16.msra.mxu0 %v2122
  %2883 = vmatpush.bf16.msra.mxu0 %v2114
  %2884 = vmatpush.bf16.msra.mxu0 %v2106
  %2885 = vmatpush.bf16.msra.mxu0 %v2098
  %2886 = vmatpush.bf16.msra.mxu0 %v2090
  %2887 = vmatpush.bf16.msra.mxu0 %v2082
  %2888 = vmatpush.bf16.msra.mxu0 %v2074
  %2889 = vmatpush.bf16.msra.mxu0 %v2066
  %2890 = vmatmul.bf16.gmra.mxu0 %v554
  %v2891 = vpop.f32.mrf.mxu0
  %v2892 = vadd.f32 %v2868, %v2891
  %v2893 = vpop.f32.mrf.mxu0
  %v2894 = vadd.f32 %v2870, %v2893
  %2895 = vmatmul.bf16.gmra.mxu0 %v561
  %v2896 = vpop.f32.mrf.mxu0
  %v2897 = vadd.f32 %v2873, %v2896
  %v2898 = vpop.f32.mrf.mxu0
  %v2899 = vadd.f32 %v2875, %v2898
  %2900 = vmatmul.bf16.gmra.mxu0 %v568
  %v2901 = vpop.f32.mrf.mxu0
  %v2902 = vadd.f32 %v2878, %v2901
  %v2903 = vpop.f32.mrf.mxu0
  %v2904 = vadd.f32 %v2880, %v2903
  %2905 = vdwg.mxu0
  %2906 = vmatpush.bf16.msra.mxu0 %v2186
  %2907 = vmatpush.bf16.msra.mxu0 %v2178
  %2908 = vmatpush.bf16.msra.mxu0 %v2170
  %2909 = vmatpush.bf16.msra.mxu0 %v2162
  %2910 = vmatpush.bf16.msra.mxu0 %v2154
  %2911 = vmatpush.bf16.msra.mxu0 %v2146
  %2912 = vmatpush.bf16.msra.mxu0 %v2138
  %2913 = vmatpush.bf16.msra.mxu0 %v2130
  %2914 = vmatmul.bf16.gmra.mxu0 %v555
  %v2915 = vpop.f32.mrf.mxu0
  %v2916 = vadd.f32 %v2892, %v2915
  %v2917 = vpop.f32.mrf.mxu0
  %v2918 = vadd.f32 %v2894, %v2917
  %2919 = vmatmul.bf16.gmra.mxu0 %v562
  %v2920 = vpop.f32.mrf.mxu0
  %v2921 = vadd.f32 %v2897, %v2920
  %v2922 = vpop.f32.mrf.mxu0
  %v2923 = vadd.f32 %v2899, %v2922
  %2924 = vmatmul.bf16.gmra.mxu0 %v569
  %v2925 = vpop.f32.mrf.mxu0
  %v2926 = vadd.f32 %v2902, %v2925
  %v2927 = vpop.f32.mrf.mxu0
  %v2928 = vadd.f32 %v2904, %v2927
  %2929 = vdwg.mxu0
  %2930 = vmatpush.bf16.msra.mxu0 %v2250
  %2931 = vmatpush.bf16.msra.mxu0 %v2242
  %2932 = vmatpush.bf16.msra.mxu0 %v2234
  %2933 = vmatpush.bf16.msra.mxu0 %v2226
  %2934 = vmatpush.bf16.msra.mxu0 %v2218
  %2935 = vmatpush.bf16.msra.mxu0 %v2210
  %2936 = vmatpush.bf16.msra.mxu0 %v2202
  %2937 = vmatpush.bf16.msra.mxu0 %v2194
  %2938 = vmatmul.bf16.gmra.mxu0 %v556
  %v2939 = vpop.f32.mrf.mxu0
  %v2940 = vadd.f32 %v2916, %v2939
  %v2941 = vpop.f32.mrf.mxu0
  %v2942 = vadd.f32 %v2918, %v2941
  %2943 = vmatmul.bf16.gmra.mxu0 %v563
  %v2944 = vpop.f32.mrf.mxu0
  %v2945 = vadd.f32 %v2921, %v2944
  %v2946 = vpop.f32.mrf.mxu0
  %v2947 = vadd.f32 %v2923, %v2946
  %2948 = vmatmul.bf16.gmra.mxu0 %v570
  %v2949 = vpop.f32.mrf.mxu0
  %v2950 = vadd.f32 %v2926, %v2949
  %v2951 = vpop.f32.mrf.mxu0
  %v2952 = vadd.f32 %v2928, %v2951
  %2953 = vdwg.mxu0
  %2954 = vmatpush.bf16.msra.mxu0 %v2314
  %2955 = vmatpush.bf16.msra.mxu0 %v2306
  %2956 = vmatpush.bf16.msra.mxu0 %v2298
  %2957 = vmatpush.bf16.msra.mxu0 %v2290
  %2958 = vmatpush.bf16.msra.mxu0 %v2282
  %2959 = vmatpush.bf16.msra.mxu0 %v2274
  %2960 = vmatpush.bf16.msra.mxu0 %v2266
  %2961 = vmatpush.bf16.msra.mxu0 %v2258
  %2962 = vmatmul.bf16.gmra.mxu0 %v557
  %v2963 = vpop.f32.mrf.mxu0
  %v2964 = vadd.f32 %v2940, %v2963
  %v2965 = vpop.f32.mrf.mxu0
  %v2966 = vadd.f32 %v2942, %v2965
  %2967 = vmatmul.bf16.gmra.mxu0 %v564
  %v2968 = vpop.f32.mrf.mxu0
  %v2969 = vadd.f32 %v2945, %v2968
  %v2970 = vpop.f32.mrf.mxu0
  %v2971 = vadd.f32 %v2947, %v2970
  %2972 = vmatmul.bf16.gmra.mxu0 %v571
  %v2973 = vpop.f32.mrf.mxu0
  %v2974 = vadd.f32 %v2950, %v2973
  %v2975 = vpop.f32.mrf.mxu0
  %v2976 = vadd.f32 %v2952, %v2975
  %2977 = vdwg.mxu0
  %2978 = vmatpush.bf16.msra.mxu0 %v2378
  %2979 = vmatpush.bf16.msra.mxu0 %v2370
  %2980 = vmatpush.bf16.msra.mxu0 %v2362
  %2981 = vmatpush.bf16.msra.mxu0 %v2354
  %2982 = vmatpush.bf16.msra.mxu0 %v2346
  %2983 = vmatpush.bf16.msra.mxu0 %v2338
  %2984 = vmatpush.bf16.msra.mxu0 %v2330
  %2985 = vmatpush.bf16.msra.mxu0 %v2322
  %2986 = vmatmul.bf16.gmra.mxu0 %v558
  %v2987 = vpop.f32.mrf.mxu0
  %v2988 = vadd.f32 %v2964, %v2987
  %v2989 = vpop.f32.mrf.mxu0
  %v2990 = vadd.f32 %v2966, %v2989
  %2991 = vmatmul.bf16.gmra.mxu0 %v565
  %v2992 = vpop.f32.mrf.mxu0
  %v2993 = vadd.f32 %v2969, %v2992
  %v2994 = vpop.f32.mrf.mxu0
  %v2995 = vadd.f32 %v2971, %v2994
  %2996 = vmatmul.bf16.gmra.mxu0 %v572
  %v2997 = vpop.f32.mrf.mxu0
  %v2998 = vadd.f32 %v2974, %v2997
  %v2999 = vpop.f32.mrf.mxu0
  %v3000 = vadd.f32 %v2976, %v2999
  %3001 = vdwg.mxu0
  %3002 = vmatpush.bf16.msra.mxu0 %v1995
  %3003 = vmatpush.bf16.msra.mxu0 %v1987
  %3004 = vmatpush.bf16.msra.mxu0 %v1979
  %3005 = vmatpush.bf16.msra.mxu0 %v1971
  %3006 = vmatpush.bf16.msra.mxu0 %v1963
  %3007 = vmatpush.bf16.msra.mxu0 %v1955
  %3008 = vmatpush.bf16.msra.mxu0 %v1947
  %3009 = vmatpush.bf16.msra.mxu0 %v1939
  %3010 = vmatmul.bf16.gmra.mxu0 %v552
  %v3011 = vpop.f32.mrf.mxu0
  %v3012 = vadd.f32 0.0, %v3011
  %v3013 = vpop.f32.mrf.mxu0
  %v3014 = vadd.f32 0.0, %v3013
  %3015 = vmatmul.bf16.gmra.mxu0 %v559
  %v3016 = vpop.f32.mrf.mxu0
  %v3017 = vadd.f32 0.0, %v3016
  %v3018 = vpop.f32.mrf.mxu0
  %v3019 = vadd.f32 0.0, %v3018
  %3020 = vmatmul.bf16.gmra.mxu0 %v566
  %v3021 = vpop.f32.mrf.mxu0
  %v3022 = vadd.f32 0.0, %v3021
  %v3023 = vpop.f32.mrf.mxu0
  %v3024 = vadd.f32 0.0, %v3023
  %3025 = vdwg.mxu0
  %3026 = vmatpush.bf16.msra.mxu0 %v2059
  %3027 = vmatpush.bf16.msra.mxu0 %v2051
  %3028 = vmatpush.bf16.msra.mxu0 %v2043
  %3029 = vmatpush.bf16.msra.mxu0 %v2035
  %3030 = vmatpush.bf16.msra.mxu0 %v2027
  %3031 = vmatpush.bf16.msra.mxu0 %v2019
  %3032 = vmatpush.bf16.msra.mxu0 %v2011
  %3033 = vmatpush.bf16.msra.mxu0 %v2003
  %3034 = vmatmul.bf16.gmra.mxu0 %v553
  %v3035 = vpop.f32.mrf.mxu0
  %v3036 = vadd.f32 %v3012, %v3035
  %v3037 = vpop.f32.mrf.mxu0
  %v3038 = vadd.f32 %v3014, %v3037
  %3039 = vmatmul.bf16.gmra.mxu0 %v560
  %v3040 = vpop.f32.mrf.mxu0
  %v3041 = vadd.f32 %v3017, %v3040
  %v3042 = vpop.f32.mrf.mxu0
  %v3043 = vadd.f32 %v3019, %v3042
  %3044 = vmatmul.bf16.gmra.mxu0 %v567
  %v3045 = vpop.f32.mrf.mxu0
  %v3046 = vadd.f32 %v3022, %v3045
  %v3047 = vpop.f32.mrf.mxu0
  %v3048 = vadd.f32 %v3024, %v3047
  %3049 = vdwg.mxu0
  %3050 = vmatpush.bf16.msra.mxu0 %v2123
  %3051 = vmatpush.bf16.msra.mxu0 %v2115
  %3052 = vmatpush.bf16.msra.mxu0 %v2107
  %3053 = vmatpush.bf16.msra.mxu0 %v2099
  %3054 = vmatpush.bf16.msra.mxu0 %v2091
  %3055 = vmatpush.bf16.msra.mxu0 %v2083
  %3056 = vmatpush.bf16.msra.mxu0 %v2075
  %3057 = vmatpush.bf16.msra.mxu0 %v2067
  %3058 = vmatmul.bf16.gmra.mxu0 %v554
  %v3059 = vpop.f32.mrf.mxu0
  %v3060 = vadd.f32 %v3036, %v3059
  %v3061 = vpop.f32.mrf.mxu0
  %v3062 = vadd.f32 %v3038, %v3061
  %3063 = vmatmul.bf16.gmra.mxu0 %v561
  %v3064 = vpop.f32.mrf.mxu0
  %v3065 = vadd.f32 %v3041, %v3064
  %v3066 = vpop.f32.mrf.mxu0
  %v3067 = vadd.f32 %v3043, %v3066
  %3068 = vmatmul.bf16.gmra.mxu0 %v568
  %v3069 = vpop.f32.mrf.mxu0
  %v3070 = vadd.f32 %v3046, %v3069
  %v3071 = vpop.f32.mrf.mxu0
  %v3072 = vadd.f32 %v3048, %v3071
  %3073 = vdwg.mxu0
  %3074 = vmatpush.bf16.msra.mxu0 %v2187
  %3075 = vmatpush.bf16.msra.mxu0 %v2179
  %3076 = vmatpush.bf16.msra.mxu0 %v2171
  %3077 = vmatpush.bf16.msra.mxu0 %v2163
  %3078 = vmatpush.bf16.msra.mxu0 %v2155
  %3079 = vmatpush.bf16.msra.mxu0 %v2147
  %3080 = vmatpush.bf16.msra.mxu0 %v2139
  %3081 = vmatpush.bf16.msra.mxu0 %v2131
  %3082 = vmatmul.bf16.gmra.mxu0 %v555
  %v3083 = vpop.f32.mrf.mxu0
  %v3084 = vadd.f32 %v3060, %v3083
  %v3085 = vpop.f32.mrf.mxu0
  %v3086 = vadd.f32 %v3062, %v3085
  %3087 = vmatmul.bf16.gmra.mxu0 %v562
  %v3088 = vpop.f32.mrf.mxu0
  %v3089 = vadd.f32 %v3065, %v3088
  %v3090 = vpop.f32.mrf.mxu0
  %v3091 = vadd.f32 %v3067, %v3090
  %3092 = vmatmul.bf16.gmra.mxu0 %v569
  %v3093 = vpop.f32.mrf.mxu0
  %v3094 = vadd.f32 %v3070, %v3093
  %v3095 = vpop.f32.mrf.mxu0
  %v3096 = vadd.f32 %v3072, %v3095
  %3097 = vdwg.mxu0
  %3098 = vmatpush.bf16.msra.mxu0 %v2251
  %3099 = vmatpush.bf16.msra.mxu0 %v2243
  %3100 = vmatpush.bf16.msra.mxu0 %v2235
  %3101 = vmatpush.bf16.msra.mxu0 %v2227
  %3102 = vmatpush.bf16.msra.mxu0 %v2219
  %3103 = vmatpush.bf16.msra.mxu0 %v2211
  %3104 = vmatpush.bf16.msra.mxu0 %v2203
  %3105 = vmatpush.bf16.msra.mxu0 %v2195
  %3106 = vmatmul.bf16.gmra.mxu0 %v556
  %v3107 = vpop.f32.mrf.mxu0
  %v3108 = vadd.f32 %v3084, %v3107
  %v3109 = vpop.f32.mrf.mxu0
  %v3110 = vadd.f32 %v3086, %v3109
  %3111 = vmatmul.bf16.gmra.mxu0 %v563
  %v3112 = vpop.f32.mrf.mxu0
  %v3113 = vadd.f32 %v3089, %v3112
  %v3114 = vpop.f32.mrf.mxu0
  %v3115 = vadd.f32 %v3091, %v3114
  %3116 = vmatmul.bf16.gmra.mxu0 %v570
  %v3117 = vpop.f32.mrf.mxu0
  %v3118 = vadd.f32 %v3094, %v3117
  %v3119 = vpop.f32.mrf.mxu0
  %v3120 = vadd.f32 %v3096, %v3119
  %3121 = vdwg.mxu0
  %3122 = vmatpush.bf16.msra.mxu0 %v2315
  %3123 = vmatpush.bf16.msra.mxu0 %v2307
  %3124 = vmatpush.bf16.msra.mxu0 %v2299
  %3125 = vmatpush.bf16.msra.mxu0 %v2291
  %3126 = vmatpush.bf16.msra.mxu0 %v2283
  %3127 = vmatpush.bf16.msra.mxu0 %v2275
  %3128 = vmatpush.bf16.msra.mxu0 %v2267
  %3129 = vmatpush.bf16.msra.mxu0 %v2259
  %3130 = vmatmul.bf16.gmra.mxu0 %v557
  %v3131 = vpop.f32.mrf.mxu0
  %v3132 = vadd.f32 %v3108, %v3131
  %v3133 = vpop.f32.mrf.mxu0
  %v3134 = vadd.f32 %v3110, %v3133
  %3135 = vmatmul.bf16.gmra.mxu0 %v564
  %v3136 = vpop.f32.mrf.mxu0
  %v3137 = vadd.f32 %v3113, %v3136
  %v3138 = vpop.f32.mrf.mxu0
  %v3139 = vadd.f32 %v3115, %v3138
  %3140 = vmatmul.bf16.gmra.mxu0 %v571
  %v3141 = vpop.f32.mrf.mxu0
  %v3142 = vadd.f32 %v3118, %v3141
  %v3143 = vpop.f32.mrf.mxu0
  %v3144 = vadd.f32 %v3120, %v3143
  %3145 = vdwg.mxu0
  %3146 = vmatpush.bf16.msra.mxu0 %v2379
  %3147 = vmatpush.bf16.msra.mxu0 %v2371
  %3148 = vmatpush.bf16.msra.mxu0 %v2363
  %3149 = vmatpush.bf16.msra.mxu0 %v2355
  %3150 = vmatpush.bf16.msra.mxu0 %v2347
  %3151 = vmatpush.bf16.msra.mxu0 %v2339
  %3152 = vmatpush.bf16.msra.mxu0 %v2331
  %3153 = vmatpush.bf16.msra.mxu0 %v2323
  %3154 = vmatmul.bf16.gmra.mxu0 %v558
  %v3155 = vpop.f32.mrf.mxu0
  %v3156 = vadd.f32 %v3132, %v3155
  %v3157 = vpop.f32.mrf.mxu0
  %v3158 = vadd.f32 %v3134, %v3157
  %3159 = vmatmul.bf16.gmra.mxu0 %v565
  %v3160 = vpop.f32.mrf.mxu0
  %v3161 = vadd.f32 %v3137, %v3160
  %v3162 = vpop.f32.mrf.mxu0
  %v3163 = vadd.f32 %v3139, %v3162
  %3164 = vmatmul.bf16.gmra.mxu0 %v572
  %v3165 = vpop.f32.mrf.mxu0
  %v3166 = vadd.f32 %v3142, %v3165
  %v3167 = vpop.f32.mrf.mxu0
  %v3168 = vadd.f32 %v3144, %v3167
  %3169 = vdwg.mxu0
  %3170 = vmatpush.bf16.msra.mxu0 %v1996
  %3171 = vmatpush.bf16.msra.mxu0 %v1988
  %3172 = vmatpush.bf16.msra.mxu0 %v1980
  %3173 = vmatpush.bf16.msra.mxu0 %v1972
  %3174 = vmatpush.bf16.msra.mxu0 %v1964
  %3175 = vmatpush.bf16.msra.mxu0 %v1956
  %3176 = vmatpush.bf16.msra.mxu0 %v1948
  %3177 = vmatpush.bf16.msra.mxu0 %v1940
  %3178 = vmatmul.bf16.gmra.mxu0 %v552
  %v3179 = vpop.f32.mrf.mxu0
  %v3180 = vadd.f32 0.0, %v3179
  %v3181 = vpop.f32.mrf.mxu0
  %v3182 = vadd.f32 0.0, %v3181
  %3183 = vmatmul.bf16.gmra.mxu0 %v559
  %v3184 = vpop.f32.mrf.mxu0
  %v3185 = vadd.f32 0.0, %v3184
  %v3186 = vpop.f32.mrf.mxu0
  %v3187 = vadd.f32 0.0, %v3186
  %3188 = vmatmul.bf16.gmra.mxu0 %v566
  %v3189 = vpop.f32.mrf.mxu0
  %v3190 = vadd.f32 0.0, %v3189
  %v3191 = vpop.f32.mrf.mxu0
  %v3192 = vadd.f32 0.0, %v3191
  %3193 = vdwg.mxu0
  %3194 = vmatpush.bf16.msra.mxu0 %v2060
  %3195 = vmatpush.bf16.msra.mxu0 %v2052
  %3196 = vmatpush.bf16.msra.mxu0 %v2044
  %3197 = vmatpush.bf16.msra.mxu0 %v2036
  %3198 = vmatpush.bf16.msra.mxu0 %v2028
  %3199 = vmatpush.bf16.msra.mxu0 %v2020
  %3200 = vmatpush.bf16.msra.mxu0 %v2012
  %3201 = vmatpush.bf16.msra.mxu0 %v2004
  %3202 = vmatmul.bf16.gmra.mxu0 %v553
  %v3203 = vpop.f32.mrf.mxu0
  %v3204 = vadd.f32 %v3180, %v3203
  %v3205 = vpop.f32.mrf.mxu0
  %v3206 = vadd.f32 %v3182, %v3205
  %3207 = vmatmul.bf16.gmra.mxu0 %v560
  %v3208 = vpop.f32.mrf.mxu0
  %v3209 = vadd.f32 %v3185, %v3208
  %v3210 = vpop.f32.mrf.mxu0
  %v3211 = vadd.f32 %v3187, %v3210
  %3212 = vmatmul.bf16.gmra.mxu0 %v567
  %v3213 = vpop.f32.mrf.mxu0
  %v3214 = vadd.f32 %v3190, %v3213
  %v3215 = vpop.f32.mrf.mxu0
  %v3216 = vadd.f32 %v3192, %v3215
  %3217 = vdwg.mxu0
  %3218 = vmatpush.bf16.msra.mxu0 %v2124
  %3219 = vmatpush.bf16.msra.mxu0 %v2116
  %3220 = vmatpush.bf16.msra.mxu0 %v2108
  %3221 = vmatpush.bf16.msra.mxu0 %v2100
  %3222 = vmatpush.bf16.msra.mxu0 %v2092
  %3223 = vmatpush.bf16.msra.mxu0 %v2084
  %3224 = vmatpush.bf16.msra.mxu0 %v2076
  %3225 = vmatpush.bf16.msra.mxu0 %v2068
  %3226 = vmatmul.bf16.gmra.mxu0 %v554
  %v3227 = vpop.f32.mrf.mxu0
  %v3228 = vadd.f32 %v3204, %v3227
  %v3229 = vpop.f32.mrf.mxu0
  %v3230 = vadd.f32 %v3206, %v3229
  %3231 = vmatmul.bf16.gmra.mxu0 %v561
  %v3232 = vpop.f32.mrf.mxu0
  %v3233 = vadd.f32 %v3209, %v3232
  %v3234 = vpop.f32.mrf.mxu0
  %v3235 = vadd.f32 %v3211, %v3234
  %3236 = vmatmul.bf16.gmra.mxu0 %v568
  %v3237 = vpop.f32.mrf.mxu0
  %v3238 = vadd.f32 %v3214, %v3237
  %v3239 = vpop.f32.mrf.mxu0
  %v3240 = vadd.f32 %v3216, %v3239
  %3241 = vdwg.mxu0
  %3242 = vmatpush.bf16.msra.mxu0 %v2188
  %3243 = vmatpush.bf16.msra.mxu0 %v2180
  %3244 = vmatpush.bf16.msra.mxu0 %v2172
  %3245 = vmatpush.bf16.msra.mxu0 %v2164
  %3246 = vmatpush.bf16.msra.mxu0 %v2156
  %3247 = vmatpush.bf16.msra.mxu0 %v2148
  %3248 = vmatpush.bf16.msra.mxu0 %v2140
  %3249 = vmatpush.bf16.msra.mxu0 %v2132
  %3250 = vmatmul.bf16.gmra.mxu0 %v555
  %v3251 = vpop.f32.mrf.mxu0
  %v3252 = vadd.f32 %v3228, %v3251
  %v3253 = vpop.f32.mrf.mxu0
  %v3254 = vadd.f32 %v3230, %v3253
  %3255 = vmatmul.bf16.gmra.mxu0 %v562
  %v3256 = vpop.f32.mrf.mxu0
  %v3257 = vadd.f32 %v3233, %v3256
  %v3258 = vpop.f32.mrf.mxu0
  %v3259 = vadd.f32 %v3235, %v3258
  %3260 = vmatmul.bf16.gmra.mxu0 %v569
  %v3261 = vpop.f32.mrf.mxu0
  %v3262 = vadd.f32 %v3238, %v3261
  %v3263 = vpop.f32.mrf.mxu0
  %v3264 = vadd.f32 %v3240, %v3263
  %3265 = vdwg.mxu0
  %3266 = vmatpush.bf16.msra.mxu0 %v2252
  %3267 = vmatpush.bf16.msra.mxu0 %v2244
  %3268 = vmatpush.bf16.msra.mxu0 %v2236
  %3269 = vmatpush.bf16.msra.mxu0 %v2228
  %3270 = vmatpush.bf16.msra.mxu0 %v2220
  %3271 = vmatpush.bf16.msra.mxu0 %v2212
  %3272 = vmatpush.bf16.msra.mxu0 %v2204
  %3273 = vmatpush.bf16.msra.mxu0 %v2196
  %3274 = vmatmul.bf16.gmra.mxu0 %v556
  %v3275 = vpop.f32.mrf.mxu0
  %v3276 = vadd.f32 %v3252, %v3275
  %v3277 = vpop.f32.mrf.mxu0
  %v3278 = vadd.f32 %v3254, %v3277
  %3279 = vmatmul.bf16.gmra.mxu0 %v563
  %v3280 = vpop.f32.mrf.mxu0
  %v3281 = vadd.f32 %v3257, %v3280
  %v3282 = vpop.f32.mrf.mxu0
  %v3283 = vadd.f32 %v3259, %v3282
  %3284 = vmatmul.bf16.gmra.mxu0 %v570
  %v3285 = vpop.f32.mrf.mxu0
  %v3286 = vadd.f32 %v3262, %v3285
  %v3287 = vpop.f32.mrf.mxu0
  %v3288 = vadd.f32 %v3264, %v3287
  %3289 = vdwg.mxu0
  %3290 = vmatpush.bf16.msra.mxu0 %v2316
  %3291 = vmatpush.bf16.msra.mxu0 %v2308
  %3292 = vmatpush.bf16.msra.mxu0 %v2300
  %3293 = vmatpush.bf16.msra.mxu0 %v2292
  %3294 = vmatpush.bf16.msra.mxu0 %v2284
  %3295 = vmatpush.bf16.msra.mxu0 %v2276
  %3296 = vmatpush.bf16.msra.mxu0 %v2268
  %3297 = vmatpush.bf16.msra.mxu0 %v2260
  %3298 = vmatmul.bf16.gmra.mxu0 %v557
  %v3299 = vpop.f32.mrf.mxu0
  %v3300 = vadd.f32 %v3276, %v3299
  %v3301 = vpop.f32.mrf.mxu0
  %v3302 = vadd.f32 %v3278, %v3301
  %3303 = vmatmul.bf16.gmra.mxu0 %v564
  %v3304 = vpop.f32.mrf.mxu0
  %v3305 = vadd.f32 %v3281, %v3304
  %v3306 = vpop.f32.mrf.mxu0
  %v3307 = vadd.f32 %v3283, %v3306
  %3308 = vmatmul.bf16.gmra.mxu0 %v571
  %v3309 = vpop.f32.mrf.mxu0
  %v3310 = vadd.f32 %v3286, %v3309
  %v3311 = vpop.f32.mrf.mxu0
  %v3312 = vadd.f32 %v3288, %v3311
  %3313 = vdwg.mxu0
  %3314 = vmatpush.bf16.msra.mxu0 %v2380
  %3315 = vmatpush.bf16.msra.mxu0 %v2372
  %3316 = vmatpush.bf16.msra.mxu0 %v2364
  %3317 = vmatpush.bf16.msra.mxu0 %v2356
  %3318 = vmatpush.bf16.msra.mxu0 %v2348
  %3319 = vmatpush.bf16.msra.mxu0 %v2340
  %3320 = vmatpush.bf16.msra.mxu0 %v2332
  %3321 = vmatpush.bf16.msra.mxu0 %v2324
  %3322 = vmatmul.bf16.gmra.mxu0 %v558
  %v3323 = vpop.f32.mrf.mxu0
  %v3324 = vadd.f32 %v3300, %v3323
  %v3325 = vpop.f32.mrf.mxu0
  %v3326 = vadd.f32 %v3302, %v3325
  %3327 = vmatmul.bf16.gmra.mxu0 %v565
  %v3328 = vpop.f32.mrf.mxu0
  %v3329 = vadd.f32 %v3305, %v3328
  %v3330 = vpop.f32.mrf.mxu0
  %v3331 = vadd.f32 %v3307, %v3330
  %3332 = vmatmul.bf16.gmra.mxu0 %v572
  %v3333 = vpop.f32.mrf.mxu0
  %v3334 = vadd.f32 %v3310, %v3333
  %v3335 = vpop.f32.mrf.mxu0
  %v3336 = vadd.f32 %v3312, %v3335
  %3337 = vdwg.mxu0
  %3338 = vmatpush.bf16.msra.mxu0 %v1997
  %3339 = vmatpush.bf16.msra.mxu0 %v1989
  %3340 = vmatpush.bf16.msra.mxu0 %v1981
  %3341 = vmatpush.bf16.msra.mxu0 %v1973
  %3342 = vmatpush.bf16.msra.mxu0 %v1965
  %3343 = vmatpush.bf16.msra.mxu0 %v1957
  %3344 = vmatpush.bf16.msra.mxu0 %v1949
  %3345 = vmatpush.bf16.msra.mxu0 %v1941
  %3346 = vmatmul.bf16.gmra.mxu0 %v552
  %v3347 = vpop.f32.mrf.mxu0
  %v3348 = vadd.f32 0.0, %v3347
  %v3349 = vpop.f32.mrf.mxu0
  %v3350 = vadd.f32 0.0, %v3349
  %3351 = vmatmul.bf16.gmra.mxu0 %v559
  %v3352 = vpop.f32.mrf.mxu0
  %v3353 = vadd.f32 0.0, %v3352
  %v3354 = vpop.f32.mrf.mxu0
  %v3355 = vadd.f32 0.0, %v3354
  %3356 = vmatmul.bf16.gmra.mxu0 %v566
  %v3357 = vpop.f32.mrf.mxu0
  %v3358 = vadd.f32 0.0, %v3357
  %v3359 = vpop.f32.mrf.mxu0
  %v3360 = vadd.f32 0.0, %v3359
  %3361 = vdwg.mxu0
  %3362 = vmatpush.bf16.msra.mxu0 %v2061
  %3363 = vmatpush.bf16.msra.mxu0 %v2053
  %3364 = vmatpush.bf16.msra.mxu0 %v2045
  %3365 = vmatpush.bf16.msra.mxu0 %v2037
  %3366 = vmatpush.bf16.msra.mxu0 %v2029
  %3367 = vmatpush.bf16.msra.mxu0 %v2021
  %3368 = vmatpush.bf16.msra.mxu0 %v2013
  %3369 = vmatpush.bf16.msra.mxu0 %v2005
  %3370 = vmatmul.bf16.gmra.mxu0 %v553
  %v3371 = vpop.f32.mrf.mxu0
  %v3372 = vadd.f32 %v3348, %v3371
  %v3373 = vpop.f32.mrf.mxu0
  %v3374 = vadd.f32 %v3350, %v3373
  %3375 = vmatmul.bf16.gmra.mxu0 %v560
  %v3376 = vpop.f32.mrf.mxu0
  %v3377 = vadd.f32 %v3353, %v3376
  %v3378 = vpop.f32.mrf.mxu0
  %v3379 = vadd.f32 %v3355, %v3378
  %3380 = vmatmul.bf16.gmra.mxu0 %v567
  %v3381 = vpop.f32.mrf.mxu0
  %v3382 = vadd.f32 %v3358, %v3381
  %v3383 = vpop.f32.mrf.mxu0
  %v3384 = vadd.f32 %v3360, %v3383
  %3385 = vdwg.mxu0
  %3386 = vmatpush.bf16.msra.mxu0 %v2125
  %3387 = vmatpush.bf16.msra.mxu0 %v2117
  %3388 = vmatpush.bf16.msra.mxu0 %v2109
  %3389 = vmatpush.bf16.msra.mxu0 %v2101
  %3390 = vmatpush.bf16.msra.mxu0 %v2093
  %3391 = vmatpush.bf16.msra.mxu0 %v2085
  %3392 = vmatpush.bf16.msra.mxu0 %v2077
  %3393 = vmatpush.bf16.msra.mxu0 %v2069
  %3394 = vmatmul.bf16.gmra.mxu0 %v554
  %v3395 = vpop.f32.mrf.mxu0
  %v3396 = vadd.f32 %v3372, %v3395
  %v3397 = vpop.f32.mrf.mxu0
  %v3398 = vadd.f32 %v3374, %v3397
  %3399 = vmatmul.bf16.gmra.mxu0 %v561
  %v3400 = vpop.f32.mrf.mxu0
  %v3401 = vadd.f32 %v3377, %v3400
  %v3402 = vpop.f32.mrf.mxu0
  %v3403 = vadd.f32 %v3379, %v3402
  %3404 = vmatmul.bf16.gmra.mxu0 %v568
  %v3405 = vpop.f32.mrf.mxu0
  %v3406 = vadd.f32 %v3382, %v3405
  %v3407 = vpop.f32.mrf.mxu0
  %v3408 = vadd.f32 %v3384, %v3407
  %3409 = vdwg.mxu0
  %3410 = vmatpush.bf16.msra.mxu0 %v2189
  %3411 = vmatpush.bf16.msra.mxu0 %v2181
  %3412 = vmatpush.bf16.msra.mxu0 %v2173
  %3413 = vmatpush.bf16.msra.mxu0 %v2165
  %3414 = vmatpush.bf16.msra.mxu0 %v2157
  %3415 = vmatpush.bf16.msra.mxu0 %v2149
  %3416 = vmatpush.bf16.msra.mxu0 %v2141
  %3417 = vmatpush.bf16.msra.mxu0 %v2133
  %3418 = vmatmul.bf16.gmra.mxu0 %v555
  %v3419 = vpop.f32.mrf.mxu0
  %v3420 = vadd.f32 %v3396, %v3419
  %v3421 = vpop.f32.mrf.mxu0
  %v3422 = vadd.f32 %v3398, %v3421
  %3423 = vmatmul.bf16.gmra.mxu0 %v562
  %v3424 = vpop.f32.mrf.mxu0
  %v3425 = vadd.f32 %v3401, %v3424
  %v3426 = vpop.f32.mrf.mxu0
  %v3427 = vadd.f32 %v3403, %v3426
  %3428 = vmatmul.bf16.gmra.mxu0 %v569
  %v3429 = vpop.f32.mrf.mxu0
  %v3430 = vadd.f32 %v3406, %v3429
  %v3431 = vpop.f32.mrf.mxu0
  %v3432 = vadd.f32 %v3408, %v3431
  %3433 = vdwg.mxu0
  %3434 = vmatpush.bf16.msra.mxu0 %v2253
  %3435 = vmatpush.bf16.msra.mxu0 %v2245
  %3436 = vmatpush.bf16.msra.mxu0 %v2237
  %3437 = vmatpush.bf16.msra.mxu0 %v2229
  %3438 = vmatpush.bf16.msra.mxu0 %v2221
  %3439 = vmatpush.bf16.msra.mxu0 %v2213
  %3440 = vmatpush.bf16.msra.mxu0 %v2205
  %3441 = vmatpush.bf16.msra.mxu0 %v2197
  %3442 = vmatmul.bf16.gmra.mxu0 %v556
  %v3443 = vpop.f32.mrf.mxu0
  %v3444 = vadd.f32 %v3420, %v3443
  %v3445 = vpop.f32.mrf.mxu0
  %v3446 = vadd.f32 %v3422, %v3445
  %3447 = vmatmul.bf16.gmra.mxu0 %v563
  %v3448 = vpop.f32.mrf.mxu0
  %v3449 = vadd.f32 %v3425, %v3448
  %v3450 = vpop.f32.mrf.mxu0
  %v3451 = vadd.f32 %v3427, %v3450
  %3452 = vmatmul.bf16.gmra.mxu0 %v570
  %v3453 = vpop.f32.mrf.mxu0
  %v3454 = vadd.f32 %v3430, %v3453
  %v3455 = vpop.f32.mrf.mxu0
  %v3456 = vadd.f32 %v3432, %v3455
  %3457 = vdwg.mxu0
  %3458 = vmatpush.bf16.msra.mxu0 %v2317
  %3459 = vmatpush.bf16.msra.mxu0 %v2309
  %3460 = vmatpush.bf16.msra.mxu0 %v2301
  %3461 = vmatpush.bf16.msra.mxu0 %v2293
  %3462 = vmatpush.bf16.msra.mxu0 %v2285
  %3463 = vmatpush.bf16.msra.mxu0 %v2277
  %3464 = vmatpush.bf16.msra.mxu0 %v2269
  %3465 = vmatpush.bf16.msra.mxu0 %v2261
  %3466 = vmatmul.bf16.gmra.mxu0 %v557
  %v3467 = vpop.f32.mrf.mxu0
  %v3468 = vadd.f32 %v3444, %v3467
  %v3469 = vpop.f32.mrf.mxu0
  %v3470 = vadd.f32 %v3446, %v3469
  %3471 = vmatmul.bf16.gmra.mxu0 %v564
  %v3472 = vpop.f32.mrf.mxu0
  %v3473 = vadd.f32 %v3449, %v3472
  %v3474 = vpop.f32.mrf.mxu0
  %v3475 = vadd.f32 %v3451, %v3474
  %3476 = vmatmul.bf16.gmra.mxu0 %v571
  %v3477 = vpop.f32.mrf.mxu0
  %v3478 = vadd.f32 %v3454, %v3477
  %v3479 = vpop.f32.mrf.mxu0
  %v3480 = vadd.f32 %v3456, %v3479
  %3481 = vdwg.mxu0
  %3482 = vmatpush.bf16.msra.mxu0 %v2381
  %3483 = vmatpush.bf16.msra.mxu0 %v2373
  %3484 = vmatpush.bf16.msra.mxu0 %v2365
  %3485 = vmatpush.bf16.msra.mxu0 %v2357
  %3486 = vmatpush.bf16.msra.mxu0 %v2349
  %3487 = vmatpush.bf16.msra.mxu0 %v2341
  %3488 = vmatpush.bf16.msra.mxu0 %v2333
  %3489 = vmatpush.bf16.msra.mxu0 %v2325
  %3490 = vmatmul.bf16.gmra.mxu0 %v558
  %v3491 = vpop.f32.mrf.mxu0
  %v3492 = vadd.f32 %v3468, %v3491
  %v3493 = vpop.f32.mrf.mxu0
  %v3494 = vadd.f32 %v3470, %v3493
  %3495 = vmatmul.bf16.gmra.mxu0 %v565
  %v3496 = vpop.f32.mrf.mxu0
  %v3497 = vadd.f32 %v3473, %v3496
  %v3498 = vpop.f32.mrf.mxu0
  %v3499 = vadd.f32 %v3475, %v3498
  %3500 = vmatmul.bf16.gmra.mxu0 %v572
  %v3501 = vpop.f32.mrf.mxu0
  %v3502 = vadd.f32 %v3478, %v3501
  %v3503 = vpop.f32.mrf.mxu0
  %v3504 = vadd.f32 %v3480, %v3503
  %3505 = vdwg.mxu0
  %3506 = vmatpush.bf16.msra.mxu0 %v1998
  %3507 = vmatpush.bf16.msra.mxu0 %v1990
  %3508 = vmatpush.bf16.msra.mxu0 %v1982
  %3509 = vmatpush.bf16.msra.mxu0 %v1974
  %3510 = vmatpush.bf16.msra.mxu0 %v1966
  %3511 = vmatpush.bf16.msra.mxu0 %v1958
  %3512 = vmatpush.bf16.msra.mxu0 %v1950
  %3513 = vmatpush.bf16.msra.mxu0 %v1942
  %3514 = vmatmul.bf16.gmra.mxu0 %v552
  %v3515 = vpop.f32.mrf.mxu0
  %v3516 = vadd.f32 0.0, %v3515
  %v3517 = vpop.f32.mrf.mxu0
  %v3518 = vadd.f32 0.0, %v3517
  %3519 = vmatmul.bf16.gmra.mxu0 %v559
  %v3520 = vpop.f32.mrf.mxu0
  %v3521 = vadd.f32 0.0, %v3520
  %v3522 = vpop.f32.mrf.mxu0
  %v3523 = vadd.f32 0.0, %v3522
  %3524 = vmatmul.bf16.gmra.mxu0 %v566
  %v3525 = vpop.f32.mrf.mxu0
  %v3526 = vadd.f32 0.0, %v3525
  %v3527 = vpop.f32.mrf.mxu0
  %v3528 = vadd.f32 0.0, %v3527
  %3529 = vdwg.mxu0
  %3530 = vmatpush.bf16.msra.mxu0 %v2062
  %3531 = vmatpush.bf16.msra.mxu0 %v2054
  %3532 = vmatpush.bf16.msra.mxu0 %v2046
  %3533 = vmatpush.bf16.msra.mxu0 %v2038
  %3534 = vmatpush.bf16.msra.mxu0 %v2030
  %3535 = vmatpush.bf16.msra.mxu0 %v2022
  %3536 = vmatpush.bf16.msra.mxu0 %v2014
  %3537 = vmatpush.bf16.msra.mxu0 %v2006
  %3538 = vmatmul.bf16.gmra.mxu0 %v553
  %v3539 = vpop.f32.mrf.mxu0
  %v3540 = vadd.f32 %v3516, %v3539
  %v3541 = vpop.f32.mrf.mxu0
  %v3542 = vadd.f32 %v3518, %v3541
  %3543 = vmatmul.bf16.gmra.mxu0 %v560
  %v3544 = vpop.f32.mrf.mxu0
  %v3545 = vadd.f32 %v3521, %v3544
  %v3546 = vpop.f32.mrf.mxu0
  %v3547 = vadd.f32 %v3523, %v3546
  %3548 = vmatmul.bf16.gmra.mxu0 %v567
  %v3549 = vpop.f32.mrf.mxu0
  %v3550 = vadd.f32 %v3526, %v3549
  %v3551 = vpop.f32.mrf.mxu0
  %v3552 = vadd.f32 %v3528, %v3551
  %3553 = vdwg.mxu0
  %3554 = vmatpush.bf16.msra.mxu0 %v2126
  %3555 = vmatpush.bf16.msra.mxu0 %v2118
  %3556 = vmatpush.bf16.msra.mxu0 %v2110
  %3557 = vmatpush.bf16.msra.mxu0 %v2102
  %3558 = vmatpush.bf16.msra.mxu0 %v2094
  %3559 = vmatpush.bf16.msra.mxu0 %v2086
  %3560 = vmatpush.bf16.msra.mxu0 %v2078
  %3561 = vmatpush.bf16.msra.mxu0 %v2070
  %3562 = vmatmul.bf16.gmra.mxu0 %v554
  %v3563 = vpop.f32.mrf.mxu0
  %v3564 = vadd.f32 %v3540, %v3563
  %v3565 = vpop.f32.mrf.mxu0
  %v3566 = vadd.f32 %v3542, %v3565
  %3567 = vmatmul.bf16.gmra.mxu0 %v561
  %v3568 = vpop.f32.mrf.mxu0
  %v3569 = vadd.f32 %v3545, %v3568
  %v3570 = vpop.f32.mrf.mxu0
  %v3571 = vadd.f32 %v3547, %v3570
  %3572 = vmatmul.bf16.gmra.mxu0 %v568
  %v3573 = vpop.f32.mrf.mxu0
  %v3574 = vadd.f32 %v3550, %v3573
  %v3575 = vpop.f32.mrf.mxu0
  %v3576 = vadd.f32 %v3552, %v3575
  %3577 = vdwg.mxu0
  %3578 = vmatpush.bf16.msra.mxu0 %v2190
  %3579 = vmatpush.bf16.msra.mxu0 %v2182
  %3580 = vmatpush.bf16.msra.mxu0 %v2174
  %3581 = vmatpush.bf16.msra.mxu0 %v2166
  %3582 = vmatpush.bf16.msra.mxu0 %v2158
  %3583 = vmatpush.bf16.msra.mxu0 %v2150
  %3584 = vmatpush.bf16.msra.mxu0 %v2142
  %3585 = vmatpush.bf16.msra.mxu0 %v2134
  %3586 = vmatmul.bf16.gmra.mxu0 %v555
  %v3587 = vpop.f32.mrf.mxu0
  %v3588 = vadd.f32 %v3564, %v3587
  %v3589 = vpop.f32.mrf.mxu0
  %v3590 = vadd.f32 %v3566, %v3589
  %3591 = vmatmul.bf16.gmra.mxu0 %v562
  %v3592 = vpop.f32.mrf.mxu0
  %v3593 = vadd.f32 %v3569, %v3592
  %v3594 = vpop.f32.mrf.mxu0
  %v3595 = vadd.f32 %v3571, %v3594
  %3596 = vmatmul.bf16.gmra.mxu0 %v569
  %v3597 = vpop.f32.mrf.mxu0
  %v3598 = vadd.f32 %v3574, %v3597
  %v3599 = vpop.f32.mrf.mxu0
  %v3600 = vadd.f32 %v3576, %v3599
  %3601 = vdwg.mxu0
  %3602 = vmatpush.bf16.msra.mxu0 %v2254
  %3603 = vmatpush.bf16.msra.mxu0 %v2246
  %3604 = vmatpush.bf16.msra.mxu0 %v2238
  %3605 = vmatpush.bf16.msra.mxu0 %v2230
  %3606 = vmatpush.bf16.msra.mxu0 %v2222
  %3607 = vmatpush.bf16.msra.mxu0 %v2214
  %3608 = vmatpush.bf16.msra.mxu0 %v2206
  %3609 = vmatpush.bf16.msra.mxu0 %v2198
  %3610 = vmatmul.bf16.gmra.mxu0 %v556
  %v3611 = vpop.f32.mrf.mxu0
  %v3612 = vadd.f32 %v3588, %v3611
  %v3613 = vpop.f32.mrf.mxu0
  %v3614 = vadd.f32 %v3590, %v3613
  %3615 = vmatmul.bf16.gmra.mxu0 %v563
  %v3616 = vpop.f32.mrf.mxu0
  %v3617 = vadd.f32 %v3593, %v3616
  %v3618 = vpop.f32.mrf.mxu0
  %v3619 = vadd.f32 %v3595, %v3618
  %3620 = vmatmul.bf16.gmra.mxu0 %v570
  %v3621 = vpop.f32.mrf.mxu0
  %v3622 = vadd.f32 %v3598, %v3621
  %v3623 = vpop.f32.mrf.mxu0
  %v3624 = vadd.f32 %v3600, %v3623
  %3625 = vdwg.mxu0
  %3626 = vmatpush.bf16.msra.mxu0 %v2318
  %3627 = vmatpush.bf16.msra.mxu0 %v2310
  %3628 = vmatpush.bf16.msra.mxu0 %v2302
  %3629 = vmatpush.bf16.msra.mxu0 %v2294
  %3630 = vmatpush.bf16.msra.mxu0 %v2286
  %3631 = vmatpush.bf16.msra.mxu0 %v2278
  %3632 = vmatpush.bf16.msra.mxu0 %v2270
  %3633 = vmatpush.bf16.msra.mxu0 %v2262
  %3634 = vmatmul.bf16.gmra.mxu0 %v557
  %v3635 = vpop.f32.mrf.mxu0
  %v3636 = vadd.f32 %v3612, %v3635
  %v3637 = vpop.f32.mrf.mxu0
  %v3638 = vadd.f32 %v3614, %v3637
  %3639 = vmatmul.bf16.gmra.mxu0 %v564
  %v3640 = vpop.f32.mrf.mxu0
  %v3641 = vadd.f32 %v3617, %v3640
  %v3642 = vpop.f32.mrf.mxu0
  %v3643 = vadd.f32 %v3619, %v3642
  %3644 = vmatmul.bf16.gmra.mxu0 %v571
  %v3645 = vpop.f32.mrf.mxu0
  %v3646 = vadd.f32 %v3622, %v3645
  %v3647 = vpop.f32.mrf.mxu0
  %v3648 = vadd.f32 %v3624, %v3647
  %3649 = vdwg.mxu0
  %3650 = vmatpush.bf16.msra.mxu0 %v2382
  %3651 = vmatpush.bf16.msra.mxu0 %v2374
  %3652 = vmatpush.bf16.msra.mxu0 %v2366
  %3653 = vmatpush.bf16.msra.mxu0 %v2358
  %3654 = vmatpush.bf16.msra.mxu0 %v2350
  %3655 = vmatpush.bf16.msra.mxu0 %v2342
  %3656 = vmatpush.bf16.msra.mxu0 %v2334
  %3657 = vmatpush.bf16.msra.mxu0 %v2326
  %3658 = vmatmul.bf16.gmra.mxu0 %v558
  %v3659 = vpop.f32.mrf.mxu0
  %v3660 = vadd.f32 %v3636, %v3659
  %v3661 = vpop.f32.mrf.mxu0
  %v3662 = vadd.f32 %v3638, %v3661
  %3663 = vmatmul.bf16.gmra.mxu0 %v565
  %v3664 = vpop.f32.mrf.mxu0
  %v3665 = vadd.f32 %v3641, %v3664
  %v3666 = vpop.f32.mrf.mxu0
  %v3667 = vadd.f32 %v3643, %v3666
  %3668 = vmatmul.bf16.gmra.mxu0 %v572
  %v3669 = vpop.f32.mrf.mxu0
  %v3670 = vadd.f32 %v3646, %v3669
  %v3671 = vpop.f32.mrf.mxu0
  %v3672 = vadd.f32 %v3648, %v3671
  %3673 = vdwg.mxu0
  %3674 = vmatpush.bf16.msra.mxu0 %v1999
  %3675 = vmatpush.bf16.msra.mxu0 %v1991
  %3676 = vmatpush.bf16.msra.mxu0 %v1983
  %3677 = vmatpush.bf16.msra.mxu0 %v1975
  %3678 = vmatpush.bf16.msra.mxu0 %v1967
  %3679 = vmatpush.bf16.msra.mxu0 %v1959
  %3680 = vmatpush.bf16.msra.mxu0 %v1951
  %3681 = vmatpush.bf16.msra.mxu0 %v1943
  %3682 = vmatmul.bf16.gmra.mxu0 %v552
  %v3683 = vpop.f32.mrf.mxu0
  %v3684 = vadd.f32 0.0, %v3683
  %v3685 = vpop.f32.mrf.mxu0
  %v3686 = vadd.f32 0.0, %v3685
  %3687 = vmatmul.bf16.gmra.mxu0 %v559
  %v3688 = vpop.f32.mrf.mxu0
  %v3689 = vadd.f32 0.0, %v3688
  %v3690 = vpop.f32.mrf.mxu0
  %v3691 = vadd.f32 0.0, %v3690
  %3692 = vmatmul.bf16.gmra.mxu0 %v566
  %v3693 = vpop.f32.mrf.mxu0
  %v3694 = vadd.f32 0.0, %v3693
  %v3695 = vpop.f32.mrf.mxu0
  %v3696 = vadd.f32 0.0, %v3695
  %3697 = vdwg.mxu0
  %3698 = vmatpush.bf16.msra.mxu0 %v2063
  %3699 = vmatpush.bf16.msra.mxu0 %v2055
  %3700 = vmatpush.bf16.msra.mxu0 %v2047
  %3701 = vmatpush.bf16.msra.mxu0 %v2039
  %3702 = vmatpush.bf16.msra.mxu0 %v2031
  %3703 = vmatpush.bf16.msra.mxu0 %v2023
  %3704 = vmatpush.bf16.msra.mxu0 %v2015
  %3705 = vmatpush.bf16.msra.mxu0 %v2007
  %3706 = vmatmul.bf16.gmra.mxu0 %v553
  %v3707 = vpop.f32.mrf.mxu0
  %v3708 = vadd.f32 %v3684, %v3707
  %v3709 = vpop.f32.mrf.mxu0
  %v3710 = vadd.f32 %v3686, %v3709
  %3711 = vmatmul.bf16.gmra.mxu0 %v560
  %v3712 = vpop.f32.mrf.mxu0
  %v3713 = vadd.f32 %v3689, %v3712
  %v3714 = vpop.f32.mrf.mxu0
  %v3715 = vadd.f32 %v3691, %v3714
  %3716 = vmatmul.bf16.gmra.mxu0 %v567
  %v3717 = vpop.f32.mrf.mxu0
  %v3718 = vadd.f32 %v3694, %v3717
  %v3719 = vpop.f32.mrf.mxu0
  %v3720 = vadd.f32 %v3696, %v3719
  %3721 = vdwg.mxu0
  %3722 = vmatpush.bf16.msra.mxu0 %v2127
  %3723 = vmatpush.bf16.msra.mxu0 %v2119
  %3724 = vmatpush.bf16.msra.mxu0 %v2111
  %3725 = vmatpush.bf16.msra.mxu0 %v2103
  %3726 = vmatpush.bf16.msra.mxu0 %v2095
  %3727 = vmatpush.bf16.msra.mxu0 %v2087
  %3728 = vmatpush.bf16.msra.mxu0 %v2079
  %3729 = vmatpush.bf16.msra.mxu0 %v2071
  %3730 = vmatmul.bf16.gmra.mxu0 %v554
  %v3731 = vpop.f32.mrf.mxu0
  %v3732 = vadd.f32 %v3708, %v3731
  %v3733 = vpop.f32.mrf.mxu0
  %v3734 = vadd.f32 %v3710, %v3733
  %3735 = vmatmul.bf16.gmra.mxu0 %v561
  %v3736 = vpop.f32.mrf.mxu0
  %v3737 = vadd.f32 %v3713, %v3736
  %v3738 = vpop.f32.mrf.mxu0
  %v3739 = vadd.f32 %v3715, %v3738
  %3740 = vmatmul.bf16.gmra.mxu0 %v568
  %v3741 = vpop.f32.mrf.mxu0
  %v3742 = vadd.f32 %v3718, %v3741
  %v3743 = vpop.f32.mrf.mxu0
  %v3744 = vadd.f32 %v3720, %v3743
  %3745 = vdwg.mxu0
  %3746 = vmatpush.bf16.msra.mxu0 %v2191
  %3747 = vmatpush.bf16.msra.mxu0 %v2183
  %3748 = vmatpush.bf16.msra.mxu0 %v2175
  %3749 = vmatpush.bf16.msra.mxu0 %v2167
  %3750 = vmatpush.bf16.msra.mxu0 %v2159
  %3751 = vmatpush.bf16.msra.mxu0 %v2151
  %3752 = vmatpush.bf16.msra.mxu0 %v2143
  %3753 = vmatpush.bf16.msra.mxu0 %v2135
  %3754 = vmatmul.bf16.gmra.mxu0 %v555
  %v3755 = vpop.f32.mrf.mxu0
  %v3756 = vadd.f32 %v3732, %v3755
  %v3757 = vpop.f32.mrf.mxu0
  %v3758 = vadd.f32 %v3734, %v3757
  %3759 = vmatmul.bf16.gmra.mxu0 %v562
  %v3760 = vpop.f32.mrf.mxu0
  %v3761 = vadd.f32 %v3737, %v3760
  %v3762 = vpop.f32.mrf.mxu0
  %v3763 = vadd.f32 %v3739, %v3762
  %3764 = vmatmul.bf16.gmra.mxu0 %v569
  %v3765 = vpop.f32.mrf.mxu0
  %v3766 = vadd.f32 %v3742, %v3765
  %v3767 = vpop.f32.mrf.mxu0
  %v3768 = vadd.f32 %v3744, %v3767
  %3769 = vdwg.mxu0
  %3770 = vmatpush.bf16.msra.mxu0 %v2255
  %3771 = vmatpush.bf16.msra.mxu0 %v2247
  %3772 = vmatpush.bf16.msra.mxu0 %v2239
  %3773 = vmatpush.bf16.msra.mxu0 %v2231
  %3774 = vmatpush.bf16.msra.mxu0 %v2223
  %3775 = vmatpush.bf16.msra.mxu0 %v2215
  %3776 = vmatpush.bf16.msra.mxu0 %v2207
  %3777 = vmatpush.bf16.msra.mxu0 %v2199
  %3778 = vmatmul.bf16.gmra.mxu0 %v556
  %v3779 = vpop.f32.mrf.mxu0
  %v3780 = vadd.f32 %v3756, %v3779
  %v3781 = vpop.f32.mrf.mxu0
  %v3782 = vadd.f32 %v3758, %v3781
  %3783 = vmatmul.bf16.gmra.mxu0 %v563
  %v3784 = vpop.f32.mrf.mxu0
  %v3785 = vadd.f32 %v3761, %v3784
  %v3786 = vpop.f32.mrf.mxu0
  %v3787 = vadd.f32 %v3763, %v3786
  %3788 = vmatmul.bf16.gmra.mxu0 %v570
  %v3789 = vpop.f32.mrf.mxu0
  %v3790 = vadd.f32 %v3766, %v3789
  %v3791 = vpop.f32.mrf.mxu0
  %v3792 = vadd.f32 %v3768, %v3791
  %3793 = vdwg.mxu0
  %3794 = vmatpush.bf16.msra.mxu0 %v2319
  %3795 = vmatpush.bf16.msra.mxu0 %v2311
  %3796 = vmatpush.bf16.msra.mxu0 %v2303
  %3797 = vmatpush.bf16.msra.mxu0 %v2295
  %3798 = vmatpush.bf16.msra.mxu0 %v2287
  %3799 = vmatpush.bf16.msra.mxu0 %v2279
  %3800 = vmatpush.bf16.msra.mxu0 %v2271
  %3801 = vmatpush.bf16.msra.mxu0 %v2263
  %3802 = vmatmul.bf16.gmra.mxu0 %v557
  %v3803 = vpop.f32.mrf.mxu0
  %v3804 = vadd.f32 %v3780, %v3803
  %v3805 = vpop.f32.mrf.mxu0
  %v3806 = vadd.f32 %v3782, %v3805
  %3807 = vmatmul.bf16.gmra.mxu0 %v564
  %v3808 = vpop.f32.mrf.mxu0
  %v3809 = vadd.f32 %v3785, %v3808
  %v3810 = vpop.f32.mrf.mxu0
  %v3811 = vadd.f32 %v3787, %v3810
  %3812 = vmatmul.bf16.gmra.mxu0 %v571
  %v3813 = vpop.f32.mrf.mxu0
  %v3814 = vadd.f32 %v3790, %v3813
  %v3815 = vpop.f32.mrf.mxu0
  %v3816 = vadd.f32 %v3792, %v3815
  %3817 = vdwg.mxu0
  %3818 = vmatpush.bf16.msra.mxu0 %v2383
  %3819 = vmatpush.bf16.msra.mxu0 %v2375
  %3820 = vmatpush.bf16.msra.mxu0 %v2367
  %3821 = vmatpush.bf16.msra.mxu0 %v2359
  %3822 = vmatpush.bf16.msra.mxu0 %v2351
  %3823 = vmatpush.bf16.msra.mxu0 %v2343
  %3824 = vmatpush.bf16.msra.mxu0 %v2335
  %3825 = vmatpush.bf16.msra.mxu0 %v2327
  %3826 = vmatmul.bf16.gmra.mxu0 %v558
  %v3827 = vpop.f32.mrf.mxu0
  %v3828 = vadd.f32 %v3804, %v3827
  %v3829 = vpop.f32.mrf.mxu0
  %v3830 = vadd.f32 %v3806, %v3829
  %3831 = vmatmul.bf16.gmra.mxu0 %v565
  %v3832 = vpop.f32.mrf.mxu0
  %v3833 = vadd.f32 %v3809, %v3832
  %v3834 = vpop.f32.mrf.mxu0
  %v3835 = vadd.f32 %v3811, %v3834
  %3836 = vmatmul.bf16.gmra.mxu0 %v572
  %v3837 = vpop.f32.mrf.mxu0
  %v3838 = vadd.f32 %v3814, %v3837
  %v3839 = vpop.f32.mrf.mxu0
  %v3840 = vadd.f32 %v3816, %v3839
  %3841 = vdwg.mxu0
  %3842 = vmatpush.bf16.msra.mxu0 %v2000
  %3843 = vmatpush.bf16.msra.mxu0 %v1992
  %3844 = vmatpush.bf16.msra.mxu0 %v1984
  %3845 = vmatpush.bf16.msra.mxu0 %v1976
  %3846 = vmatpush.bf16.msra.mxu0 %v1968
  %3847 = vmatpush.bf16.msra.mxu0 %v1960
  %3848 = vmatpush.bf16.msra.mxu0 %v1952
  %3849 = vmatpush.bf16.msra.mxu0 %v1944
  %3850 = vmatmul.bf16.gmra.mxu0 %v552
  %v3851 = vpop.f32.mrf.mxu0
  %v3852 = vadd.f32 0.0, %v3851
  %v3853 = vpop.f32.mrf.mxu0
  %v3854 = vadd.f32 0.0, %v3853
  %3855 = vmatmul.bf16.gmra.mxu0 %v559
  %v3856 = vpop.f32.mrf.mxu0
  %v3857 = vadd.f32 0.0, %v3856
  %v3858 = vpop.f32.mrf.mxu0
  %v3859 = vadd.f32 0.0, %v3858
  %3860 = vmatmul.bf16.gmra.mxu0 %v566
  %v3861 = vpop.f32.mrf.mxu0
  %v3862 = vadd.f32 0.0, %v3861
  %v3863 = vpop.f32.mrf.mxu0
  %v3864 = vadd.f32 0.0, %v3863
  %3865 = vdwg.mxu0
  %3866 = vmatpush.bf16.msra.mxu0 %v2064
  %3867 = vmatpush.bf16.msra.mxu0 %v2056
  %3868 = vmatpush.bf16.msra.mxu0 %v2048
  %3869 = vmatpush.bf16.msra.mxu0 %v2040
  %3870 = vmatpush.bf16.msra.mxu0 %v2032
  %3871 = vmatpush.bf16.msra.mxu0 %v2024
  %3872 = vmatpush.bf16.msra.mxu0 %v2016
  %3873 = vmatpush.bf16.msra.mxu0 %v2008
  %3874 = vmatmul.bf16.gmra.mxu0 %v553
  %v3875 = vpop.f32.mrf.mxu0
  %v3876 = vadd.f32 %v3852, %v3875
  %v3877 = vpop.f32.mrf.mxu0
  %v3878 = vadd.f32 %v3854, %v3877
  %3879 = vmatmul.bf16.gmra.mxu0 %v560
  %v3880 = vpop.f32.mrf.mxu0
  %v3881 = vadd.f32 %v3857, %v3880
  %v3882 = vpop.f32.mrf.mxu0
  %v3883 = vadd.f32 %v3859, %v3882
  %3884 = vmatmul.bf16.gmra.mxu0 %v567
  %v3885 = vpop.f32.mrf.mxu0
  %v3886 = vadd.f32 %v3862, %v3885
  %v3887 = vpop.f32.mrf.mxu0
  %v3888 = vadd.f32 %v3864, %v3887
  %3889 = vdwg.mxu0
  %3890 = vmatpush.bf16.msra.mxu0 %v2128
  %3891 = vmatpush.bf16.msra.mxu0 %v2120
  %3892 = vmatpush.bf16.msra.mxu0 %v2112
  %3893 = vmatpush.bf16.msra.mxu0 %v2104
  %3894 = vmatpush.bf16.msra.mxu0 %v2096
  %3895 = vmatpush.bf16.msra.mxu0 %v2088
  %3896 = vmatpush.bf16.msra.mxu0 %v2080
  %3897 = vmatpush.bf16.msra.mxu0 %v2072
  %3898 = vmatmul.bf16.gmra.mxu0 %v554
  %v3899 = vpop.f32.mrf.mxu0
  %v3900 = vadd.f32 %v3876, %v3899
  %v3901 = vpop.f32.mrf.mxu0
  %v3902 = vadd.f32 %v3878, %v3901
  %3903 = vmatmul.bf16.gmra.mxu0 %v561
  %v3904 = vpop.f32.mrf.mxu0
  %v3905 = vadd.f32 %v3881, %v3904
  %v3906 = vpop.f32.mrf.mxu0
  %v3907 = vadd.f32 %v3883, %v3906
  %3908 = vmatmul.bf16.gmra.mxu0 %v568
  %v3909 = vpop.f32.mrf.mxu0
  %v3910 = vadd.f32 %v3886, %v3909
  %v3911 = vpop.f32.mrf.mxu0
  %v3912 = vadd.f32 %v3888, %v3911
  %3913 = vdwg.mxu0
  %3914 = vmatpush.bf16.msra.mxu0 %v2192
  %3915 = vmatpush.bf16.msra.mxu0 %v2184
  %3916 = vmatpush.bf16.msra.mxu0 %v2176
  %3917 = vmatpush.bf16.msra.mxu0 %v2168
  %3918 = vmatpush.bf16.msra.mxu0 %v2160
  %3919 = vmatpush.bf16.msra.mxu0 %v2152
  %3920 = vmatpush.bf16.msra.mxu0 %v2144
  %3921 = vmatpush.bf16.msra.mxu0 %v2136
  %3922 = vmatmul.bf16.gmra.mxu0 %v555
  %v3923 = vpop.f32.mrf.mxu0
  %v3924 = vadd.f32 %v3900, %v3923
  %v3925 = vpop.f32.mrf.mxu0
  %v3926 = vadd.f32 %v3902, %v3925
  %3927 = vmatmul.bf16.gmra.mxu0 %v562
  %v3928 = vpop.f32.mrf.mxu0
  %v3929 = vadd.f32 %v3905, %v3928
  %v3930 = vpop.f32.mrf.mxu0
  %v3931 = vadd.f32 %v3907, %v3930
  %3932 = vmatmul.bf16.gmra.mxu0 %v569
  %v3933 = vpop.f32.mrf.mxu0
  %v3934 = vadd.f32 %v3910, %v3933
  %v3935 = vpop.f32.mrf.mxu0
  %v3936 = vadd.f32 %v3912, %v3935
  %3937 = vdwg.mxu0
  %3938 = vmatpush.bf16.msra.mxu0 %v2256
  %3939 = vmatpush.bf16.msra.mxu0 %v2248
  %3940 = vmatpush.bf16.msra.mxu0 %v2240
  %3941 = vmatpush.bf16.msra.mxu0 %v2232
  %3942 = vmatpush.bf16.msra.mxu0 %v2224
  %3943 = vmatpush.bf16.msra.mxu0 %v2216
  %3944 = vmatpush.bf16.msra.mxu0 %v2208
  %3945 = vmatpush.bf16.msra.mxu0 %v2200
  %3946 = vmatmul.bf16.gmra.mxu0 %v556
  %v3947 = vpop.f32.mrf.mxu0
  %v3948 = vadd.f32 %v3924, %v3947
  %v3949 = vpop.f32.mrf.mxu0
  %v3950 = vadd.f32 %v3926, %v3949
  %3951 = vmatmul.bf16.gmra.mxu0 %v563
  %v3952 = vpop.f32.mrf.mxu0
  %v3953 = vadd.f32 %v3929, %v3952
  %v3954 = vpop.f32.mrf.mxu0
  %v3955 = vadd.f32 %v3931, %v3954
  %3956 = vmatmul.bf16.gmra.mxu0 %v570
  %v3957 = vpop.f32.mrf.mxu0
  %v3958 = vadd.f32 %v3934, %v3957
  %v3959 = vpop.f32.mrf.mxu0
  %v3960 = vadd.f32 %v3936, %v3959
  %3961 = vdwg.mxu0
  %3962 = vmatpush.bf16.msra.mxu0 %v2320
  %3963 = vmatpush.bf16.msra.mxu0 %v2312
  %3964 = vmatpush.bf16.msra.mxu0 %v2304
  %3965 = vmatpush.bf16.msra.mxu0 %v2296
  %3966 = vmatpush.bf16.msra.mxu0 %v2288
  %3967 = vmatpush.bf16.msra.mxu0 %v2280
  %3968 = vmatpush.bf16.msra.mxu0 %v2272
  %3969 = vmatpush.bf16.msra.mxu0 %v2264
  %3970 = vmatmul.bf16.gmra.mxu0 %v557
  %v3971 = vpop.f32.mrf.mxu0
  %v3972 = vadd.f32 %v3948, %v3971
  %v3973 = vpop.f32.mrf.mxu0
  %v3974 = vadd.f32 %v3950, %v3973
  %3975 = vmatmul.bf16.gmra.mxu0 %v564
  %v3976 = vpop.f32.mrf.mxu0
  %v3977 = vadd.f32 %v3953, %v3976
  %v3978 = vpop.f32.mrf.mxu0
  %v3979 = vadd.f32 %v3955, %v3978
  %3980 = vmatmul.bf16.gmra.mxu0 %v571
  %v3981 = vpop.f32.mrf.mxu0
  %v3982 = vadd.f32 %v3958, %v3981
  %v3983 = vpop.f32.mrf.mxu0
  %v3984 = vadd.f32 %v3960, %v3983
  %3985 = vdwg.mxu0
  %3986 = vmatpush.bf16.msra.mxu0 %v2384
  %3987 = vmatpush.bf16.msra.mxu0 %v2376
  %3988 = vmatpush.bf16.msra.mxu0 %v2368
  %3989 = vmatpush.bf16.msra.mxu0 %v2360
  %3990 = vmatpush.bf16.msra.mxu0 %v2352
  %3991 = vmatpush.bf16.msra.mxu0 %v2344
  %3992 = vmatpush.bf16.msra.mxu0 %v2336
  %3993 = vmatpush.bf16.msra.mxu0 %v2328
  %3994 = vmatmul.bf16.gmra.mxu0 %v558
  %v3995 = vpop.f32.mrf.mxu0
  %v3996 = vadd.f32 %v3972, %v3995
  %v3997 = vpop.f32.mrf.mxu0
  %v3998 = vadd.f32 %v3974, %v3997
  %3999 = vmatmul.bf16.gmra.mxu0 %v565
  %v4000 = vpop.f32.mrf.mxu0
  %v4001 = vadd.f32 %v3977, %v4000
  %v4002 = vpop.f32.mrf.mxu0
  %v4003 = vadd.f32 %v3979, %v4002
  %4004 = vmatmul.bf16.gmra.mxu0 %v572
  %v4005 = vpop.f32.mrf.mxu0
  %v4006 = vadd.f32 %v3982, %v4005
  %v4007 = vpop.f32.mrf.mxu0
  %v4008 = vadd.f32 %v3984, %v4007
  %4009 = vdwg.mxu0
  %4010 = vmatpush.bf16.msra.mxu0 %v2001
  %4011 = vmatpush.bf16.msra.mxu0 %v1993
  %4012 = vmatpush.bf16.msra.mxu0 %v1985
  %4013 = vmatpush.bf16.msra.mxu0 %v1977
  %4014 = vmatpush.bf16.msra.mxu0 %v1969
  %4015 = vmatpush.bf16.msra.mxu0 %v1961
  %4016 = vmatpush.bf16.msra.mxu0 %v1953
  %4017 = vmatpush.bf16.msra.mxu0 %v1945
  %4018 = vmatmul.bf16.gmra.mxu0 %v552
  %v4019 = vpop.f32.mrf.mxu0
  %v4020 = vadd.f32 0.0, %v4019
  %v4021 = vpop.f32.mrf.mxu0
  %v4022 = vadd.f32 0.0, %v4021
  %4023 = vmatmul.bf16.gmra.mxu0 %v559
  %v4024 = vpop.f32.mrf.mxu0
  %v4025 = vadd.f32 0.0, %v4024
  %v4026 = vpop.f32.mrf.mxu0
  %v4027 = vadd.f32 0.0, %v4026
  %4028 = vmatmul.bf16.gmra.mxu0 %v566
  %v4029 = vpop.f32.mrf.mxu0
  %v4030 = vadd.f32 0.0, %v4029
  %v4031 = vpop.f32.mrf.mxu0
  %v4032 = vadd.f32 0.0, %v4031
  %4033 = vdwg.mxu0
  %4034 = vmatpush.bf16.msra.mxu0 %v2065
  %4035 = vmatpush.bf16.msra.mxu0 %v2057
  %4036 = vmatpush.bf16.msra.mxu0 %v2049
  %4037 = vmatpush.bf16.msra.mxu0 %v2041
  %4038 = vmatpush.bf16.msra.mxu0 %v2033
  %4039 = vmatpush.bf16.msra.mxu0 %v2025
  %4040 = vmatpush.bf16.msra.mxu0 %v2017
  %4041 = vmatpush.bf16.msra.mxu0 %v2009
  %4042 = vmatmul.bf16.gmra.mxu0 %v553
  %v4043 = vpop.f32.mrf.mxu0
  %v4044 = vadd.f32 %v4020, %v4043
  %v4045 = vpop.f32.mrf.mxu0
  %v4046 = vadd.f32 %v4022, %v4045
  %4047 = vmatmul.bf16.gmra.mxu0 %v560
  %v4048 = vpop.f32.mrf.mxu0
  %v4049 = vadd.f32 %v4025, %v4048
  %v4050 = vpop.f32.mrf.mxu0
  %v4051 = vadd.f32 %v4027, %v4050
  %4052 = vmatmul.bf16.gmra.mxu0 %v567
  %v4053 = vpop.f32.mrf.mxu0
  %v4054 = vadd.f32 %v4030, %v4053
  %v4055 = vpop.f32.mrf.mxu0
  %v4056 = vadd.f32 %v4032, %v4055
  %4057 = vdwg.mxu0
  %4058 = vmatpush.bf16.msra.mxu0 %v2129
  %4059 = vmatpush.bf16.msra.mxu0 %v2121
  %4060 = vmatpush.bf16.msra.mxu0 %v2113
  %4061 = vmatpush.bf16.msra.mxu0 %v2105
  %4062 = vmatpush.bf16.msra.mxu0 %v2097
  %4063 = vmatpush.bf16.msra.mxu0 %v2089
  %4064 = vmatpush.bf16.msra.mxu0 %v2081
  %4065 = vmatpush.bf16.msra.mxu0 %v2073
  %4066 = vmatmul.bf16.gmra.mxu0 %v554
  %v4067 = vpop.f32.mrf.mxu0
  %v4068 = vadd.f32 %v4044, %v4067
  %v4069 = vpop.f32.mrf.mxu0
  %v4070 = vadd.f32 %v4046, %v4069
  %4071 = vmatmul.bf16.gmra.mxu0 %v561
  %v4072 = vpop.f32.mrf.mxu0
  %v4073 = vadd.f32 %v4049, %v4072
  %v4074 = vpop.f32.mrf.mxu0
  %v4075 = vadd.f32 %v4051, %v4074
  %4076 = vmatmul.bf16.gmra.mxu0 %v568
  %v4077 = vpop.f32.mrf.mxu0
  %v4078 = vadd.f32 %v4054, %v4077
  %v4079 = vpop.f32.mrf.mxu0
  %v4080 = vadd.f32 %v4056, %v4079
  %4081 = vdwg.mxu0
  %4082 = vmatpush.bf16.msra.mxu0 %v2193
  %4083 = vmatpush.bf16.msra.mxu0 %v2185
  %4084 = vmatpush.bf16.msra.mxu0 %v2177
  %4085 = vmatpush.bf16.msra.mxu0 %v2169
  %4086 = vmatpush.bf16.msra.mxu0 %v2161
  %4087 = vmatpush.bf16.msra.mxu0 %v2153
  %4088 = vmatpush.bf16.msra.mxu0 %v2145
  %4089 = vmatpush.bf16.msra.mxu0 %v2137
  %4090 = vmatmul.bf16.gmra.mxu0 %v555
  %v4091 = vpop.f32.mrf.mxu0
  %v4092 = vadd.f32 %v4068, %v4091
  %v4093 = vpop.f32.mrf.mxu0
  %v4094 = vadd.f32 %v4070, %v4093
  %4095 = vmatmul.bf16.gmra.mxu0 %v562
  %v4096 = vpop.f32.mrf.mxu0
  %v4097 = vadd.f32 %v4073, %v4096
  %v4098 = vpop.f32.mrf.mxu0
  %v4099 = vadd.f32 %v4075, %v4098
  %4100 = vmatmul.bf16.gmra.mxu0 %v569
  %v4101 = vpop.f32.mrf.mxu0
  %v4102 = vadd.f32 %v4078, %v4101
  %v4103 = vpop.f32.mrf.mxu0
  %v4104 = vadd.f32 %v4080, %v4103
  %4105 = vdwg.mxu0
  %4106 = vmatpush.bf16.msra.mxu0 %v2257
  %4107 = vmatpush.bf16.msra.mxu0 %v2249
  %4108 = vmatpush.bf16.msra.mxu0 %v2241
  %4109 = vmatpush.bf16.msra.mxu0 %v2233
  %4110 = vmatpush.bf16.msra.mxu0 %v2225
  %4111 = vmatpush.bf16.msra.mxu0 %v2217
  %4112 = vmatpush.bf16.msra.mxu0 %v2209
  %4113 = vmatpush.bf16.msra.mxu0 %v2201
  %4114 = vmatmul.bf16.gmra.mxu0 %v556
  %v4115 = vpop.f32.mrf.mxu0
  %v4116 = vadd.f32 %v4092, %v4115
  %v4117 = vpop.f32.mrf.mxu0
  %v4118 = vadd.f32 %v4094, %v4117
  %4119 = vmatmul.bf16.gmra.mxu0 %v563
  %v4120 = vpop.f32.mrf.mxu0
  %v4121 = vadd.f32 %v4097, %v4120
  %v4122 = vpop.f32.mrf.mxu0
  %v4123 = vadd.f32 %v4099, %v4122
  %4124 = vmatmul.bf16.gmra.mxu0 %v570
  %v4125 = vpop.f32.mrf.mxu0
  %v4126 = vadd.f32 %v4102, %v4125
  %v4127 = vpop.f32.mrf.mxu0
  %v4128 = vadd.f32 %v4104, %v4127
  %4129 = vdwg.mxu0
  %4130 = vmatpush.bf16.msra.mxu0 %v2321
  %4131 = vmatpush.bf16.msra.mxu0 %v2313
  %4132 = vmatpush.bf16.msra.mxu0 %v2305
  %4133 = vmatpush.bf16.msra.mxu0 %v2297
  %4134 = vmatpush.bf16.msra.mxu0 %v2289
  %4135 = vmatpush.bf16.msra.mxu0 %v2281
  %4136 = vmatpush.bf16.msra.mxu0 %v2273
  %4137 = vmatpush.bf16.msra.mxu0 %v2265
  %4138 = vmatmul.bf16.gmra.mxu0 %v557
  %v4139 = vpop.f32.mrf.mxu0
  %v4140 = vadd.f32 %v4116, %v4139
  %v4141 = vpop.f32.mrf.mxu0
  %v4142 = vadd.f32 %v4118, %v4141
  %4143 = vmatmul.bf16.gmra.mxu0 %v564
  %v4144 = vpop.f32.mrf.mxu0
  %v4145 = vadd.f32 %v4121, %v4144
  %v4146 = vpop.f32.mrf.mxu0
  %v4147 = vadd.f32 %v4123, %v4146
  %4148 = vmatmul.bf16.gmra.mxu0 %v571
  %v4149 = vpop.f32.mrf.mxu0
  %v4150 = vadd.f32 %v4126, %v4149
  %v4151 = vpop.f32.mrf.mxu0
  %v4152 = vadd.f32 %v4128, %v4151
  %4153 = vdwg.mxu0
  %4154 = vmatpush.bf16.msra.mxu0 %v2385
  %4155 = vmatpush.bf16.msra.mxu0 %v2377
  %4156 = vmatpush.bf16.msra.mxu0 %v2369
  %4157 = vmatpush.bf16.msra.mxu0 %v2361
  %4158 = vmatpush.bf16.msra.mxu0 %v2353
  %4159 = vmatpush.bf16.msra.mxu0 %v2345
  %4160 = vmatpush.bf16.msra.mxu0 %v2337
  %4161 = vmatpush.bf16.msra.mxu0 %v2329
  %4162 = vmatmul.bf16.gmra.mxu0 %v558
  %v4163 = vpop.f32.mrf.mxu0
  %v4164 = vadd.f32 %v4140, %v4163
  %v4165 = vpop.f32.mrf.mxu0
  %v4166 = vadd.f32 %v4142, %v4165
  %4167 = vmatmul.bf16.gmra.mxu0 %v565
  %v4168 = vpop.f32.mrf.mxu0
  %v4169 = vadd.f32 %v4145, %v4168
  %v4170 = vpop.f32.mrf.mxu0
  %v4171 = vadd.f32 %v4147, %v4170
  %4172 = vmatmul.bf16.gmra.mxu0 %v572
  %v4173 = vpop.f32.mrf.mxu0
  %v4174 = vadd.f32 %v4150, %v4173
  %v4175 = vpop.f32.mrf.mxu0
  %v4176 = vadd.f32 %v4152, %v4175
  %4177 = vdwg.mxu0
  %v4178 = vmul.f32 %v2988, %v2988
  %v4179 = vmul.f32 %v3156, %v3156
  %v4180 = vmul.f32 %v3324, %v3324
  %v4181 = vmul.f32 %v3492, %v3492
  %v4182 = vmul.f32 %v2990, %v2990
  %v4183 = vmul.f32 %v3158, %v3158
  %v4184 = vmul.f32 %v3326, %v3326
  %v4185 = vmul.f32 %v3494, %v3494
  %v4186 = vmul.f32 %v2993, %v2993
  %v4187 = vmul.f32 %v3161, %v3161
  %v4188 = vmul.f32 %v3329, %v3329
  %v4189 = vmul.f32 %v3497, %v3497
  %v4190 = vmul.f32 %v2995, %v2995
  %v4191 = vmul.f32 %v3163, %v3163
  %v4192 = vmul.f32 %v3331, %v3331
  %v4193 = vmul.f32 %v3499, %v3499
  %v4194 = vmul.f32 %v2998, %v2998
  %v4195 = vmul.f32 %v3166, %v3166
  %v4196 = vmul.f32 %v3334, %v3334
  %v4197 = vmul.f32 %v3502, %v3502
  %v4198 = vmul.f32 %v3000, %v3000
  %v4199 = vmul.f32 %v3168, %v3168
  %v4200 = vmul.f32 %v3336, %v3336
  %v4201 = vmul.f32 %v3504, %v3504
  %v4202 = vmul.f32 %v3660, %v3660
  %v4203 = vmul.f32 %v3828, %v3828
  %v4204 = vmul.f32 %v3996, %v3996
  %v4205 = vmul.f32 %v4164, %v4164
  %v4206 = vmul.f32 %v3662, %v3662
  %v4207 = vmul.f32 %v3830, %v3830
  %v4208 = vmul.f32 %v3998, %v3998
  %v4209 = vmul.f32 %v4166, %v4166
  %v4210 = vmul.f32 %v3665, %v3665
  %v4211 = vmul.f32 %v3833, %v3833
  %v4212 = vmul.f32 %v4001, %v4001
  %v4213 = vmul.f32 %v4169, %v4169
  %v4214 = vmul.f32 %v3667, %v3667
  %v4215 = vmul.f32 %v3835, %v3835
  %v4216 = vmul.f32 %v4003, %v4003
  %v4217 = vmul.f32 %v4171, %v4171
  %v4218 = vmul.f32 %v3670, %v3670
  %v4219 = vmul.f32 %v3838, %v3838
  %v4220 = vmul.f32 %v4006, %v4006
  %v4221 = vmul.f32 %v4174, %v4174
  %v4222 = vmul.f32 %v3672, %v3672
  %v4223 = vmul.f32 %v3840, %v3840
  %v4224 = vmul.f32 %v4008, %v4008
  %v4225 = vmul.f32 %v4176, %v4176
  %v4226 = vadd.f32 %v4178, %v4202
  %v4227 = vadd.f32 %v4179, %v4203
  %v4228 = vadd.f32 %v4180, %v4204
  %v4229 = vadd.f32 %v4181, %v4205
  %v4230 = vadd.f32 %v4182, %v4206
  %v4231 = vadd.f32 %v4183, %v4207
  %v4232 = vadd.f32 %v4184, %v4208
  %v4233 = vadd.f32 %v4185, %v4209
  %v4234 = vadd.f32 %v4186, %v4210
  %v4235 = vadd.f32 %v4187, %v4211
  %v4236 = vadd.f32 %v4188, %v4212
  %v4237 = vadd.f32 %v4189, %v4213
  %v4238 = vadd.f32 %v4190, %v4214
  %v4239 = vadd.f32 %v4191, %v4215
  %v4240 = vadd.f32 %v4192, %v4216
  %v4241 = vadd.f32 %v4193, %v4217
  %v4242 = vadd.f32 %v4194, %v4218
  %v4243 = vadd.f32 %v4195, %v4219
  %v4244 = vadd.f32 %v4196, %v4220
  %v4245 = vadd.f32 %v4197, %v4221
  %v4246 = vadd.f32 %v4198, %v4222
  %v4247 = vadd.f32 %v4199, %v4223
  %v4248 = vadd.f32 %v4200, %v4224
  %v4249 = vadd.f32 %v4201, %v4225
  %v4250 = vld [vmem:[%s2] sm:$0xff]
  %v4251 = vld [vmem:[%s2 + $0x8] sm:$0xff]
  %v4252 = vld [vmem:[%s2 + $0x10] sm:$0xff]
  %v4253 = vld [vmem:[%s2 + $0x18] sm:$0xff]
  %v4254 = vld [vmem:[%s2 + $0x20] sm:$0xff]
  %v4255 = vld [vmem:[%s2 + $0x28] sm:$0xff]
  %v4256 = vld [vmem:[%s2 + $0x30] sm:$0xff]
  %v4257 = vld [vmem:[%s2 + $0x38] sm:$0xff]
  %v4258 = vld [vmem:[%s2 + $0x40] sm:$0xff]
  %v4259 = vld [vmem:[%s2 + $0x48] sm:$0xff]
  %v4260 = vld [vmem:[%s2 + $0x50] sm:$0xff]
  %v4261 = vld [vmem:[%s2 + $0x58] sm:$0xff]
  %v4262 = vld [vmem:[%s2 + $0x60] sm:$0xff]
  %v4263 = vld [vmem:[%s2 + $0x68] sm:$0xff]
  %v4264 = vld [vmem:[%s2 + $0x70] sm:$0xff]
  %v4265 = vld [vmem:[%s2 + $0x78] sm:$0xff]
  %v4266 = vld [vmem:[%s2 + $0x80] sm:$0xff]
  %v4267 = vld [vmem:[%s2 + $0x88] sm:$0xff]
  %v4268 = vld [vmem:[%s2 + $0x90] sm:$0xff]
  %v4269 = vld [vmem:[%s2 + $0x98] sm:$0xff]
  %v4270 = vld [vmem:[%s2 + $0xa0] sm:$0xff]
  %v4271 = vld [vmem:[%s2 + $0xa8] sm:$0xff]
  %v4272 = vld [vmem:[%s2 + $0xb0] sm:$0xff]
  %v4273 = vld [vmem:[%s2 + $0xb8] sm:$0xff]
  %v4274 = vld [vmem:[%s2 + $0xc0] sm:$0xff]
  %v4275 = vld [vmem:[%s2 + $0xc8] sm:$0xff]
  %v4276 = vld [vmem:[%s2 + $0xd0] sm:$0xff]
  %v4277 = vld [vmem:[%s2 + $0xd8] sm:$0xff]
  %v4278 = vld [vmem:[%s2 + $0xe0] sm:$0xff]
  %v4279 = vld [vmem:[%s2 + $0xe8] sm:$0xff]
  %v4280 = vld [vmem:[%s2 + $0xf0] sm:$0xff]
  %v4281 = vld [vmem:[%s2 + $0xf8] sm:$0xff]
  %v4282 = vld [vmem:[%s2 + $0x100] sm:$0xff]
  %v4283 = vld [vmem:[%s2 + $0x108] sm:$0xff]
  %v4284 = vld [vmem:[%s2 + $0x110] sm:$0xff]
  %v4285 = vld [vmem:[%s2 + $0x118] sm:$0xff]
  %v4286 = vld [vmem:[%s2 + $0x120] sm:$0xff]
  %v4287 = vld [vmem:[%s2 + $0x128] sm:$0xff]
  %v4288 = vld [vmem:[%s2 + $0x130] sm:$0xff]
  %v4289 = vld [vmem:[%s2 + $0x138] sm:$0xff]
  %v4290 = vld [vmem:[%s2 + $0x140] sm:$0xff]
  %v4291 = vld [vmem:[%s2 + $0x148] sm:$0xff]
  %v4292 = vld [vmem:[%s2 + $0x150] sm:$0xff]
  %v4293 = vld [vmem:[%s2 + $0x158] sm:$0xff]
  %v4294 = vld [vmem:[%s2 + $0x160] sm:$0xff]
  %v4295 = vld [vmem:[%s2 + $0x168] sm:$0xff]
  %v4296 = vld [vmem:[%s2 + $0x170] sm:$0xff]
  %v4297 = vld [vmem:[%s2 + $0x178] sm:$0xff]
  %v4298 = vld [vmem:[%s2 + $0x180] sm:$0xff]
  %v4299 = vld [vmem:[%s2 + $0x188] sm:$0xff]
  %v4300 = vld [vmem:[%s2 + $0x190] sm:$0xff]
  %v4301 = vld [vmem:[%s2 + $0x198] sm:$0xff]
  %v4302 = vld [vmem:[%s2 + $0x1a0] sm:$0xff]
  %v4303 = vld [vmem:[%s2 + $0x1a8] sm:$0xff]
  %v4304 = vld [vmem:[%s2 + $0x1b0] sm:$0xff]
  %v4305 = vld [vmem:[%s2 + $0x1b8] sm:$0xff]
  %v4306 = vld [vmem:[%s2 + $0x1c0] sm:$0xff]
  %v4307 = vld [vmem:[%s2 + $0x1c8] sm:$0xff]
  %v4308 = vld [vmem:[%s2 + $0x1d0] sm:$0xff]
  %v4309 = vld [vmem:[%s2 + $0x1d8] sm:$0xff]
  %v4310 = vld [vmem:[%s2 + $0x1e0] sm:$0xff]
  %v4311 = vld [vmem:[%s2 + $0x1e8] sm:$0xff]
  %v4312 = vld [vmem:[%s2 + $0x1f0] sm:$0xff]
  %v4313 = vld [vmem:[%s2 + $0x1f8] sm:$0xff]
  %4314 = vmatpush.msra.mxu0 %v4265
  %4315 = vmatpush.msra.mxu0 %v4264
  %4316 = vmatpush.msra.mxu0 %v4263
  %4317 = vmatpush.msra.mxu0 %v4262
  %4318 = vmatpush.msra.mxu0 %v4261
  %4319 = vmatpush.msra.mxu0 %v4260
  %4320 = vmatpush.msra.mxu0 %v4259
  %4321 = vmatpush.msra.mxu0 %v4258
  %4322 = vmatpush.msra.mxu0 %v4257
  %4323 = vmatpush.msra.mxu0 %v4256
  %4324 = vmatpush.msra.mxu0 %v4255
  %4325 = vmatpush.msra.mxu0 %v4254
  %4326 = vmatpush.msra.mxu0 %v4253
  %4327 = vmatpush.msra.mxu0 %v4252
  %4328 = vmatpush.msra.mxu0 %v4251
  %4329 = vmatpush.msra.mxu0 %v4250
  %4330 = vmatmul.f32.gmra.mxu0 %v4226
  %v4331 = vpop.f32.mrf.mxu0
  %v4332 = vadd.f32 1e-05, %v4331
  %4333 = vmatmul.f32.gmra.mxu0 %v4230
  %v4334 = vpop.f32.mrf.mxu0
  %v4335 = vadd.f32 1e-05, %v4334
  %4336 = vmatmul.f32.gmra.mxu0 %v4234
  %v4337 = vpop.f32.mrf.mxu0
  %v4338 = vadd.f32 1e-05, %v4337
  %4339 = vmatmul.f32.gmra.mxu0 %v4238
  %v4340 = vpop.f32.mrf.mxu0
  %v4341 = vadd.f32 1e-05, %v4340
  %4342 = vmatmul.f32.gmra.mxu0 %v4242
  %v4343 = vpop.f32.mrf.mxu0
  %v4344 = vadd.f32 1e-05, %v4343
  %4345 = vmatmul.f32.gmra.mxu0 %v4246
  %v4346 = vpop.f32.mrf.mxu0
  %v4347 = vadd.f32 1e-05, %v4346
  %4348 = vdwg.mxu0
  %4349 = vmatpush.msra.mxu0 %v4281
  %4350 = vmatpush.msra.mxu0 %v4280
  %4351 = vmatpush.msra.mxu0 %v4279
  %4352 = vmatpush.msra.mxu0 %v4278
  %4353 = vmatpush.msra.mxu0 %v4277
  %4354 = vmatpush.msra.mxu0 %v4276
  %4355 = vmatpush.msra.mxu0 %v4275
  %4356 = vmatpush.msra.mxu0 %v4274
  %4357 = vmatpush.msra.mxu0 %v4273
  %4358 = vmatpush.msra.mxu0 %v4272
  %4359 = vmatpush.msra.mxu0 %v4271
  %4360 = vmatpush.msra.mxu0 %v4270
  %4361 = vmatpush.msra.mxu0 %v4269
  %4362 = vmatpush.msra.mxu0 %v4268
  %4363 = vmatpush.msra.mxu0 %v4267
  %4364 = vmatpush.msra.mxu0 %v4266
  %4365 = vmatmul.f32.gmra.mxu0 %v4227
  %v4366 = vpop.f32.mrf.mxu0
  %v4367 = vadd.f32 %v4332, %v4366
  %4368 = vmatmul.f32.gmra.mxu0 %v4231
  %v4369 = vpop.f32.mrf.mxu0
  %v4370 = vadd.f32 %v4335, %v4369
  %4371 = vmatmul.f32.gmra.mxu0 %v4235
  %v4372 = vpop.f32.mrf.mxu0
  %v4373 = vadd.f32 %v4338, %v4372
  %4374 = vmatmul.f32.gmra.mxu0 %v4239
  %v4375 = vpop.f32.mrf.mxu0
  %v4376 = vadd.f32 %v4341, %v4375
  %4377 = vmatmul.f32.gmra.mxu0 %v4243
  %v4378 = vpop.f32.mrf.mxu0
  %v4379 = vadd.f32 %v4344, %v4378
  %4380 = vmatmul.f32.gmra.mxu0 %v4247
  %v4381 = vpop.f32.mrf.mxu0
  %v4382 = vadd.f32 %v4347, %v4381
  %4383 = vdwg.mxu0
  %4384 = vmatpush.msra.mxu0 %v4297
  %4385 = vmatpush.msra.mxu0 %v4296
  %4386 = vmatpush.msra.mxu0 %v4295
  %4387 = vmatpush.msra.mxu0 %v4294
  %4388 = vmatpush.msra.mxu0 %v4293
  %4389 = vmatpush.msra.mxu0 %v4292
  %4390 = vmatpush.msra.mxu0 %v4291
  %4391 = vmatpush.msra.mxu0 %v4290
  %4392 = vmatpush.msra.mxu0 %v4289
  %4393 = vmatpush.msra.mxu0 %v4288
  %4394 = vmatpush.msra.mxu0 %v4287
  %4395 = vmatpush.msra.mxu0 %v4286
  %4396 = vmatpush.msra.mxu0 %v4285
  %4397 = vmatpush.msra.mxu0 %v4284
  %4398 = vmatpush.msra.mxu0 %v4283
  %4399 = vmatpush.msra.mxu0 %v4282
  %4400 = vmatmul.f32.gmra.mxu0 %v4228
  %v4401 = vpop.f32.mrf.mxu0
  %v4402 = vadd.f32 %v4367, %v4401
  %4403 = vmatmul.f32.gmra.mxu0 %v4232
  %v4404 = vpop.f32.mrf.mxu0
  %v4405 = vadd.f32 %v4370, %v4404
  %4406 = vmatmul.f32.gmra.mxu0 %v4236
  %v4407 = vpop.f32.mrf.mxu0
  %v4408 = vadd.f32 %v4373, %v4407
  %4409 = vmatmul.f32.gmra.mxu0 %v4240
  %v4410 = vpop.f32.mrf.mxu0
  %v4411 = vadd.f32 %v4376, %v4410
  %4412 = vmatmul.f32.gmra.mxu0 %v4244
  %v4413 = vpop.f32.mrf.mxu0
  %v4414 = vadd.f32 %v4379, %v4413
  %4415 = vmatmul.f32.gmra.mxu0 %v4248
  %v4416 = vpop.f32.mrf.mxu0
  %v4417 = vadd.f32 %v4382, %v4416
  %4418 = vdwg.mxu0
  %4419 = vmatpush.msra.mxu0 %v4313
  %4420 = vmatpush.msra.mxu0 %v4312
  %4421 = vmatpush.msra.mxu0 %v4311
  %4422 = vmatpush.msra.mxu0 %v4310
  %4423 = vmatpush.msra.mxu0 %v4309
  %4424 = vmatpush.msra.mxu0 %v4308
  %4425 = vmatpush.msra.mxu0 %v4307
  %4426 = vmatpush.msra.mxu0 %v4306
  %4427 = vmatpush.msra.mxu0 %v4305
  %4428 = vmatpush.msra.mxu0 %v4304
  %4429 = vmatpush.msra.mxu0 %v4303
  %4430 = vmatpush.msra.mxu0 %v4302
  %4431 = vmatpush.msra.mxu0 %v4301
  %4432 = vmatpush.msra.mxu0 %v4300
  %4433 = vmatpush.msra.mxu0 %v4299
  %4434 = vmatpush.msra.mxu0 %v4298
  %4435 = vmatmul.f32.gmra.mxu0 %v4229
  %v4436 = vpop.f32.mrf.mxu0
  %v4437 = vadd.f32 %v4402, %v4436
  %4438 = vmatmul.f32.gmra.mxu0 %v4233
  %v4439 = vpop.f32.mrf.mxu0
  %v4440 = vadd.f32 %v4405, %v4439
  %4441 = vmatmul.f32.gmra.mxu0 %v4237
  %v4442 = vpop.f32.mrf.mxu0
  %v4443 = vadd.f32 %v4408, %v4442
  %4444 = vmatmul.f32.gmra.mxu0 %v4241
  %v4445 = vpop.f32.mrf.mxu0
  %v4446 = vadd.f32 %v4411, %v4445
  %4447 = vmatmul.f32.gmra.mxu0 %v4245
  %v4448 = vpop.f32.mrf.mxu0
  %v4449 = vadd.f32 %v4414, %v4448
  %4450 = vmatmul.f32.gmra.mxu0 %v4249
  %v4451 = vpop.f32.mrf.mxu0
  %v4452 = vadd.f32 %v4417, %v4451
  %4453 = vdwg.mxu0
  %v4454 = vlog2.pop %v4437
  %v4455 = vmul.f32 %v4454, 0.6931472
  %v4456 = vlog2.pop %v4440
  %v4457 = vmul.f32 %v4456, 0.6931472
  %v4458 = vlog2.pop %v4443
  %v4459 = vmul.f32 %v4458, 0.6931472
  %v4460 = vlog2.pop %v4446
  %v4461 = vmul.f32 %v4460, 0.6931472
  %v4462 = vlog2.pop %v4449
  %v4463 = vmul.f32 %v4462, 0.6931472
  %v4464 = vlog2.pop %v4452
  %v4465 = vmul.f32 %v4464, 0.6931472
  %v4466 = vadd.f32 %v4455, 4.5
  %v4467 = vadd.f32 %v4457, 4.5
  %v4468 = vadd.f32 %v4459, 4.5
  %v4469 = vadd.f32 %v4461, 4.5
  %v4470 = vadd.f32 %v4463, 4.5
  %v4471 = vadd.f32 %v4465, 4.5
  %v4472 = vmul.f32 %v4466, 0.2
  %v4473 = vmul.f32 %v4467, 0.2
  %v4474 = vmul.f32 %v4468, 0.2
  %v4475 = vmul.f32 %v4469, 0.2
  %v4476 = vmul.f32 %v4470, 0.2
  %v4477 = vmul.f32 %v4471, 0.2
  %4478 = vst [vmem:[%s3] sm:$0xff] %v4472
  %4479 = vst [vmem:[%s3 + $0x8] sm:$0xff] %v4473
  %4480 = vst [vmem:[%s3 + $0x10] sm:$0xff] %v4474
  %4481 = vst [vmem:[%s3 + $0x18] sm:$0xff] %v4475
  %4482 = vst [vmem:[%s3 + $0x20] sm:$0xff] %v4476
  %4483 = vst [vmem:[%s3 + $0x28] sm:$0xff] %v4477
  // Predicated region
  $region14: #{efficientat_forward.2} parent=0 // pred_check
    _
  $region15: #{efficientat_forward.2} parent=0 // pred_check_branch
    %4485 = sbr.rel (0) target = $region17
  $region16: #{efficientat_forward.2} parent=0 // pred_region
    _
  $region17: #{efficientat_forward.2} parent=0 // pred_fallthru
    _
  // Predicated region
  $region18: #{efficientat_forward.2} parent=0 // pred_check
    _
  $region19: #{efficientat_forward.2} parent=0 // pred_check_branch
    %4487 = sbr.rel (0) target = $region21
  $region20: #{efficientat_forward.2} parent=0 // pred_region
    _
  $region21: #{efficientat_forward.2} parent=0 // pred_fallthru
    _

// kernel: efficientat_forward.3
$region0: #{efficientat_forward.3}
  #allocation0 [shape = 'u32[]', space=smem, size = 0x4, offset = 0x4, fixed_abs, tag = 'smem constant byte address 0x4 - core index']
  #allocation1 [shape = 'u32[72,128]{1,0:T(1,128)}', space=vmem, size = 0x9000, scoped, tag = 'internal scratch']
  %s0 = inlined_call_operand.vmem [shape: bf16[4,96,128], index: 0, kind: input, shape index: {}]
  %s1 = inlined_call_operand.vmem [shape: bf16[128,144], index: 1, kind: input, shape index: {}]
  %s2 = inlined_call_operand.vmem [shape: bf16[144,16], index: 2, kind: input, shape index: {}]
  %s3 = inlined_call_operand.vmem [shape: f32[1,16], index: 3, kind: input, shape index: {}]
  %s4 = inlined_call_operand.vmem [shape: bf16[16,32], index: 4, kind: input, shape index: {}]
  %s5 = inlined_call_operand.vmem [shape: f32[1,32], index: 5, kind: input, shape index: {}]
  %s6 = inlined_call_operand.vmem [shape: bf16[32,128], index: 6, kind: input, shape index: {}]
  %s7 = inlined_call_operand.vmem [shape: f32[1,128], index: 7, kind: input, shape index: {}]
  %s8 = inlined_call_operand.vmem [shape: f32[4,1,128], index: 8, kind: output, shape index: {}]
  %s9 = sld [smem:[#allocation0]]
  $region69: #{efficientat_forward.3} parent=0
    _
  %s11 = ssub.s32 1, %s9
  %s12 = scalar_select 0, %s11, %s9
  loop: start=0, step=1, limit=6
  $region2: #{efficientat_forward.3} parent=0 // loop_pre_header
    _
  $region3: #{efficientat_forward.3} parent=0 // loop_header
    %s14 = sphi 0, %s18
    %p15 = scmp.ge.s32.totalorder %s14, 6
    %s21 = sphi 0, %s33
    %s22 = sphi 0, %s29
    %s23 = sphi 0, %s21
    %s24 = sphi 0, %s22
    %s25 = sphi 0, %s23
    %s26 = sphi 0, %s24
    %s38 = sphi 0, %s40
    %s41 = sphi 0, %s38
    %s42 = sphi 0, %s41
    %s58 = sphi 0, %s42
    %s62 = sphi 0, %s62
    %s64 = sphi 0, %s62
    %s65 = sphi 0, %s64
    %s79 = sphi 0, %s65
    %s83 = sphi 0, %s83
    %s85 = sphi 0, %s83
    %s86 = sphi 0, %s85
    %s100 = sphi 0, %s86
    %s104 = sphi 0, %s104
    %s106 = sphi 0, %s104
    %s107 = sphi 0, %s106
    %s121 = sphi 0, %s107
    %s125 = sphi 0, %s125
    %s127 = sphi 0, %s125
    %s128 = sphi 0, %s127
    %s142 = sphi 0, %s128
    %s146 = sphi 0, %s146
    %s148 = sphi 0, %s146
    %s149 = sphi 0, %s148
    %s163 = sphi 0, %s149
    %s167 = sphi 0, %s167
    %s169 = sphi 0, %s167
    %s170 = sphi 0, %s169
    %s184 = sphi 0, %s170
    %s188 = sphi 0, %s188
    %s190 = sphi 0, %s188
    %s191 = sphi 0, %s190
    %s205 = sphi 0, %s191
    %s211 = sphi 0, %s213
    %s214 = sphi 0, %s211
    %s215 = sphi 0, %s214
    %s231 = sphi 0, %s215
  $region4: #{efficientat_forward.3} parent=0 // loop_header_branch
    %17 = sbr.rel (%p15) target = $region8
  $region5: #{efficientat_forward.3} parent=0 // loop_body
    %s19 = ssub.s32 %s14, 1
    %s20 = ssub.s32 %s14, 2
    %s27 = sadd.s32 1, %s22
    %p28 = scmp.ge.s32.totalorder %s27, 1
    %s29 = scalar_select %p28, 0, %s27
    %s30 = sadd.s32 1, %s21
    %s31 = scalar_select %p28, %s30, %s21
    %p32 = scmp.ge.s32.totalorder %s31, 4
    %s33 = scalar_select %p32, 0, %s31
    %s34 = ssub.s32 %s21, %s33
    %s35 = ssub.s32 %s22, %s29
    %s36 = sor.u32 %s34, %s35
    %p37 = scmp.eq.s32.totalorder %s36, 0
    %s39 = sadd.s32 %s38, 1
    %s40 = scalar_select %p37, %s38, %s39
    %p43 = pneg %p37
    %p44 = scmp.eq.s32.totalorder %s14, 3
    %p45 = por %p43, %p44
    %p46 = scmp.ne.s32.totalorder %s38, %s41
    %p47 = scmp.eq.s32.totalorder %s14, 0
    %p48 = por %p46, %p47
    %p49 = scmp.ne.s32.totalorder %s38, %s41
    %p50 = scmp.eq.s32.totalorder %s19, 3
    %p51 = por %p49, %p50
    %p52 = scmp.ne.s32.totalorder %s41, %s42
    %p53 = scmp.eq.s32.totalorder %s19, 0
    %p54 = por %p52, %p53
    %p55 = scmp.ne.s32.totalorder %s41, %s42
    %p56 = scmp.eq.s32.totalorder %s20, 3
    %p57 = por %p55, %p56
    %p59 = scmp.ne.s32.totalorder %s42, %s58
    %p60 = scmp.eq.s32.totalorder %s20, 0
    %p61 = por %p59, %p60
    %s63 = sadd.s32 %s62, 1
    %p66 = scmp.eq.s32.totalorder %s14, 3
    %p67 = scmp.ne.s32.totalorder %s62, %s64
    %p68 = scmp.eq.s32.totalorder %s14, 0
    %p69 = por %p67, %p68
    %p70 = scmp.ne.s32.totalorder %s62, %s64
    %p71 = scmp.eq.s32.totalorder %s19, 3
    %p72 = por %p70, %p71
    %p73 = scmp.ne.s32.totalorder %s64, %s65
    %p74 = scmp.eq.s32.totalorder %s19, 0
    %p75 = por %p73, %p74
    %p76 = scmp.ne.s32.totalorder %s64, %s65
    %p77 = scmp.eq.s32.totalorder %s20, 3
    %p78 = por %p76, %p77
    %p80 = scmp.ne.s32.totalorder %s65, %s79
    %p81 = scmp.eq.s32.totalorder %s20, 0
    %p82 = por %p80, %p81
    %s84 = sadd.s32 %s83, 1
    %p87 = scmp.eq.s32.totalorder %s14, 3
    %p88 = scmp.ne.s32.totalorder %s83, %s85
    %p89 = scmp.eq.s32.totalorder %s14, 0
    %p90 = por %p88, %p89
    %p91 = scmp.ne.s32.totalorder %s83, %s85
    %p92 = scmp.eq.s32.totalorder %s19, 3
    %p93 = por %p91, %p92
    %p94 = scmp.ne.s32.totalorder %s85, %s86
    %p95 = scmp.eq.s32.totalorder %s19, 0
    %p96 = por %p94, %p95
    %p97 = scmp.ne.s32.totalorder %s85, %s86
    %p98 = scmp.eq.s32.totalorder %s20, 3
    %p99 = por %p97, %p98
    %p101 = scmp.ne.s32.totalorder %s86, %s100
    %p102 = scmp.eq.s32.totalorder %s20, 0
    %p103 = por %p101, %p102
    %s105 = sadd.s32 %s104, 1
    %p108 = scmp.eq.s32.totalorder %s14, 3
    %p109 = scmp.ne.s32.totalorder %s104, %s106
    %p110 = scmp.eq.s32.totalorder %s14, 0
    %p111 = por %p109, %p110
    %p112 = scmp.ne.s32.totalorder %s104, %s106
    %p113 = scmp.eq.s32.totalorder %s19, 3
    %p114 = por %p112, %p113
    %p115 = scmp.ne.s32.totalorder %s106, %s107
    %p116 = scmp.eq.s32.totalorder %s19, 0
    %p117 = por %p115, %p116
    %p118 = scmp.ne.s32.totalorder %s106, %s107
    %p119 = scmp.eq.s32.totalorder %s20, 3
    %p120 = por %p118, %p119
    %p122 = scmp.ne.s32.totalorder %s107, %s121
    %p123 = scmp.eq.s32.totalorder %s20, 0
    %p124 = por %p122, %p123
    %s126 = sadd.s32 %s125, 1
    %p129 = scmp.eq.s32.totalorder %s14, 3
    %p130 = scmp.ne.s32.totalorder %s125, %s127
    %p131 = scmp.eq.s32.totalorder %s14, 0
    %p132 = por %p130, %p131
    %p133 = scmp.ne.s32.totalorder %s125, %s127
    %p134 = scmp.eq.s32.totalorder %s19, 3
    %p135 = por %p133, %p134
    %p136 = scmp.ne.s32.totalorder %s127, %s128
    %p137 = scmp.eq.s32.totalorder %s19, 0
    %p138 = por %p136, %p137
    %p139 = scmp.ne.s32.totalorder %s127, %s128
    %p140 = scmp.eq.s32.totalorder %s20, 3
    %p141 = por %p139, %p140
    %p143 = scmp.ne.s32.totalorder %s128, %s142
    %p144 = scmp.eq.s32.totalorder %s20, 0
    %p145 = por %p143, %p144
    %s147 = sadd.s32 %s146, 1
    %p150 = scmp.eq.s32.totalorder %s14, 3
    %p151 = scmp.ne.s32.totalorder %s146, %s148
    %p152 = scmp.eq.s32.totalorder %s14, 0
    %p153 = por %p151, %p152
    %p154 = scmp.ne.s32.totalorder %s146, %s148
    %p155 = scmp.eq.s32.totalorder %s19, 3
    %p156 = por %p154, %p155
    %p157 = scmp.ne.s32.totalorder %s148, %s149
    %p158 = scmp.eq.s32.totalorder %s19, 0
    %p159 = por %p157, %p158
    %p160 = scmp.ne.s32.totalorder %s148, %s149
    %p161 = scmp.eq.s32.totalorder %s20, 3
    %p162 = por %p160, %p161
    %p164 = scmp.ne.s32.totalorder %s149, %s163
    %p165 = scmp.eq.s32.totalorder %s20, 0
    %p166 = por %p164, %p165
    %s168 = sadd.s32 %s167, 1
    %p171 = scmp.eq.s32.totalorder %s14, 3
    %p172 = scmp.ne.s32.totalorder %s167, %s169
    %p173 = scmp.eq.s32.totalorder %s14, 0
    %p174 = por %p172, %p173
    %p175 = scmp.ne.s32.totalorder %s167, %s169
    %p176 = scmp.eq.s32.totalorder %s19, 3
    %p177 = por %p175, %p176
    %p178 = scmp.ne.s32.totalorder %s169, %s170
    %p179 = scmp.eq.s32.totalorder %s19, 0
    %p180 = por %p178, %p179
    %p181 = scmp.ne.s32.totalorder %s169, %s170
    %p182 = scmp.eq.s32.totalorder %s20, 3
    %p183 = por %p181, %p182
    %p185 = scmp.ne.s32.totalorder %s170, %s184
    %p186 = scmp.eq.s32.totalorder %s20, 0
    %p187 = por %p185, %p186
    %s189 = sadd.s32 %s188, 1
    %p192 = scmp.eq.s32.totalorder %s14, 3
    %p193 = scmp.ne.s32.totalorder %s188, %s190
    %p194 = scmp.eq.s32.totalorder %s14, 0
    %p195 = por %p193, %p194
    %p196 = scmp.ne.s32.totalorder %s188, %s190
    %p197 = scmp.eq.s32.totalorder %s19, 3
    %p198 = por %p196, %p197
    %p199 = scmp.ne.s32.totalorder %s190, %s191
    %p200 = scmp.eq.s32.totalorder %s19, 0
    %p201 = por %p199, %p200
    %p202 = scmp.ne.s32.totalorder %s190, %s191
    %p203 = scmp.eq.s32.totalorder %s20, 3
    %p204 = por %p202, %p203
    %p206 = scmp.ne.s32.totalorder %s191, %s205
    %p207 = scmp.eq.s32.totalorder %s20, 0
    %p208 = por %p206, %p207
    %s209 = ssub.s32 %s21, %s33
    %p210 = scmp.eq.s32.totalorder %s209, 0
    %s212 = sadd.s32 %s211, 1
    %s213 = scalar_select %p210, %s211, %s212
    %p216 = pneg %p210
    %p217 = scmp.eq.s32.totalorder %s14, 3
    %p218 = por %p216, %p217
    %p219 = scmp.ne.s32.totalorder %s211, %s214
    %p220 = scmp.eq.s32.totalorder %s14, 0
    %p221 = por %p219, %p220
    %p222 = scmp.ne.s32.totalorder %s211, %s214
    %p223 = scmp.eq.s32.totalorder %s19, 3
    %p224 = por %p222, %p223
    %p225 = scmp.ne.s32.totalorder %s214, %s215
    %p226 = scmp.eq.s32.totalorder %s19, 0
    %p227 = por %p225, %p226
    %p228 = scmp.ne.s32.totalorder %s214, %s215
    %p229 = scmp.eq.s32.totalorder %s20, 3
    %p230 = por %p228, %p229
    %p232 = scmp.ne.s32.totalorder %s215, %s231
    %p233 = scmp.eq.s32.totalorder %s20, 0
    %p234 = por %p232, %p233
    %p235 = scmp.le.s32.totalorder 1, %s14
    %p236 = scmp.lt.s32.totalorder %s14, 5
    %p237 = pnand %p235, %p236
    %p238 = pneg %p237
    // Predicated region
    $region9: #{efficientat_forward.3} parent=5 // pred_check
      _
    $region10: #{efficientat_forward.3} parent=5 // pred_check_branch
      %240 = sbr.rel (%p237) target = $region12
    $region11: #{efficientat_forward.3} parent=5 // pred_region
      %s241 = ssub.s32 %s14, 1
      // Predicated region
      $region13: #{efficientat_forward.3} parent=11 // pred_check
        %p242 = pneg %p75
      $region14: #{efficientat_forward.3} parent=11 // pred_check_branch
        %244 = sbr.rel (%p242) target = $region16
      $region15: #{efficientat_forward.3} parent=11 // pred_region
        _
      $region16: #{efficientat_forward.3} parent=11 // pred_fallthru
        _
      // Predicated region
      $region17: #{efficientat_forward.3} parent=11 // pred_check
        %p245 = pneg %p96
      $region18: #{efficientat_forward.3} parent=11 // pred_check_branch
        %247 = sbr.rel (%p245) target = $region20
      $region19: #{efficientat_forward.3} parent=11 // pred_region
        _
      $region20: #{efficientat_forward.3} parent=11 // pred_fallthru
        _
      // Predicated region
      $region21: #{efficientat_forward.3} parent=11 // pred_check
        %p248 = pneg %p117
      $region22: #{efficientat_forward.3} parent=11 // pred_check_branch
        %250 = sbr.rel (%p248) target = $region24
      $region23: #{efficientat_forward.3} parent=11 // pred_region
        _
      $region24: #{efficientat_forward.3} parent=11 // pred_fallthru
        _
      // Predicated region
      $region25: #{efficientat_forward.3} parent=11 // pred_check
        %p251 = pneg %p138
      $region26: #{efficientat_forward.3} parent=11 // pred_check_branch
        %253 = sbr.rel (%p251) target = $region28
      $region27: #{efficientat_forward.3} parent=11 // pred_region
        _
      $region28: #{efficientat_forward.3} parent=11 // pred_fallthru
        _
      // Predicated region
      $region29: #{efficientat_forward.3} parent=11 // pred_check
        %p254 = pneg %p159
      $region30: #{efficientat_forward.3} parent=11 // pred_check_branch
        %256 = sbr.rel (%p254) target = $region32
      $region31: #{efficientat_forward.3} parent=11 // pred_region
        _
      $region32: #{efficientat_forward.3} parent=11 // pred_fallthru
        _
      // Predicated region
      $region33: #{efficientat_forward.3} parent=11 // pred_check
        %p257 = pneg %p180
      $region34: #{efficientat_forward.3} parent=11 // pred_check_branch
        %259 = sbr.rel (%p257) target = $region36
      $region35: #{efficientat_forward.3} parent=11 // pred_region
        _
      $region36: #{efficientat_forward.3} parent=11 // pred_fallthru
        _
      // Predicated region
      $region37: #{efficientat_forward.3} parent=11 // pred_check
        %p260 = pneg %p201
      $region38: #{efficientat_forward.3} parent=11 // pred_check_branch
        %262 = sbr.rel (%p260) target = $region40
      $region39: #{efficientat_forward.3} parent=11 // pred_region
        _
      $region40: #{efficientat_forward.3} parent=11 // pred_fallthru
        _
    $region12: #{efficientat_forward.3} parent=5 // pred_fallthru
      _
    %p263 = scmp.lt.s32.totalorder %s14, 4
    // Predicated region
    $region41: #{efficientat_forward.3} parent=5 // pred_check
      %p264 = pneg %p263
    $region42: #{efficientat_forward.3} parent=5 // pred_check_branch
      %266 = sbr.rel (%p264) target = $region44
    $region43: #{efficientat_forward.3} parent=5 // pred_region
      // Predicated region
      $region45: #{efficientat_forward.3} parent=43 // pred_check
        %p267 = pneg %p48
      $region46: #{efficientat_forward.3} parent=43 // pred_check_branch
        %269 = sbr.rel (%p267) target = $region48
      $region47: #{efficientat_forward.3} parent=43 // pred_region
        %s270 = smul.u32 12, %s22
        %p271 = scmp.lt.s32.totalorder %s21, 3
        %s272 = scalar_select %p271, %s21, 3
        %p273 = scmp.lt.s32.totalorder %s270, 11
        %s274 = scalar_select %p273, %s270, 11
        %s275 = smul.addr %s272, 12
        %s276 = sadd.s32 %s274, %s275
        %s277 = smul.addr %s276, 4
        %s278 = scalar_lea.vmem %s0, %s277
        %s279 = smul.u32 12, %s22
      $region48: #{efficientat_forward.3} parent=43 // pred_fallthru
        _
    $region44: #{efficientat_forward.3} parent=5 // pred_fallthru
      _
    %p280 = scmp.le.s32.totalorder 1, %s14
    %p281 = scmp.lt.s32.totalorder %s14, 5
    %p282 = pnand %p280, %p281
    %p283 = pneg %p282
    // Predicated region
    $region49: #{efficientat_forward.3} parent=5 // pred_check
      _
    $region50: #{efficientat_forward.3} parent=5 // pred_check_branch
      %285 = sbr.rel (%p282) target = $region52
    $region51: #{efficientat_forward.3} parent=5 // pred_region
      %s286 = ssub.s32 %s14, 1
      %s287 = smul.u32 12, %s24
      %p288 = scmp.lt.s32.totalorder %s23, 3
      %s289 = scalar_select %p288, %s23, 3
      %p290 = scmp.lt.s32.totalorder %s287, 11
      %s291 = scalar_select %p290, %s287, 11
      %s292 = smul.addr %s289, 12
      %s293 = sadd.s32 %s291, %s292
      %s294 = smul.addr %s293, 4
      %s295 = scalar_lea.vmem %s0, %s294
      %p296 = pneg %p54
      %p297 = pneg %p51
      %p298 = pneg %p75
      %p299 = pneg %p72
      %p300 = pneg %p96
      %p301 = pneg %p93
      %p302 = pneg %p117
      %p303 = pneg %p114
      %p304 = pneg %p138
      %p305 = pneg %p135
      %p306 = pneg %p159
      %p307 = pneg %p156
      %p308 = pneg %p180
      %p309 = pneg %p177
      %p310 = pneg %p201
      %p311 = pneg %p198
      %p312 = pneg %p227
      %p313 = pneg %p224
      %p314 = scmp.lt.s32.totalorder %s23, 3
      %s315 = scalar_select %p314, %s23, 3
      %s316 = scalar_lea.vmem %s8, %s315
      %s317 = smul.u32 12, %s24
      %p318 = scmp.lt.s32.totalorder %s23, 3
      %s319 = scalar_select %p318, %s23, 3
      %p320 = scmp.lt.s32.totalorder %s317, 11
      %s321 = scalar_select %p320, %s317, 11
      %s322 = smul.addr %s319, 12
      %s323 = sadd.s32 %s321, %s322
      %s324 = smul.addr %s323, 4
      %s325 = scalar_lea.vmem %s0, %s324
      %s326 = smul.u32 12, %s24
      %p327 = scmp.lt.s32.totalorder %s23, 3
      %s328 = scalar_select %p327, %s23, 3
      %s329 = scalar_lea.vmem %s8, %s328
      %p331 = scmp.eq.s32.totalorder %s24, 0
      // Predicated region
      $region53: #{efficientat_forward.3} parent=51 // pred_check
        %p332 = pneg %p331
      $region54: #{efficientat_forward.3} parent=51 // pred_check_branch
        %334 = sbr.rel (%p332) target = $region56
      $region55: #{efficientat_forward.3} parent=51 // pred_region
        %335 = vst [vmem:[%s329] sm:$0x1] 0.0
      $region56: #{efficientat_forward.3} parent=51 // pred_fallthru
        _
      %v336 = vld [vmem:[%s325] sm:$0xf]
      %v337 = vld [vmem:[%s325 + $0x4] sm:$0xf]
      %v338 = vld [vmem:[%s325 + $0x8] sm:$0xf]
      %v339 = vld [vmem:[%s325 + $0xc] sm:$0xf]
      %v340 = vld [vmem:[%s325 + $0x10] sm:$0xf]
      %v341 = vld [vmem:[%s325 + $0x14] sm:$0xf]
      %v342 = vld [vmem:[%s325 + $0x18] sm:$0xf]
      %v343 = vld [vmem:[%s325 + $0x1c] sm:$0xf]
      %v344 = vld [vmem:[%s325 + $0x20] sm:$0xf]
      %v345 = vld [vmem:[%s325 + $0x24] sm:$0xf]
      %v346 = vld [vmem:[%s325 + $0x28] sm:$0xf]
      %v347 = vld [vmem:[%s325 + $0x2c] sm:$0xf]
      %v348 = vld [vmem:[%s1] sm:$0xff]
      %v349 = vld [vmem:[%s1 + $0x8] sm:$0xff]
      %v350 = vld [vmem:[%s1 + $0x10] sm:$0xff]
      %v351 = vld [vmem:[%s1 + $0x18] sm:$0xff]
      %v352 = vld [vmem:[%s1 + $0x20] sm:$0xff]
      %v353 = vld [vmem:[%s1 + $0x28] sm:$0xff]
      %v354 = vld [vmem:[%s1 + $0x30] sm:$0xff]
      %v355 = vld [vmem:[%s1 + $0x38] sm:$0xff]
      %v356 = vld [vmem:[%s1 + $0x40] sm:$0xff]
      %v357 = vld [vmem:[%s1 + $0x48] sm:$0xff]
      %v358 = vld [vmem:[%s1 + $0x50] sm:$0xff]
      %v359 = vld [vmem:[%s1 + $0x58] sm:$0xff]
      %v360 = vld [vmem:[%s1 + $0x60] sm:$0xff]
      %v361 = vld [vmem:[%s1 + $0x68] sm:$0xff]
      %v362 = vld [vmem:[%s1 + $0x70] sm:$0xff]
      %v363 = vld [vmem:[%s1 + $0x78] sm:$0xff]
      %v376 = vunpack.c.l.b16 %v336
      %v377 = vunpack.c.l.b16 %v337
      %v378 = vunpack.c.l.b16 %v338
      %v379 = vunpack.c.l.b16 %v339
      %v380 = vunpack.c.l.b16 %v340
      %v381 = vunpack.c.l.b16 %v341
      %v382 = vunpack.c.l.b16 %v342
      %v383 = vunpack.c.l.b16 %v343
      %v384 = vunpack.c.l.b16 %v344
      %v385 = vunpack.c.l.b16 %v345
      %v386 = vunpack.c.l.b16 %v346
      %v387 = vunpack.c.l.b16 %v347
      %v388 = vpack.c.b16 %v377, %v376
      %v389 = vpack.c.b16 %v379, %v378
      %v390 = vpack.c.b16 %v381, %v380
      %v391 = vpack.c.b16 %v383, %v382
      %v392 = vpack.c.b16 %v385, %v384
      %v393 = vpack.c.b16 %v387, %v386
      %v416 = vunpack.c.l.b16 %v348
      %v417 = vunpack.c.h.b16 %v348
      %v418 = vunpack.c.l.b16 %v349
      %v419 = vunpack.c.h.b16 %v349
      %v420 = vunpack.c.l.b16 %v350
      %v421 = vunpack.c.h.b16 %v350
      %v422 = vunpack.c.l.b16 %v351
      %v423 = vunpack.c.h.b16 %v351
      %v424 = vunpack.c.l.b16 %v352
      %v425 = vunpack.c.h.b16 %v352
      %v426 = vunpack.c.l.b16 %v353
      %v427 = vunpack.c.h.b16 %v353
      %v428 = vunpack.c.l.b16 %v354
      %v429 = vunpack.c.h.b16 %v354
      %v430 = vunpack.c.l.b16 %v355
      %v431 = vunpack.c.h.b16 %v355
      %v432 = vunpack.c.l.b16 %v356
      %v433 = vunpack.c.h.b16 %v356
      %v434 = vunpack.c.l.b16 %v357
      %v435 = vunpack.c.h.b16 %v357
      %v436 = vunpack.c.l.b16 %v358
      %v437 = vunpack.c.h.b16 %v358
      %v438 = vunpack.c.l.b16 %v359
      %v439 = vunpack.c.h.b16 %v359
      %v440 = vunpack.c.l.b16 %v360
      %v441 = vunpack.c.h.b16 %v360
      %v442 = vunpack.c.l.b16 %v361
      %v443 = vunpack.c.h.b16 %v361
      %v444 = vunpack.c.l.b16 %v362
      %v445 = vunpack.c.h.b16 %v362
      %v446 = vunpack.c.l.b16 %v363
      %v447 = vunpack.c.h.b16 %v363
      %v448 = vpack.c.b16 %v418, %v416
      %v449 = vpack.c.b16 %v419, %v417
      %v450 = vpack.c.b16 %v422, %v420
      %v451 = vpack.c.b16 %v423, %v421
      %v452 = vpack.c.b16 %v426, %v424
      %v453 = vpack.c.b16 %v427, %v425
      %v454 = vpack.c.b16 %v430, %v428
      %v455 = vpack.c.b16 %v431, %v429
      %v456 = vpack.c.b16 %v434, %v432
      %v457 = vpack.c.b16 %v435, %v433
      %v458 = vpack.c.b16 %v438, %v436
      %v459 = vpack.c.b16 %v439, %v437
      %v460 = vpack.c.b16 %v442, %v440
      %v461 = vpack.c.b16 %v443, %v441
      %v462 = vpack.c.b16 %v446, %v444
      %v463 = vpack.c.b16 %v447, %v445
      %480 = vmatpush.bf16.msra.mxu0 %v462
      %481 = vmatpush.bf16.msra.mxu0 %v460
      %482 = vmatpush.bf16.msra.mxu0 %v458
      %483 = vmatpush.bf16.msra.mxu0 %v456
      %484 = vmatpush.bf16.msra.mxu0 %v454
      %485 = vmatpush.bf16.msra.mxu0 %v452
      %486 = vmatpush.bf16.msra.mxu0 %v450
      %487 = vmatpush.bf16.msra.mxu0 %v448
      %488 = vmatmul.bf16.gmra.mxu0 %v388
      %v489 = vpop.f32.mrf.mxu0
      %v490 = vadd.f32 0.0, %v489
      %v491 = vpop.f32.mrf.mxu0
      %v492 = vadd.f32 0.0, %v491
      %493 = vmatmul.bf16.gmra.mxu0 %v389
      %v494 = vpop.f32.mrf.mxu0
      %v495 = vadd.f32 0.0, %v494
      %v496 = vpop.f32.mrf.mxu0
      %v497 = vadd.f32 0.0, %v496
      %498 = vmatmul.bf16.gmra.mxu0 %v390
      %v499 = vpop.f32.mrf.mxu0
      %v500 = vadd.f32 0.0, %v499
      %v501 = vpop.f32.mrf.mxu0
      %v502 = vadd.f32 0.0, %v501
      %503 = vmatmul.bf16.gmra.mxu0 %v391
      %v504 = vpop.f32.mrf.mxu0
      %v505 = vadd.f32 0.0, %v504
      %v506 = vpop.f32.mrf.mxu0
      %v507 = vadd.f32 0.0, %v506
      %508 = vmatmul.bf16.gmra.mxu0 %v392
      %v509 = vpop.f32.mrf.mxu0
      %v510 = vadd.f32 0.0, %v509
      %v511 = vpop.f32.mrf.mxu0
      %v512 = vadd.f32 0.0, %v511
      %513 = vmatmul.bf16.gmra.mxu0 %v393
      %v514 = vpop.f32.mrf.mxu0
      %v515 = vadd.f32 0.0, %v514
      %v516 = vpop.f32.mrf.mxu0
      %v517 = vadd.f32 0.0, %v516
      %518 = vdwg.mxu0
      %519 = vmatpush.bf16.msra.mxu0 %v463
      %520 = vmatpush.bf16.msra.mxu0 %v461
      %521 = vmatpush.bf16.msra.mxu0 %v459
      %522 = vmatpush.bf16.msra.mxu0 %v457
      %523 = vmatpush.bf16.msra.mxu0 %v455
      %524 = vmatpush.bf16.msra.mxu0 %v453
      %525 = vmatpush.bf16.msra.mxu0 %v451
      %526 = vmatpush.bf16.msra.mxu0 %v449
      %527 = vmatmul.bf16.gmra.mxu0 %v388
      %v528 = vpop.f32.mrf.mxu0
      %v529 = vadd.f32 0.0, %v528
      %v530 = vpop.f32.mrf.mxu0
      %v531 = vadd.f32 0.0, %v530
      %532 = vmatmul.bf16.gmra.mxu0 %v389
      %v533 = vpop.f32.mrf.mxu0
      %v534 = vadd.f32 0.0, %v533
      %v535 = vpop.f32.mrf.mxu0
      %v536 = vadd.f32 0.0, %v535
      %537 = vmatmul.bf16.gmra.mxu0 %v390
      %v538 = vpop.f32.mrf.mxu0
      %v539 = vadd.f32 0.0, %v538
      %v540 = vpop.f32.mrf.mxu0
      %v541 = vadd.f32 0.0, %v540
      %542 = vmatmul.bf16.gmra.mxu0 %v391
      %v543 = vpop.f32.mrf.mxu0
      %v544 = vadd.f32 0.0, %v543
      %v545 = vpop.f32.mrf.mxu0
      %v546 = vadd.f32 0.0, %v545
      %547 = vmatmul.bf16.gmra.mxu0 %v392
      %v548 = vpop.f32.mrf.mxu0
      %v549 = vadd.f32 0.0, %v548
      %v550 = vpop.f32.mrf.mxu0
      %v551 = vadd.f32 0.0, %v550
      %552 = vmatmul.bf16.gmra.mxu0 %v393
      %v553 = vpop.f32.mrf.mxu0
      %v554 = vadd.f32 0.0, %v553
      %v555 = vpop.f32.mrf.mxu0
      %v556 = vadd.f32 0.0, %v555
      %557 = vdwg.mxu0
      %v558 = vpack.c.bf16 %v529, %v490
      %v559 = vpack.c.bf16 %v531, %v492
      %v560 = vpack.c.bf16 %v534, %v495
      %v561 = vpack.c.bf16 %v536, %v497
      %v562 = vpack.c.bf16 %v539, %v500
      %v563 = vpack.c.bf16 %v541, %v502
      %v564 = vpack.c.bf16 %v544, %v505
      %v565 = vpack.c.bf16 %v546, %v507
      %v566 = vpack.c.bf16 %v549, %v510
      %v567 = vpack.c.bf16 %v551, %v512
      %v568 = vpack.c.bf16 %v554, %v515
      %v569 = vpack.c.bf16 %v556, %v517
      %v570 = vunpack.c.l.bf16 %v558
      %v571 = vunpack.c.h.bf16 %v558
      %v572 = vunpack.c.l.bf16 %v559
      %v573 = vunpack.c.h.bf16 %v559
      %v574 = vunpack.c.l.bf16 %v560
      %v575 = vunpack.c.h.bf16 %v560
      %v576 = vunpack.c.l.bf16 %v561
      %v577 = vunpack.c.h.bf16 %v561
      %v578 = vunpack.c.l.bf16 %v562
      %v579 = vunpack.c.h.bf16 %v562
      %v580 = vunpack.c.l.bf16 %v563
      %v581 = vunpack.c.h.bf16 %v563
      %v582 = vunpack.c.l.bf16 %v564
      %v583 = vunpack.c.h.bf16 %v564
      %v584 = vunpack.c.l.bf16 %v565
      %v585 = vunpack.c.h.bf16 %v565
      %v586 = vunpack.c.l.bf16 %v566
      %v587 = vunpack.c.h.bf16 %v566
      %v588 = vunpack.c.l.bf16 %v567
      %v589 = vunpack.c.h.bf16 %v567
      %v590 = vunpack.c.l.bf16 %v568
      %v591 = vunpack.c.h.bf16 %v568
      %v592 = vunpack.c.l.bf16 %v569
      %v593 = vunpack.c.h.bf16 %v569
      %v594 = vadd.f32 %v570, 3.0
      %v595 = vadd.f32 %v571, 3.0
      %v596 = vadd.f32 %v572, 3.0
      %v597 = vadd.f32 %v573, 3.0
      %v598 = vadd.f32 %v574, 3.0
      %v599 = vadd.f32 %v575, 3.0
      %v600 = vadd.f32 %v576, 3.0
      %v601 = vadd.f32 %v577, 3.0
      %v602 = vadd.f32 %v578, 3.0
      %v603 = vadd.f32 %v579, 3.0
      %v604 = vadd.f32 %v580, 3.0
      %v605 = vadd.f32 %v581, 3.0
      %v606 = vadd.f32 %v582, 3.0
      %v607 = vadd.f32 %v583, 3.0
      %v608 = vadd.f32 %v584, 3.0
      %v609 = vadd.f32 %v585, 3.0
      %v610 = vadd.f32 %v586, 3.0
      %v611 = vadd.f32 %v587, 3.0
      %v612 = vadd.f32 %v588, 3.0
      %v613 = vadd.f32 %v589, 3.0
      %v614 = vadd.f32 %v590, 3.0
      %v615 = vadd.f32 %v591, 3.0
      %v616 = vadd.f32 %v592, 3.0
      %v617 = vadd.f32 %v593, 3.0
      %v618 = vpack.c.bf16 %v595, %v594
      %v619 = vpack.c.bf16 %v597, %v596
      %v620 = vpack.c.bf16 %v599, %v598
      %v621 = vpack.c.bf16 %v601, %v600
      %v622 = vpack.c.bf16 %v603, %v602
      %v623 = vpack.c.bf16 %v605, %v604
      %v624 = vpack.c.bf16 %v607, %v606
      %v625 = vpack.c.bf16 %v609, %v608
      %v626 = vpack.c.bf16 %v611, %v610
      %v627 = vpack.c.bf16 %v613, %v612
      %v628 = vpack.c.bf16 %v615, %v614
      %v629 = vpack.c.bf16 %v617, %v616
      %v630 = vunpack.c.l.bf16 %v618
      %v631 = vunpack.c.h.bf16 %v618
      %v632 = vunpack.c.l.bf16 %v619
      %v633 = vunpack.c.h.bf16 %v619
      %v634 = vunpack.c.l.bf16 %v620
      %v635 = vunpack.c.h.bf16 %v620
      %v636 = vunpack.c.l.bf16 %v621
      %v637 = vunpack.c.h.bf16 %v621
      %v638 = vunpack.c.l.bf16 %v622
      %v639 = vunpack.c.h.bf16 %v622
      %v640 = vunpack.c.l.bf16 %v623
      %v641 = vunpack.c.h.bf16 %v623
      %v642 = vunpack.c.l.bf16 %v624
      %v643 = vunpack.c.h.bf16 %v624
      %v644 = vunpack.c.l.bf16 %v625
      %v645 = vunpack.c.h.bf16 %v625
      %v646 = vunpack.c.l.bf16 %v626
      %v647 = vunpack.c.h.bf16 %v626
      %v648 = vunpack.c.l.bf16 %v627
      %v649 = vunpack.c.h.bf16 %v627
      %v650 = vunpack.c.l.bf16 %v628
      %v651 = vunpack.c.h.bf16 %v628
      %v652 = vunpack.c.l.bf16 %v629
      %v653 = vunpack.c.h.bf16 %v629
      %v654 = vmax.f32 %v630, 0.0
      %v655 = vmax.f32 %v631, 0.0
      %v656 = vmax.f32 %v632, 0.0
      %v657 = vmax.f32 %v633, 0.0
      %v658 = vmax.f32 %v634, 0.0
      %v659 = vmax.f32 %v635, 0.0
      %v660 = vmax.f32 %v636, 0.0
      %v661 = vmax.f32 %v637, 0.0
      %v662 = vmax.f32 %v638, 0.0
      %v663 = vmax.f32 %v639, 0.0
      %v664 = vmax.f32 %v640, 0.0
      %v665 = vmax.f32 %v641, 0.0
      %v666 = vmax.f32 %v642, 0.0
      %v667 = vmax.f32 %v643, 0.0
      %v668 = vmax.f32 %v644, 0.0
      %v669 = vmax.f32 %v645, 0.0
      %v670 = vmax.f32 %v646, 0.0
      %v671 = vmax.f32 %v647, 0.0
      %v672 = vmax.f32 %v648, 0.0
      %v673 = vmax.f32 %v649, 0.0
      %v674 = vmax.f32 %v650, 0.0
      %v675 = vmax.f32 %v651, 0.0
      %v676 = vmax.f32 %v652, 0.0
      %v677 = vmax.f32 %v653, 0.0
      %v678 = vpack.c.bf16 %v655, %v654
      %v679 = vpack.c.bf16 %v657, %v656
      %v680 = vpack.c.bf16 %v659, %v658
      %v681 = vpack.c.bf16 %v661, %v660
      %v682 = vpack.c.bf16 %v663, %v662
      %v683 = vpack.c.bf16 %v665, %v664
      %v684 = vpack.c.bf16 %v667, %v666
      %v685 = vpack.c.bf16 %v669, %v668
      %v686 = vpack.c.bf16 %v671, %v670
      %v687 = vpack.c.bf16 %v673, %v672
      %v688 = vpack.c.bf16 %v675, %v674
      %v689 = vpack.c.bf16 %v677, %v676
      %v690 = vunpack.c.l.bf16 %v678
      %v691 = vunpack.c.h.bf16 %v678
      %v692 = vunpack.c.l.bf16 %v679
      %v693 = vunpack.c.h.bf16 %v679
      %v694 = vunpack.c.l.bf16 %v680
      %v695 = vunpack.c.h.bf16 %v680
      %v696 = vunpack.c.l.bf16 %v681
      %v697 = vunpack.c.h.bf16 %v681
      %v698 = vunpack.c.l.bf16 %v682
      %v699 = vunpack.c.h.bf16 %v682
      %v700 = vunpack.c.l.bf16 %v683
      %v701 = vunpack.c.h.bf16 %v683
      %v702 = vunpack.c.l.bf16 %v684
      %v703 = vunpack.c.h.bf16 %v684
      %v704 = vunpack.c.l.bf16 %v685
      %v705 = vunpack.c.h.bf16 %v685
      %v706 = vunpack.c.l.bf16 %v686
      %v707 = vunpack.c.h.bf16 %v686
      %v708 = vunpack.c.l.bf16 %v687
      %v709 = vunpack.c.h.bf16 %v687
      %v710 = vunpack.c.l.bf16 %v688
      %v711 = vunpack.c.h.bf16 %v688
      %v712 = vunpack.c.l.bf16 %v689
      %v713 = vunpack.c.h.bf16 %v689
      %v714 = vmin.f32 %v690, 6.0
      %v715 = vmin.f32 %v691, 6.0
      %v716 = vmin.f32 %v692, 6.0
      %v717 = vmin.f32 %v693, 6.0
      %v718 = vmin.f32 %v694, 6.0
      %v719 = vmin.f32 %v695, 6.0
      %v720 = vmin.f32 %v696, 6.0
      %v721 = vmin.f32 %v697, 6.0
      %v722 = vmin.f32 %v698, 6.0
      %v723 = vmin.f32 %v699, 6.0
      %v724 = vmin.f32 %v700, 6.0
      %v725 = vmin.f32 %v701, 6.0
      %v726 = vmin.f32 %v702, 6.0
      %v727 = vmin.f32 %v703, 6.0
      %v728 = vmin.f32 %v704, 6.0
      %v729 = vmin.f32 %v705, 6.0
      %v730 = vmin.f32 %v706, 6.0
      %v731 = vmin.f32 %v707, 6.0
      %v732 = vmin.f32 %v708, 6.0
      %v733 = vmin.f32 %v709, 6.0
      %v734 = vmin.f32 %v710, 6.0
      %v735 = vmin.f32 %v711, 6.0
      %v736 = vmin.f32 %v712, 6.0
      %v737 = vmin.f32 %v713, 6.0
      %v738 = vpack.c.bf16 %v715, %v714
      %v739 = vpack.c.bf16 %v717, %v716
      %v740 = vpack.c.bf16 %v719, %v718
      %v741 = vpack.c.bf16 %v721, %v720
      %v742 = vpack.c.bf16 %v723, %v722
      %v743 = vpack.c.bf16 %v725, %v724
      %v744 = vpack.c.bf16 %v727, %v726
      %v745 = vpack.c.bf16 %v729, %v728
      %v746 = vpack.c.bf16 %v731, %v730
      %v747 = vpack.c.bf16 %v733, %v732
      %v748 = vpack.c.bf16 %v735, %v734
      %v749 = vpack.c.bf16 %v737, %v736
      %v750 = vunpack.c.l.bf16 %v738
      %v751 = vunpack.c.h.bf16 %v738
      %v752 = vunpack.c.l.bf16 %v739
      %v753 = vunpack.c.h.bf16 %v739
      %v754 = vunpack.c.l.bf16 %v740
      %v755 = vunpack.c.h.bf16 %v740
      %v756 = vunpack.c.l.bf16 %v741
      %v757 = vunpack.c.h.bf16 %v741
      %v758 = vunpack.c.l.bf16 %v742
      %v759 = vunpack.c.h.bf16 %v742
      %v760 = vunpack.c.l.bf16 %v743
      %v761 = vunpack.c.h.bf16 %v743
      %v762 = vunpack.c.l.bf16 %v744
      %v763 = vunpack.c.h.bf16 %v744
      %v764 = vunpack.c.l.bf16 %v745
      %v765 = vunpack.c.h.bf16 %v745
      %v766 = vunpack.c.l.bf16 %v746
      %v767 = vunpack.c.h.bf16 %v746
      %v768 = vunpack.c.l.bf16 %v747
      %v769 = vunpack.c.h.bf16 %v747
      %v770 = vunpack.c.l.bf16 %v748
      %v771 = vunpack.c.h.bf16 %v748
      %v772 = vunpack.c.l.bf16 %v749
      %v773 = vunpack.c.h.bf16 %v749
      %v774 = vmul.f32 %v570, %v750
      %v775 = vmul.f32 %v571, %v751
      %v776 = vmul.f32 %v572, %v752
      %v777 = vmul.f32 %v573, %v753
      %v778 = vmul.f32 %v574, %v754
      %v779 = vmul.f32 %v575, %v755
      %v780 = vmul.f32 %v576, %v756
      %v781 = vmul.f32 %v577, %v757
      %v782 = vmul.f32 %v578, %v758
      %v783 = vmul.f32 %v579, %v759
      %v784 = vmul.f32 %v580, %v760
      %v785 = vmul.f32 %v581, %v761
      %v786 = vmul.f32 %v582, %v762
      %v787 = vmul.f32 %v583, %v763
      %v788 = vmul.f32 %v584, %v764
      %v789 = vmul.f32 %v585, %v765
      %v790 = vmul.f32 %v586, %v766
      %v791 = vmul.f32 %v587, %v767
      %v792 = vmul.f32 %v588, %v768
      %v793 = vmul.f32 %v589, %v769
      %v794 = vmul.f32 %v590, %v770
      %v795 = vmul.f32 %v591, %v771
      %v796 = vmul.f32 %v592, %v772
      %v797 = vmul.f32 %v593, %v773
      %v798 = vpack.c.bf16 %v775, %v774
      %v799 = vpack.c.bf16 %v777, %v776
      %v800 = vpack.c.bf16 %v779, %v778
      %v801 = vpack.c.bf16 %v781, %v780
      %v802 = vpack.c.bf16 %v783, %v782
      %v803 = vpack.c.bf16 %v785, %v784
      %v804 = vpack.c.bf16 %v787, %v786
      %v805 = vpack.c.bf16 %v789, %v788
      %v806 = vpack.c.bf16 %v791, %v790
      %v807 = vpack.c.bf16 %v793, %v792
      %v808 = vpack.c.bf16 %v795, %v794
      %v809 = vpack.c.bf16 %v797, %v796
      %v810 = vunpack.c.l.bf16 %v798
      %v811 = vunpack.c.h.bf16 %v798
      %v812 = vunpack.c.l.bf16 %v799
      %v813 = vunpack.c.h.bf16 %v799
      %v814 = vunpack.c.l.bf16 %v800
      %v815 = vunpack.c.h.bf16 %v800
      %v816 = vunpack.c.l.bf16 %v801
      %v817 = vunpack.c.h.bf16 %v801
      %v818 = vunpack.c.l.bf16 %v802
      %v819 = vunpack.c.h.bf16 %v802
      %v820 = vunpack.c.l.bf16 %v803
      %v821 = vunpack.c.h.bf16 %v803
      %v822 = vunpack.c.l.bf16 %v804
      %v823 = vunpack.c.h.bf16 %v804
      %v824 = vunpack.c.l.bf16 %v805
      %v825 = vunpack.c.h.bf16 %v805
      %v826 = vunpack.c.l.bf16 %v806
      %v827 = vunpack.c.h.bf16 %v806
      %v828 = vunpack.c.l.bf16 %v807
      %v829 = vunpack.c.h.bf16 %v807
      %v830 = vunpack.c.l.bf16 %v808
      %v831 = vunpack.c.h.bf16 %v808
      %v832 = vunpack.c.l.bf16 %v809
      %v833 = vunpack.c.h.bf16 %v809
      %v834 = vmul.f32 %v810, 0.16699219
      %v835 = vmul.f32 %v811, 0.16699219
      %v836 = vmul.f32 %v812, 0.16699219
      %v837 = vmul.f32 %v813, 0.16699219
      %v838 = vmul.f32 %v814, 0.16699219
      %v839 = vmul.f32 %v815, 0.16699219
      %v840 = vmul.f32 %v816, 0.16699219
      %v841 = vmul.f32 %v817, 0.16699219
      %v842 = vmul.f32 %v818, 0.16699219
      %v843 = vmul.f32 %v819, 0.16699219
      %v844 = vmul.f32 %v820, 0.16699219
      %v845 = vmul.f32 %v821, 0.16699219
      %v846 = vmul.f32 %v822, 0.16699219
      %v847 = vmul.f32 %v823, 0.16699219
      %v848 = vmul.f32 %v824, 0.16699219
      %v849 = vmul.f32 %v825, 0.16699219
      %v850 = vmul.f32 %v826, 0.16699219
      %v851 = vmul.f32 %v827, 0.16699219
      %v852 = vmul.f32 %v828, 0.16699219
      %v853 = vmul.f32 %v829, 0.16699219
      %v854 = vmul.f32 %v830, 0.16699219
      %v855 = vmul.f32 %v831, 0.16699219
      %v856 = vmul.f32 %v832, 0.16699219
      %v857 = vmul.f32 %v833, 0.16699219
      %v858 = vpack.c.bf16 %v836, %v834
      %v859 = vpack.c.bf16 %v837, %v835
      %v860 = vpack.c.bf16 %v840, %v838
      %v861 = vpack.c.bf16 %v841, %v839
      %v862 = vpack.c.bf16 %v844, %v842
      %v863 = vpack.c.bf16 %v845, %v843
      %v864 = vpack.c.bf16 %v848, %v846
      %v865 = vpack.c.bf16 %v849, %v847
      %v866 = vpack.c.bf16 %v852, %v850
      %v867 = vpack.c.bf16 %v853, %v851
      %v868 = vpack.c.bf16 %v856, %v854
      %v869 = vpack.c.bf16 %v857, %v855
      %v870 = vld [vmem:[%s2] sm:$0xf]
      %v871 = vld [vmem:[%s2 + $0x4] sm:$0xf]
      %v872 = vld [vmem:[%s2 + $0x8] sm:$0xf]
      %v873 = vld [vmem:[%s2 + $0xc] sm:$0xf]
      %v874 = vld [vmem:[%s2 + $0x10] sm:$0xf]
      %v875 = vld [vmem:[%s2 + $0x14] sm:$0xf]
      %v876 = vld [vmem:[%s2 + $0x18] sm:$0xf]
      %v877 = vld [vmem:[%s2 + $0x1c] sm:$0xf]
      %v878 = vld [vmem:[%s2 + $0x20] sm:$0xf]
      %v879 = vld [vmem:[%s2 + $0x24] sm:$0xf]
      %v880 = vld [vmem:[%s2 + $0x28] sm:$0xf]
      %v881 = vld [vmem:[%s2 + $0x2c] sm:$0xf]
      %v882 = vld [vmem:[%s2 + $0x30] sm:$0xf]
      %v883 = vld [vmem:[%s2 + $0x34] sm:$0xf]
      %v884 = vld [vmem:[%s2 + $0x38] sm:$0xf]
      %v885 = vld [vmem:[%s2 + $0x3c] sm:$0xf]
      %v886 = vld [vmem:[%s2 + $0x40] sm:$0xf]
      %v887 = vld [vmem:[%s2 + $0x44] sm:$0xf]
      %v888 = vld [vmem:[%s3] sm:$0x1]
      %v890 = vperm.slane %v888, 0
      %v910 = vunpack.c.l.b16 %v870
      %v911 = vunpack.c.l.b16 %v871
      %v912 = vunpack.c.l.b16 %v872
      %v913 = vunpack.c.l.b16 %v873
      %v914 = vunpack.c.l.b16 %v874
      %v915 = vunpack.c.l.b16 %v875
      %v916 = vunpack.c.l.b16 %v876
      %v917 = vunpack.c.l.b16 %v877
      %v918 = vunpack.c.l.b16 %v878
      %v919 = vunpack.c.l.b16 %v879
      %v920 = vunpack.c.l.b16 %v880
      %v921 = vunpack.c.l.b16 %v881
      %v922 = vunpack.c.l.b16 %v882
      %v923 = vunpack.c.l.b16 %v883
      %v924 = vunpack.c.l.b16 %v884
      %v925 = vunpack.c.l.b16 %v885
      %v926 = vunpack.c.l.b16 %v886
      %v927 = vunpack.c.l.b16 %v887
      %v928 = vpack.c.b16 %v911, %v910
      %v929 = vpack.c.b16 %v913, %v912
      %v930 = vpack.c.b16 %v915, %v914
      %v931 = vpack.c.b16 %v917, %v916
      %v932 = vpack.c.b16 %v919, %v918
      %v933 = vpack.c.b16 %v921, %v920
      %v934 = vpack.c.b16 %v923, %v922
      %v935 = vpack.c.b16 %v925, %v924
      %v936 = vpack.c.b16 %v927, %v926
      %vm946 = vcmask 130048
      %v948 = vsel %vm946, %v859, 0
      %v951 = vsel %vm946, %v861, 0
      %v954 = vsel %vm946, %v863, 0
      %v957 = vsel %vm946, %v865, 0
      %v960 = vsel %vm946, %v867, 0
      %v963 = vsel %vm946, %v869, 0
      %965 = vmatpush.bf16.msra.mxu0 %v935
      %966 = vmatpush.bf16.msra.mxu0 %v934
      %967 = vmatpush.bf16.msra.mxu0 %v933
      %968 = vmatpush.bf16.msra.mxu0 %v932
      %969 = vmatpush.bf16.msra.mxu0 %v931
      %970 = vmatpush.bf16.msra.mxu0 %v930
      %971 = vmatpush.bf16.msra.mxu0 %v929
      %972 = vmatpush.bf16.msra.mxu0 %v928
      %973 = vmatmul.bf16.gmra.mxu0 %v858
      %v974 = vpop.f32.mrf.mxu0
      %v975 = vadd.f32 %v890, %v974
      %v976 = vpop.f32.mrf.mxu0
      %v977 = vadd.f32 %v890, %v976
      %978 = vmatmul.bf16.gmra.mxu0 %v860
      %v979 = vpop.f32.mrf.mxu0
      %v980 = vadd.f32 %v890, %v979
      %v981 = vpop.f32.mrf.mxu0
      %v982 = vadd.f32 %v890, %v981
      %983 = vmatmul.bf16.gmra.mxu0 %v862
      %v984 = vpop.f32.mrf.mxu0
      %v985 = vadd.f32 %v890, %v984
      %v986 = vpop.f32.mrf.mxu0
      %v987 = vadd.f32 %v890, %v986
      %988 = vmatmul.bf16.gmra.mxu0 %v864
      %v989 = vpop.f32.mrf.mxu0
      %v990 = vadd.f32 %v890, %v989
      %v991 = vpop.f32.mrf.mxu0
      %v992 = vadd.f32 %v890, %v991
      %993 = vmatmul.bf16.gmra.mxu0 %v866
      %v994 = vpop.f32.mrf.mxu0
      %v995 = vadd.f32 %v890, %v994
      %v996 = vpop.f32.mrf.mxu0
      %v997 = vadd.f32 %v890, %v996
      %998 = vmatmul.bf16.gmra.mxu0 %v868
      %v999 = vpop.f32.mrf.mxu0
      %v1000 = vadd.f32 %v890, %v999
      %v1001 = vpop.f32.mrf.mxu0
      %v1002 = vadd.f32 %v890, %v1001
      %1003 = vdwg.mxu0
      %1004 = vmatpush.bf16.msra.mxu0 0
      %1005 = vmatpush.bf16.msra.mxu0 0
      %1006 = vmatpush.bf16.msra.mxu0 0
      %1007 = vmatpush.bf16.msra.mxu0 0
      %1008 = vmatpush.bf16.msra.mxu0 0
      %1009 = vmatpush.bf16.msra.mxu0 0
      %1010 = vmatpush.bf16.msra.mxu0 0
      %1011 = vmatpush.bf16.msra.mxu0 %v936
      %1012 = vmatmul.bf16.gmra.mxu0 %v948
      %v1013 = vpop.f32.mrf.mxu0
      %v1014 = vadd.f32 %v975, %v1013
      %v1015 = vpop.f32.mrf.mxu0
      %v1016 = vadd.f32 %v977, %v1015
      %1017 = vmatmul.bf16.gmra.mxu0 %v951
      %v1018 = vpop.f32.mrf.mxu0
      %v1019 = vadd.f32 %v980, %v1018
      %v1020 = vpop.f32.mrf.mxu0
      %v1021 = vadd.f32 %v982, %v1020
      %1022 = vmatmul.bf16.gmra.mxu0 %v954
      %v1023 = vpop.f32.mrf.mxu0
      %v1024 = vadd.f32 %v985, %v1023
      %v1025 = vpop.f32.mrf.mxu0
      %v1026 = vadd.f32 %v987, %v1025
      %1027 = vmatmul.bf16.gmra.mxu0 %v957
      %v1028 = vpop.f32.mrf.mxu0
      %v1029 = vadd.f32 %v990, %v1028
      %v1030 = vpop.f32.mrf.mxu0
      %v1031 = vadd.f32 %v992, %v1030
      %1032 = vmatmul.bf16.gmra.mxu0 %v960
      %v1033 = vpop.f32.mrf.mxu0
      %v1034 = vadd.f32 %v995, %v1033
      %v1035 = vpop.f32.mrf.mxu0
      %v1036 = vadd.f32 %v997, %v1035
      %1037 = vmatmul.bf16.gmra.mxu0 %v963
      %v1038 = vpop.f32.mrf.mxu0
      %v1039 = vadd.f32 %v1000, %v1038
      %v1040 = vpop.f32.mrf.mxu0
      %v1041 = vadd.f32 %v1002, %v1040
      %1042 = vdwg.mxu0
      %v1043 = vpack.c.bf16 %v1014, %v1014
      %v1044 = vpack.c.bf16 %v1016, %v1016
      %v1045 = vpack.c.bf16 %v1019, %v1019
      %v1046 = vpack.c.bf16 %v1021, %v1021
      %v1047 = vpack.c.bf16 %v1024, %v1024
      %v1048 = vpack.c.bf16 %v1026, %v1026
      %v1049 = vpack.c.bf16 %v1029, %v1029
      %v1050 = vpack.c.bf16 %v1031, %v1031
      %v1051 = vpack.c.bf16 %v1034, %v1034
      %v1052 = vpack.c.bf16 %v1036, %v1036
      %v1053 = vpack.c.bf16 %v1039, %v1039
      %v1054 = vpack.c.bf16 %v1041, %v1041
      %v1055 = vunpack.c.l.bf16 %v1043
      %v1056 = vunpack.c.l.bf16 %v1044
      %v1057 = vunpack.c.l.bf16 %v1045
      %v1058 = vunpack.c.l.bf16 %v1046
      %v1059 = vunpack.c.l.bf16 %v1047
      %v1060 = vunpack.c.l.bf16 %v1048
      %v1061 = vunpack.c.l.bf16 %v1049
      %v1062 = vunpack.c.l.bf16 %v1050
      %v1063 = vunpack.c.l.bf16 %v1051
      %v1064 = vunpack.c.l.bf16 %v1052
      %v1065 = vunpack.c.l.bf16 %v1053
      %v1066 = vunpack.c.l.bf16 %v1054
      %v1067 = vmax.f32 %v1055, 0.0
      %v1068 = vmax.f32 %v1056, 0.0
      %v1069 = vmax.f32 %v1057, 0.0
      %v1070 = vmax.f32 %v1058, 0.0
      %v1071 = vmax.f32 %v1059, 0.0
      %v1072 = vmax.f32 %v1060, 0.0
      %v1073 = vmax.f32 %v1061, 0.0
      %v1074 = vmax.f32 %v1062, 0.0
      %v1075 = vmax.f32 %v1063, 0.0
      %v1076 = vmax.f32 %v1064, 0.0
      %v1077 = vmax.f32 %v1065, 0.0
      %v1078 = vmax.f32 %v1066, 0.0
      %v1079 = vpack.c.bf16 %v1068, %v1067
      %v1080 = vpack.c.bf16 %v1070, %v1069
      %v1081 = vpack.c.bf16 %v1072, %v1071
      %v1082 = vpack.c.bf16 %v1074, %v1073
      %v1083 = vpack.c.bf16 %v1076, %v1075
      %v1084 = vpack.c.bf16 %v1078, %v1077
      %v1085 = vld [vmem:[%s4] sm:$0xf]
      %v1086 = vld [vmem:[%s4 + $0x4] sm:$0xf]
      %v1087 = vld [vmem:[%s5] sm:$0x1]
      %v1089 = vperm.slane %v1087, 0
      %v1093 = vunpack.c.l.b16 %v1085
      %v1094 = vunpack.c.l.b16 %v1086
      %v1095 = vpack.c.b16 %v1094, %v1093
      %v1098 = vsel %vm946, %v1079, 0
      %v1101 = vsel %vm946, %v1080, 0
      %v1104 = vsel %vm946, %v1081, 0
      %v1107 = vsel %vm946, %v1082, 0
      %v1110 = vsel %vm946, %v1083, 0
      %v1113 = vsel %vm946, %v1084, 0
      %1115 = vmatpush.bf16.msra.mxu0 0
      %1116 = vmatpush.bf16.msra.mxu0 0
      %1117 = vmatpush.bf16.msra.mxu0 0
      %1118 = vmatpush.bf16.msra.mxu0 0
      %1119 = vmatpush.bf16.msra.mxu0 0
      %1120 = vmatpush.bf16.msra.mxu0 0
      %1121 = vmatpush.bf16.msra.mxu0 0
      %1122 = vmatpush.bf16.msra.mxu0 %v1095
      %1123 = vmatmul.bf16.gmra.mxu0 %v1098
      %v1124 = vpop.f32.mrf.mxu0
      %v1125 = vadd.f32 %v1089, %v1124
      %v1126 = vpop.f32.mrf.mxu0
      %v1127 = vadd.f32 %v1089, %v1126
      %1128 = vmatmul.bf16.gmra.mxu0 %v1101
      %v1129 = vpop.f32.mrf.mxu0
      %v1130 = vadd.f32 %v1089, %v1129
      %v1131 = vpop.f32.mrf.mxu0
      %v1132 = vadd.f32 %v1089, %v1131
      %1133 = vmatmul.bf16.gmra.mxu0 %v1104
      %v1134 = vpop.f32.mrf.mxu0
      %v1135 = vadd.f32 %v1089, %v1134
      %v1136 = vpop.f32.mrf.mxu0
      %v1137 = vadd.f32 %v1089, %v1136
      %1138 = vmatmul.bf16.gmra.mxu0 %v1107
      %v1139 = vpop.f32.mrf.mxu0
      %v1140 = vadd.f32 %v1089, %v1139
      %v1141 = vpop.f32.mrf.mxu0
      %v1142 = vadd.f32 %v1089, %v1141
      %1143 = vmatmul.bf16.gmra.mxu0 %v1110
      %v1144 = vpop.f32.mrf.mxu0
      %v1145 = vadd.f32 %v1089, %v1144
      %v1146 = vpop.f32.mrf.mxu0
      %v1147 = vadd.f32 %v1089, %v1146
      %1148 = vmatmul.bf16.gmra.mxu0 %v1113
      %v1149 = vpop.f32.mrf.mxu0
      %v1150 = vadd.f32 %v1089, %v1149
      %v1151 = vpop.f32.mrf.mxu0
      %v1152 = vadd.f32 %v1089, %v1151
      %1153 = vdwg.mxu0
      %v1154 = vpack.c.bf16 %v1125, %v1125
      %v1155 = vpack.c.bf16 %v1127, %v1127
      %v1156 = vpack.c.bf16 %v1130, %v1130
      %v1157 = vpack.c.bf16 %v1132, %v1132
      %v1158 = vpack.c.bf16 %v1135, %v1135
      %v1159 = vpack.c.bf16 %v1137, %v1137
      %v1160 = vpack.c.bf16 %v1140, %v1140
      %v1161 = vpack.c.bf16 %v1142, %v1142
      %v1162 = vpack.c.bf16 %v1145, %v1145
      %v1163 = vpack.c.bf16 %v1147, %v1147
      %v1164 = vpack.c.bf16 %v1150, %v1150
      %v1165 = vpack.c.bf16 %v1152, %v1152
      %v1166 = vunpack.c.l.bf16 %v1154
      %v1167 = vunpack.c.l.bf16 %v1155
      %v1168 = vunpack.c.l.bf16 %v1156
      %v1169 = vunpack.c.l.bf16 %v1157
      %v1170 = vunpack.c.l.bf16 %v1158
      %v1171 = vunpack.c.l.bf16 %v1159
      %v1172 = vunpack.c.l.bf16 %v1160
      %v1173 = vunpack.c.l.bf16 %v1161
      %v1174 = vunpack.c.l.bf16 %v1162
      %v1175 = vunpack.c.l.bf16 %v1163
      %v1176 = vunpack.c.l.bf16 %v1164
      %v1177 = vunpack.c.l.bf16 %v1165
      %v1178 = vmax.f32 %v1166, 0.0
      %v1179 = vmax.f32 %v1167, 0.0
      %v1180 = vmax.f32 %v1168, 0.0
      %v1181 = vmax.f32 %v1169, 0.0
      %v1182 = vmax.f32 %v1170, 0.0
      %v1183 = vmax.f32 %v1171, 0.0
      %v1184 = vmax.f32 %v1172, 0.0
      %v1185 = vmax.f32 %v1173, 0.0
      %v1186 = vmax.f32 %v1174, 0.0
      %v1187 = vmax.f32 %v1175, 0.0
      %v1188 = vmax.f32 %v1176, 0.0
      %v1189 = vmax.f32 %v1177, 0.0
      %v1190 = vpack.c.bf16 %v1179, %v1178
      %v1191 = vpack.c.bf16 %v1181, %v1180
      %v1192 = vpack.c.bf16 %v1183, %v1182
      %v1193 = vpack.c.bf16 %v1185, %v1184
      %v1194 = vpack.c.bf16 %v1187, %v1186
      %v1195 = vpack.c.bf16 %v1189, %v1188
      %v1196 = vld [vmem:[%s6] sm:$0xf]
      %v1197 = vld [vmem:[%s6 + $0x4] sm:$0xf]
      %v1198 = vld [vmem:[%s6 + $0x8] sm:$0xf]
      %v1199 = vld [vmem:[%s6 + $0xc] sm:$0xf]
      %v1200 = vld [vmem:[%s7] sm:$0x1]
      %v1202 = vperm.slane %v1200, 0
      %v1208 = vunpack.c.l.b16 %v1196
      %v1209 = vunpack.c.l.b16 %v1197
      %v1210 = vunpack.c.l.b16 %v1198
      %v1211 = vunpack.c.l.b16 %v1199
      %v1212 = vpack.c.b16 %v1209, %v1208
      %v1213 = vpack.c.b16 %v1211, %v1210
      %vm1216 = vcmask 261120
      %v1218 = vsel %vm1216, %v1190, 0
      %v1221 = vsel %vm1216, %v1191, 0
      %v1224 = vsel %vm1216, %v1192, 0
      %v1227 = vsel %vm1216, %v1193, 0
      %v1230 = vsel %vm1216, %v1194, 0
      %v1233 = vsel %vm1216, %v1195, 0
      %1235 = vmatpush.bf16.msra.mxu0 0
      %1236 = vmatpush.bf16.msra.mxu0 0
      %1237 = vmatpush.bf16.msra.mxu0 0
      %1238 = vmatpush.bf16.msra.mxu0 0
      %1239 = vmatpush.bf16.msra.mxu0 0
      %1240 = vmatpush.bf16.msra.mxu0 0
      %1241 = vmatpush.bf16.msra.mxu0 %v1213
      %1242 = vmatpush.bf16.msra.mxu0 %v1212
      %1243 = vmatmul.bf16.gmra.mxu0 %v1218
      %v1244 = vpop.f32.mrf.mxu0
      %v1245 = vadd.f32 %v1202, %v1244
      %v1246 = vpop.f32.mrf.mxu0
      %v1247 = vadd.f32 %v1202, %v1246
      %1248 = vmatmul.bf16.gmra.mxu0 %v1221
      %v1249 = vpop.f32.mrf.mxu0
      %v1250 = vadd.f32 %v1202, %v1249
      %v1251 = vpop.f32.mrf.mxu0
      %v1252 = vadd.f32 %v1202, %v1251
      %1253 = vmatmul.bf16.gmra.mxu0 %v1224
      %v1254 = vpop.f32.mrf.mxu0
      %v1255 = vadd.f32 %v1202, %v1254
      %v1256 = vpop.f32.mrf.mxu0
      %v1257 = vadd.f32 %v1202, %v1256
      %1258 = vmatmul.bf16.gmra.mxu0 %v1227
      %v1259 = vpop.f32.mrf.mxu0
      %v1260 = vadd.f32 %v1202, %v1259
      %v1261 = vpop.f32.mrf.mxu0
      %v1262 = vadd.f32 %v1202, %v1261
      %1263 = vmatmul.bf16.gmra.mxu0 %v1230
      %v1264 = vpop.f32.mrf.mxu0
      %v1265 = vadd.f32 %v1202, %v1264
      %v1266 = vpop.f32.mrf.mxu0
      %v1267 = vadd.f32 %v1202, %v1266
      %1268 = vmatmul.bf16.gmra.mxu0 %v1233
      %v1269 = vpop.f32.mrf.mxu0
      %v1270 = vadd.f32 %v1202, %v1269
      %v1271 = vpop.f32.mrf.mxu0
      %v1272 = vadd.f32 %v1202, %v1271
      %1273 = vdwg.mxu0
      %v1274 = vpack.c.bf16 %v1245, %v1245
      %v1275 = vpack.c.bf16 %v1247, %v1247
      %v1276 = vpack.c.bf16 %v1250, %v1250
      %v1277 = vpack.c.bf16 %v1252, %v1252
      %v1278 = vpack.c.bf16 %v1255, %v1255
      %v1279 = vpack.c.bf16 %v1257, %v1257
      %v1280 = vpack.c.bf16 %v1260, %v1260
      %v1281 = vpack.c.bf16 %v1262, %v1262
      %v1282 = vpack.c.bf16 %v1265, %v1265
      %v1283 = vpack.c.bf16 %v1267, %v1267
      %v1284 = vpack.c.bf16 %v1270, %v1270
      %v1285 = vpack.c.bf16 %v1272, %v1272
      %v1286 = vunpack.c.l.bf16 %v1274
      %v1287 = vunpack.c.l.bf16 %v1275
      %v1288 = vunpack.c.l.bf16 %v1276
      %v1289 = vunpack.c.l.bf16 %v1277
      %v1290 = vunpack.c.l.bf16 %v1278
      %v1291 = vunpack.c.l.bf16 %v1279
      %v1292 = vunpack.c.l.bf16 %v1280
      %v1293 = vunpack.c.l.bf16 %v1281
      %v1294 = vunpack.c.l.bf16 %v1282
      %v1295 = vunpack.c.l.bf16 %v1283
      %v1296 = vunpack.c.l.bf16 %v1284
      %v1297 = vunpack.c.l.bf16 %v1285
      %v1298 = vadd.f32 %v1286, 3.0
      %v1299 = vadd.f32 %v1287, 3.0
      %v1300 = vadd.f32 %v1288, 3.0
      %v1301 = vadd.f32 %v1289, 3.0
      %v1302 = vadd.f32 %v1290, 3.0
      %v1303 = vadd.f32 %v1291, 3.0
      %v1304 = vadd.f32 %v1292, 3.0
      %v1305 = vadd.f32 %v1293, 3.0
      %v1306 = vadd.f32 %v1294, 3.0
      %v1307 = vadd.f32 %v1295, 3.0
      %v1308 = vadd.f32 %v1296, 3.0
      %v1309 = vadd.f32 %v1297, 3.0
      %v1310 = vpack.c.bf16 %v1298, %v1298
      %v1311 = vpack.c.bf16 %v1299, %v1299
      %v1312 = vpack.c.bf16 %v1300, %v1300
      %v1313 = vpack.c.bf16 %v1301, %v1301
      %v1314 = vpack.c.bf16 %v1302, %v1302
      %v1315 = vpack.c.bf16 %v1303, %v1303
      %v1316 = vpack.c.bf16 %v1304, %v1304
      %v1317 = vpack.c.bf16 %v1305, %v1305
      %v1318 = vpack.c.bf16 %v1306, %v1306
      %v1319 = vpack.c.bf16 %v1307, %v1307
      %v1320 = vpack.c.bf16 %v1308, %v1308
      %v1321 = vpack.c.bf16 %v1309, %v1309
      %v1322 = vunpack.c.l.bf16 %v1310
      %v1323 = vunpack.c.l.bf16 %v1311
      %v1324 = vunpack.c.l.bf16 %v1312
      %v1325 = vunpack.c.l.bf16 %v1313
      %v1326 = vunpack.c.l.bf16 %v1314
      %v1327 = vunpack.c.l.bf16 %v1315
      %v1328 = vunpack.c.l.bf16 %v1316
      %v1329 = vunpack.c.l.bf16 %v1317
      %v1330 = vunpack.c.l.bf16 %v1318
      %v1331 = vunpack.c.l.bf16 %v1319
      %v1332 = vunpack.c.l.bf16 %v1320
      %v1333 = vunpack.c.l.bf16 %v1321
      %v1334 = vmax.f32 %v1322, 0.0
      %v1335 = vmax.f32 %v1323, 0.0
      %v1336 = vmax.f32 %v1324, 0.0
      %v1337 = vmax.f32 %v1325, 0.0
      %v1338 = vmax.f32 %v1326, 0.0
      %v1339 = vmax.f32 %v1327, 0.0
      %v1340 = vmax.f32 %v1328, 0.0
      %v1341 = vmax.f32 %v1329, 0.0
      %v1342 = vmax.f32 %v1330, 0.0
      %v1343 = vmax.f32 %v1331, 0.0
      %v1344 = vmax.f32 %v1332, 0.0
      %v1345 = vmax.f32 %v1333, 0.0
      %v1346 = vpack.c.bf16 %v1334, %v1334
      %v1347 = vpack.c.bf16 %v1335, %v1335
      %v1348 = vpack.c.bf16 %v1336, %v1336
      %v1349 = vpack.c.bf16 %v1337, %v1337
      %v1350 = vpack.c.bf16 %v1338, %v1338
      %v1351 = vpack.c.bf16 %v1339, %v1339
      %v1352 = vpack.c.bf16 %v1340, %v1340
      %v1353 = vpack.c.bf16 %v1341, %v1341
      %v1354 = vpack.c.bf16 %v1342, %v1342
      %v1355 = vpack.c.bf16 %v1343, %v1343
      %v1356 = vpack.c.bf16 %v1344, %v1344
      %v1357 = vpack.c.bf16 %v1345, %v1345
      %v1358 = vunpack.c.l.bf16 %v1346
      %v1359 = vunpack.c.l.bf16 %v1347
      %v1360 = vunpack.c.l.bf16 %v1348
      %v1361 = vunpack.c.l.bf16 %v1349
      %v1362 = vunpack.c.l.bf16 %v1350
      %v1363 = vunpack.c.l.bf16 %v1351
      %v1364 = vunpack.c.l.bf16 %v1352
      %v1365 = vunpack.c.l.bf16 %v1353
      %v1366 = vunpack.c.l.bf16 %v1354
      %v1367 = vunpack.c.l.bf16 %v1355
      %v1368 = vunpack.c.l.bf16 %v1356
      %v1369 = vunpack.c.l.bf16 %v1357
      %v1370 = vmin.f32 %v1358, 6.0
      %v1371 = vmin.f32 %v1359, 6.0
      %v1372 = vmin.f32 %v1360, 6.0
      %v1373 = vmin.f32 %v1361, 6.0
      %v1374 = vmin.f32 %v1362, 6.0
      %v1375 = vmin.f32 %v1363, 6.0
      %v1376 = vmin.f32 %v1364, 6.0
      %v1377 = vmin.f32 %v1365, 6.0
      %v1378 = vmin.f32 %v1366, 6.0
      %v1379 = vmin.f32 %v1367, 6.0
      %v1380 = vmin.f32 %v1368, 6.0
      %v1381 = vmin.f32 %v1369, 6.0
      %v1382 = vpack.c.bf16 %v1370, %v1370
      %v1383 = vpack.c.bf16 %v1371, %v1371
      %v1384 = vpack.c.bf16 %v1372, %v1372
      %v1385 = vpack.c.bf16 %v1373, %v1373
      %v1386 = vpack.c.bf16 %v1374, %v1374
      %v1387 = vpack.c.bf16 %v1375, %v1375
      %v1388 = vpack.c.bf16 %v1376, %v1376
      %v1389 = vpack.c.bf16 %v1377, %v1377
      %v1390 = vpack.c.bf16 %v1378, %v1378
      %v1391 = vpack.c.bf16 %v1379, %v1379
      %v1392 = vpack.c.bf16 %v1380, %v1380
      %v1393 = vpack.c.bf16 %v1381, %v1381
      %v1394 = vunpack.c.l.bf16 %v1382
      %v1395 = vunpack.c.l.bf16 %v1383
      %v1396 = vunpack.c.l.bf16 %v1384
      %v1397 = vunpack.c.l.bf16 %v1385
      %v1398 = vunpack.c.l.bf16 %v1386
      %v1399 = vunpack.c.l.bf16 %v1387
      %v1400 = vunpack.c.l.bf16 %v1388
      %v1401 = vunpack.c.l.bf16 %v1389
      %v1402 = vunpack.c.l.bf16 %v1390
      %v1403 = vunpack.c.l.bf16 %v1391
      %v1404 = vunpack.c.l.bf16 %v1392
      %v1405 = vunpack.c.l.bf16 %v1393
      %v1406 = vmul.f32 %v1286, %v1394
      %v1407 = vmul.f32 %v1287, %v1395
      %v1408 = vmul.f32 %v1288, %v1396
      %v1409 = vmul.f32 %v1289, %v1397
      %v1410 = vmul.f32 %v1290, %v1398
      %v1411 = vmul.f32 %v1291, %v1399
      %v1412 = vmul.f32 %v1292, %v1400
      %v1413 = vmul.f32 %v1293, %v1401
      %v1414 = vmul.f32 %v1294, %v1402
      %v1415 = vmul.f32 %v1295, %v1403
      %v1416 = vmul.f32 %v1296, %v1404
      %v1417 = vmul.f32 %v1297, %v1405
      %v1418 = vpack.c.bf16 %v1406, %v1406
      %v1419 = vpack.c.bf16 %v1407, %v1407
      %v1420 = vpack.c.bf16 %v1408, %v1408
      %v1421 = vpack.c.bf16 %v1409, %v1409
      %v1422 = vpack.c.bf16 %v1410, %v1410
      %v1423 = vpack.c.bf16 %v1411, %v1411
      %v1424 = vpack.c.bf16 %v1412, %v1412
      %v1425 = vpack.c.bf16 %v1413, %v1413
      %v1426 = vpack.c.bf16 %v1414, %v1414
      %v1427 = vpack.c.bf16 %v1415, %v1415
      %v1428 = vpack.c.bf16 %v1416, %v1416
      %v1429 = vpack.c.bf16 %v1417, %v1417
      %v1430 = vunpack.c.l.bf16 %v1418
      %v1431 = vunpack.c.l.bf16 %v1419
      %v1432 = vunpack.c.l.bf16 %v1420
      %v1433 = vunpack.c.l.bf16 %v1421
      %v1434 = vunpack.c.l.bf16 %v1422
      %v1435 = vunpack.c.l.bf16 %v1423
      %v1436 = vunpack.c.l.bf16 %v1424
      %v1437 = vunpack.c.l.bf16 %v1425
      %v1438 = vunpack.c.l.bf16 %v1426
      %v1439 = vunpack.c.l.bf16 %v1427
      %v1440 = vunpack.c.l.bf16 %v1428
      %v1441 = vunpack.c.l.bf16 %v1429
      %v1442 = vmul.f32 %v1430, 0.16699219
      %v1443 = vmul.f32 %v1431, 0.16699219
      %v1444 = vmul.f32 %v1432, 0.16699219
      %v1445 = vmul.f32 %v1433, 0.16699219
      %v1446 = vmul.f32 %v1434, 0.16699219
      %v1447 = vmul.f32 %v1435, 0.16699219
      %v1448 = vmul.f32 %v1436, 0.16699219
      %v1449 = vmul.f32 %v1437, 0.16699219
      %v1450 = vmul.f32 %v1438, 0.16699219
      %v1451 = vmul.f32 %v1439, 0.16699219
      %v1452 = vmul.f32 %v1440, 0.16699219
      %v1453 = vmul.f32 %v1441, 0.16699219
      %v1454 = vpack.c.bf16 %v1443, %v1442
      %v1455 = vpack.c.bf16 %v1445, %v1444
      %v1456 = vpack.c.bf16 %v1447, %v1446
      %v1457 = vpack.c.bf16 %v1449, %v1448
      %v1458 = vpack.c.bf16 %v1451, %v1450
      %v1459 = vpack.c.bf16 %v1453, %v1452
      %p1460 = scmp.lt.s32.totalorder %s23, 0
      %s1461 = ssub.s32 0, %s23
      %s1462 = scalar_select %p1460, %s1461, %s23
      %s1463 = sand.u32 %s1462, 1
      %s1464 = ssub.s32 0, %s1463
      %s1465 = scalar_select %p1460, %s1464, %s1463
      %p1466 = scmp.ne.s32.totalorder %s1465, 0
      %p1467 = scmp.lt.s32.totalorder %s1465, 0
      %p1468 = pnand %p1467, %p1466
      %p1469 = pneg %p1468
      %s1470 = sadd.s32 %s1465, 2
      %s1471 = scalar_select %p1469, %s1470, %s1465
      %s1472 = smul.u32 %s24, 96
      %v1473 = vlaneseq
      %v1474 = vand.u32 %v1473, 127
      %v1475 = vstv %s1472
      %v1476 = vadd.s32 %v1475, %v1474
      %s1477 = smul.u32 %s1471, 96
      %v1478 = vstv %s1477
      %v1479 = vadd.s32 %v1476, %v1478
      %vm1480 = vcmp.lt.s32.totalorder %v1479, 192
      %v1481 = vsel %vm1480, 1, 0
      %v1482 = vcvt.s32.f32 %v1481
      %v1483 = vpack.c.bf16 %v1482, %v1482
      %v1484 = vld [vmem:[%s329] sm:$0x1]
      %vm1485 = vcmask 785408
      %v1487 = vsel %vm1485, %v1483, 0
      %1489 = vmatpush.bf16.msra.mxu0 0
      %1490 = vmatpush.bf16.msra.mxu0 0
      %1491 = vmatpush.bf16.msra.mxu0 %v1459
      %1492 = vmatpush.bf16.msra.mxu0 %v1458
      %1493 = vmatpush.bf16.msra.mxu0 %v1457
      %1494 = vmatpush.bf16.msra.mxu0 %v1456
      %1495 = vmatpush.bf16.msra.mxu0 %v1455
      %1496 = vmatpush.bf16.msra.mxu0 %v1454
      %1497 = vmatmul.bf16.gmra.mxu0 %v1487
      %v1498 = vpop.f32.mrf.mxu0
      %v1499 = vadd.f32 0.0, %v1498
      %v1500 = vpop.f32.mrf.mxu0
      %1501 = vdwg.mxu0
      %v1502 = vadd.f32 %v1484, %v1499
      %1503 = vst [vmem:[%s329] sm:$0x1] %v1502
      %p1504 = scmp.lt.s32.totalorder %s23, 3
      %s1505 = scalar_select %p1504, %s23, 3
      %s1506 = scalar_lea.vmem %s8, %s1505
      // Predicated region
      $region57: #{efficientat_forward.3} parent=51 // pred_check
        %p1507 = pneg %p224
      $region58: #{efficientat_forward.3} parent=51 // pred_check_branch
        %1509 = sbr.rel (%p1507) target = $region60
      $region59: #{efficientat_forward.3} parent=51 // pred_region
        _
      $region60: #{efficientat_forward.3} parent=51 // pred_fallthru
        _
    $region52: #{efficientat_forward.3} parent=5 // pred_fallthru
      _
    %p1510 = scmp.le.s32.totalorder 2, %s14
    // Predicated region
    $region61: #{efficientat_forward.3} parent=5 // pred_check
      %p1511 = pneg %p1510
    $region62: #{efficientat_forward.3} parent=5 // pred_check_branch
      %1513 = sbr.rel (%p1511) target = $region64
    $region63: #{efficientat_forward.3} parent=5 // pred_region
      %s1514 = ssub.s32 %s14, 2
      // Predicated region
      $region65: #{efficientat_forward.3} parent=63 // pred_check
        %p1515 = pneg %p230
      $region66: #{efficientat_forward.3} parent=63 // pred_check_branch
        %1517 = sbr.rel (%p1515) target = $region68
      $region67: #{efficientat_forward.3} parent=63 // pred_region
        %p1518 = scmp.lt.s32.totalorder %s25, 3
        %s1519 = scalar_select %p1518, %s25, 3
        %s1520 = scalar_lea.vmem %s8, %s1519
      $region68: #{efficientat_forward.3} parent=63 // pred_fallthru
        _
    $region64: #{efficientat_forward.3} parent=5 // pred_fallthru
      _
  $region6: #{efficientat_forward.3} parent=0 // loop_footer
    %s18 = sadd.s32 1, %s14
  $region7: #{efficientat_forward.3} parent=0 // loop_footer_branch
    %13 = sbr.rel target = $region3
  $region8: #{efficientat_forward.3} parent=0 // loop_exit
    _

</llo_original>
